<compile_context>
chip_gen: v7x
topology: tpu7x:2x2x1
jax: 0.10.0
libtpu: 0.0.40
codegen_flags: <defaults>
</compile_context>

<pallas_src>
import jax
import jax.numpy as jnp
from jax.experimental import pallas as pl
from jax.experimental.pallas import tpu as pltpu


KH, KW, STRIDE = 3, 7, 2
C_IN, C_OUT = 3, 16
N_PAD = 8            # batch padded to the sublane granule
K_PAD = 64           # im2col K (=63) padded to 64; pad column carries the conv bias
D1, D_OUT = 10, 2

# merged small-parameter tile layout (one DMA instead of six):
#   rows  0:10, cols 0:10 -> linear_2 weight (transposed)
#   rows 10:20, cols 0: 2 -> linear_3 weight (transposed)
#   row  20,    cols 0:10 -> linear_1 bias
#   row  21,    cols 0:10 -> linear_2 bias
#   row  22,    cols 0: 2 -> linear_3 bias
SM_ROWS, SM_COLS = 24, 128


def _vmem():
    return pl.BlockSpec(memory_space=pltpu.MemorySpace.VMEM)


# ---------------- fused Pallas kernel (the whole forward) ----------------

def fused_forward_kernel(p_ref, wc_ref, w1_ref, sm_ref, o_ref):
    # p_ref : (P*N_PAD, K_PAD) im2col patches, rows (p-major, n-minor), last col == 1.0
    # wc_ref: (K_PAD, C_OUT)   conv weight, conv bias folded into the last row
    # w1_ref: (P, C_OUT, D1)   linear_1 weight with PyTorch (c, p) flatten order folded in
    # sm_ref: (24, 128)        merged small params (w2^T, w3^T, b1, b2, b3)
    # o_ref : (N_PAD, D_OUT)
    n_pos, c_out, d1 = w1_ref.shape

    # conv (+bias) + tanh as one aligned K=64 MXU matmul, kept resident as a value.
    act = jnp.tanh(jnp.dot(p_ref[...], wc_ref[...],
                           preferred_element_type=jnp.float32))          # (P*8, C_OUT)

    # linear_1: leading-dim split lands exactly on 8-row sublane tiles (no relayout),
    # then one batched contraction over p and a tree reduction over p.
    act3 = act.reshape(n_pos, N_PAD, c_out)                              # (P, 8, C_OUT)
    prod = jnp.einsum("pnc,pcd->pnd", act3, w1_ref[...],
                      preferred_element_type=jnp.float32)                # (P, 8, D1)
    h1 = jnp.tanh(jnp.sum(prod, axis=0) + sm_ref[20:21, 0:d1])           # (8, D1)

    # linear_2 and linear_3 (weights / biases sliced out of the merged tile).
    h2 = jnp.dot(h1, sm_ref[0:10, 0:d1],
                 preferred_element_type=jnp.float32) + sm_ref[21:22, 0:d1]
    o_ref[...] = jnp.dot(h2, sm_ref[10:20, 0:D_OUT],
                         preferred_element_type=jnp.float32) + sm_ref[22:23, 0:D_OUT]


# ---------------- host-side glue ----------------

def im2col_padded(x):
    # x: (N, C, H, W) -> (P*N_PAD, K_PAD); rows ordered (p-major, n-minor), batch zero-padded
    # to 8, k ordered (c, kh, kw) and padded to 64 with a constant-1 column (conv-bias folding).
    n, _, h, w = x.shape
    h_out = (h - KH) // STRIDE + 1
    w_out = (w - KW) // STRIDE + 1
    p = h_out * w_out
    xp = jnp.pad(x, ((0, N_PAD - n), (0, 0), (0, 0), (0, 0)))
    cols = []
    for i in range(KH):
        for j in range(KW):
            cols.append(xp[:, :, i:i + STRIDE * h_out:STRIDE, j:j + STRIDE * w_out:STRIDE])
    pt = jnp.stack(cols, axis=2)                                    # (8, C, KH*KW, h_out, w_out)
    pt = pt.reshape(N_PAD, C_IN * KH * KW, p)                       # (8, K0, P)
    pt = pt.transpose(2, 0, 1).reshape(p * N_PAD, C_IN * KH * KW)   # (P*8, 63)  p-major rows
    # TODO(synk): one small XLA transpose remains (n-major -> p-major); it is required so the
    # per-position 8-row groups stay sublane-tile aligned for the in-kernel batched contraction.
    ones = jnp.ones((p * N_PAD, 1), pt.dtype)
    return jnp.concatenate([pt, ones], axis=1)                      # (P*8, 64)


def init_params(key, feat_dim):
    def uniform(k, shape, fan_in):
        bound = 1.0 / float(fan_in) ** 0.5
        return jax.random.uniform(k, shape, jnp.float32, -bound, bound)

    ks = jax.random.split(key, 8)
    fan_c = C_IN * KH * KW
    return {
        "conv_w": uniform(ks[0], (C_OUT, C_IN, KH, KW), fan_c),
        "conv_b": uniform(ks[1], (C_OUT,), fan_c),
        "w1": uniform(ks[2], (D1, feat_dim), feat_dim),
        "b1": uniform(ks[3], (D1,), feat_dim),
        "w2": uniform(ks[4], (D1, D1), D1),
        "b2": uniform(ks[5], (D1,), D1),
        "w3": uniform(ks[6], (D_OUT, D1), D1),
        "b3": uniform(ks[7], (D_OUT,), D1),
    }


def pack_params(params):
    # One-time packing: every transpose/reshape/pad of weights happens here, off the hot path.
    k0 = C_IN * KH * KW
    feat = params["w1"].shape[1]
    p = feat // C_OUT
    # conv weight as (K_PAD, C_OUT) with the bias folded into the padded 64th row
    wc = jnp.concatenate([params["conv_w"].reshape(C_OUT, k0).T,
                          params["conv_b"].reshape(1, C_OUT)], axis=0)           # (64, 16)
    # fold PyTorch (c, p) flatten order into per-position blocks: w1blk[p, c, d] = w1[d, c*P + p]
    w1blk = params["w1"].T.reshape(C_OUT, p, D1).transpose(1, 0, 2)              # (P, 16, 10)
    smalls = jnp.zeros((SM_ROWS, SM_COLS), jnp.float32)
    smalls = smalls.at[0:10, 0:D1].set(params["w2"].T)
    smalls = smalls.at[10:20, 0:D_OUT].set(params["w3"].T)
    smalls = smalls.at[20, 0:D1].set(params["b1"])
    smalls = smalls.at[21, 0:D1].set(params["b2"])
    smalls = smalls.at[22, 0:D_OUT].set(params["b3"])
    return {"wc": wc, "w1blk": w1blk, "smalls": smalls}


@jax.jit
def model_tanh_forward(x, packed):
    n = x.shape[0]
    patches = im2col_padded(x)                      # (P*8, 64), small fused XLA prologue
    out = pl.pallas_call(
        fused_forward_kernel,
        out_shape=jax.ShapeDtypeStruct((N_PAD, D_OUT), jnp.float32),
        in_specs=[_vmem()] * 4,
        out_specs=_vmem(),
    )(patches, packed["wc"], packed["w1blk"], packed["smalls"])
    return out[:n]                                  # drop padded batch rows


def reference_forward(x, params):
    # pure-JAX reference for validation (full f32 precision on the TPU MXU)
    hi = jax.lax.Precision.HIGHEST
    y = jax.lax.conv_general_dilated(
        x, params["conv_w"], (STRIDE, STRIDE), "VALID",
        dimension_numbers=("NCHW", "OIHW", "NCHW"), precision=hi)
    y = y + params["conv_b"][None, :, None, None]
    y = jnp.tanh(y.reshape(x.shape[0], -1))
    y = jnp.tanh(jnp.dot(y, params["w1"].T, precision=hi) + params["b1"])
    y = jnp.dot(y, params["w2"].T, precision=hi) + params["b2"]
    y = jnp.dot(y, params["w3"].T, precision=hi) + params["b3"]
    return y


if __name__ == "__main__":
    key = jax.random.PRNGKey(0)
    kx, kp = jax.random.split(key)

    N, H, W = 2, 16, 16                                   # small shapes
    x = jax.random.normal(kx, (N, C_IN, H, W), jnp.float32)

    h_out = (H - KH) // STRIDE + 1                        # 7
    w_out = (W - KW) // STRIDE + 1                        # 5
    feat_dim = C_OUT * h_out * w_out                      # 560

    params = init_params(kp, feat_dim)
    packed = pack_params(params)                          # one-time, hoisted off the hot path

    out = jax.block_until_ready(model_tanh_forward(x, packed))
    ref = jax.block_until_ready(reference_forward(x, params))

    assert out.shape == (N, D_OUT)
    assert jnp.allclose(out, ref, atol=1e-3, rtol=1e-3), (out, ref)
    print("KERNEL_OK")
</pallas_src>

<mosaic_0001>
module attributes {stable_mosaic.version = 11 : i64} {
  func.func @fused_forward_kernel(%arg0: memref<280x64xf32, #tpu.memory_space<vmem>>, %arg1: memref<64x16xf32, #tpu.memory_space<vmem>>, %arg2: memref<35x16x10xf32, #tpu.memory_space<vmem>>, %arg3: memref<24x128xf32, #tpu.memory_space<vmem>>, %arg4: memref<8x2xf32, #tpu.memory_space<vmem>>) attributes {dimension_semantics = [], scalar_prefetch = 0 : i64, scratch_operands = 0 : i64, tpu.core_type = #tpu.core_type<tc>} {
    %c0 = arith.constant 0 : index
    %c0_0 = arith.constant 0 : index
    %0 = vector.load %arg0[%c0, %c0_0] : memref<280x64xf32, #tpu.memory_space<vmem>>, vector<280x64xf32>
    %c0_1 = arith.constant 0 : index
    %c0_2 = arith.constant 0 : index
    %1 = vector.load %arg1[%c0_1, %c0_2] : memref<64x16xf32, #tpu.memory_space<vmem>>, vector<64x16xf32>
    %cst = arith.constant dense<0.000000e+00> : vector<280x16xf32>
    %2 = tpu.matmul %0, %1, %cst {dimension_numbers = #tpu.dot_dimension_numbers<[1], [0], [0], [1], [0, 0, 1, 1], [], []>} : vector<280x64xf32>, vector<64x16xf32>, vector<280x16xf32> -> vector<280x16xf32>
    %3 = math.tanh %2 : vector<280x16xf32>
    %4 = vector.shape_cast %3 : vector<280x16xf32> to vector<35x8x16xf32>
    %c0_3 = arith.constant 0 : index
    %c0_4 = arith.constant 0 : index
    %c0_5 = arith.constant 0 : index
    %5 = vector.load %arg2[%c0_3, %c0_4, %c0_5] : memref<35x16x10xf32, #tpu.memory_space<vmem>>, vector<35x16x10xf32>
    "tpu.trace_start"() <{level = 10 : i32, message = "pnc,pcd->pnd"}> : () -> ()
    %cst_6 = arith.constant dense<0.000000e+00> : vector<35x8x10xf32>
    %6 = tpu.matmul %4, %5, %cst_6 {dimension_numbers = #tpu.dot_dimension_numbers<[2], [1], [1], [2], [0, 0, 0, 1, 1, 2], [0], [0]>} : vector<35x8x16xf32>, vector<35x16x10xf32>, vector<35x8x10xf32> -> vector<35x8x10xf32>
    "tpu.trace_stop"() : () -> ()
    %cst_7 = arith.constant dense<0.000000e+00> : vector<8x10xf32>
    %7 = vector.multi_reduction <add>, %6, %cst_7 [0] : vector<35x8x10xf32> to vector<8x10xf32>
    %c20 = arith.constant 20 : index
    %c0_8 = arith.constant 0 : index
    %8 = vector.load %arg3[%c20, %c0_8] : memref<24x128xf32, #tpu.memory_space<vmem>>, vector<1x10xf32>
    %9 = vector.broadcast %8 : vector<1x10xf32> to vector<8x10xf32>
    %10 = arith.addf %7, %9 : vector<8x10xf32>
    %11 = math.tanh %10 : vector<8x10xf32>
    %c0_9 = arith.constant 0 : index
    %c0_10 = arith.constant 0 : index
    %12 = vector.load %arg3[%c0_9, %c0_10] : memref<24x128xf32, #tpu.memory_space<vmem>>, vector<10x10xf32>
    %cst_11 = arith.constant dense<0.000000e+00> : vector<8x10xf32>
    %13 = tpu.matmul %11, %12, %cst_11 {dimension_numbers = #tpu.dot_dimension_numbers<[1], [0], [0], [1], [0, 0, 1, 1], [], []>} : vector<8x10xf32>, vector<10x10xf32>, vector<8x10xf32> -> vector<8x10xf32>
    %c21 = arith.constant 21 : index
    %c0_12 = arith.constant 0 : index
    %14 = vector.load %arg3[%c21, %c0_12] : memref<24x128xf32, #tpu.memory_space<vmem>>, vector<1x10xf32>
    %15 = vector.broadcast %14 : vector<1x10xf32> to vector<8x10xf32>
    %16 = arith.addf %13, %15 : vector<8x10xf32>
    %c10 = arith.constant 10 : index
    %c0_13 = arith.constant 0 : index
    %17 = vector.load %arg3[%c10, %c0_13] : memref<24x128xf32, #tpu.memory_space<vmem>>, vector<10x2xf32>
    %cst_14 = arith.constant dense<0.000000e+00> : vector<8x2xf32>
    %18 = tpu.matmul %16, %17, %cst_14 {dimension_numbers = #tpu.dot_dimension_numbers<[1], [0], [0], [1], [0, 0, 1, 1], [], []>} : vector<8x10xf32>, vector<10x2xf32>, vector<8x2xf32> -> vector<8x2xf32>
    %c22 = arith.constant 22 : index
    %c0_15 = arith.constant 0 : index
    %19 = vector.load %arg3[%c22, %c0_15] : memref<24x128xf32, #tpu.memory_space<vmem>>, vector<1x2xf32>
    %20 = vector.broadcast %19 : vector<1x2xf32> to vector<8x2xf32>
    %21 = arith.addf %18, %20 : vector<8x2xf32>
    %c0_16 = arith.constant 0 : index
    %c0_17 = arith.constant 0 : index
    %22 = vector.load %arg4[%c0_16, %c0_17] : memref<8x2xf32, #tpu.memory_space<vmem>>, vector<8x2xf32>
    tpu.vector_store %arg4[%c0_16, %c0_17], %21 {strides = array<i32>} : memref<8x2xf32, #tpu.memory_space<vmem>>, vector<8x2xf32>,
    return
  }
}

</mosaic_0001>

<llo_original>
// kernel: model_tanh_forward.1
$region0: #{model_tanh_forward.1}
  #allocation0 [shape = 'u32[]', space=smem, size = 0x4, offset = 0x4, fixed_abs, tag = 'smem constant byte address 0x4 - core index']
  #allocation1 [shape = 'u32[144,128]{1,0:T(1,128)}', space=vmem, size = 0x12000, scoped, tag = 'internal scratch']
  %s0 = inlined_call_operand.vmem [shape: f32[280,64], index: 0, kind: input, shape index: {}]
  %s1 = inlined_call_operand.vmem [shape: f32[64,16], index: 1, kind: input, shape index: {}]
  %s2 = inlined_call_operand.vmem [shape: f32[35,16,10], index: 2, kind: input, shape index: {}]
  %s3 = inlined_call_operand.vmem [shape: f32[24,128], index: 3, kind: input, shape index: {}]
  %s4 = inlined_call_operand.vmem [shape: f32[8,2], index: 4, kind: output, shape index: {}]
  %s5 = sld [smem:[#allocation0]]
  $region26: #{model_tanh_forward.1} parent=0
    _
  %s7 = ssub.s32 1, %s5
  %s8 = scalar_select 0, %s7, %s5
  // Predicated region
  $region2: #{model_tanh_forward.1} parent=0 // pred_check
    _
  $region3: #{model_tanh_forward.1} parent=0 // pred_check_branch
    %10 = sbr.rel (0) target = $region5
  $region4: #{model_tanh_forward.1} parent=0 // pred_region
    _
  $region5: #{model_tanh_forward.1} parent=0 // pred_fallthru
    _
  // Predicated region
  $region6: #{model_tanh_forward.1} parent=0 // pred_check
    _
  $region7: #{model_tanh_forward.1} parent=0 // pred_check_branch
    %12 = sbr.rel (0) target = $region9
  $region8: #{model_tanh_forward.1} parent=0 // pred_region
    _
  $region9: #{model_tanh_forward.1} parent=0 // pred_fallthru
    _
  // Predicated region
  $region10: #{model_tanh_forward.1} parent=0 // pred_check
    _
  $region11: #{model_tanh_forward.1} parent=0 // pred_check_branch
    %14 = sbr.rel (0) target = $region13
  $region12: #{model_tanh_forward.1} parent=0 // pred_region
    _
  $region13: #{model_tanh_forward.1} parent=0 // pred_fallthru
    _
  // Predicated region
  $region14: #{model_tanh_forward.1} parent=0 // pred_check
    _
  $region15: #{model_tanh_forward.1} parent=0 // pred_check_branch
    %16 = sbr.rel (0) target = $region17
  $region16: #{model_tanh_forward.1} parent=0 // pred_region
    _
  $region17: #{model_tanh_forward.1} parent=0 // pred_fallthru
    _
  %v17 = vld [vmem:[%s0] sm:$0xff]
  %v18 = vld [vmem:[%s0 + $0x8] sm:$0xff]
  %v19 = vld [vmem:[%s0 + $0x10] sm:$0xff]
  %v20 = vld [vmem:[%s0 + $0x18] sm:$0xff]
  %v21 = vld [vmem:[%s0 + $0x20] sm:$0xff]
  %v22 = vld [vmem:[%s0 + $0x28] sm:$0xff]
  %v23 = vld [vmem:[%s0 + $0x30] sm:$0xff]
  %v24 = vld [vmem:[%s0 + $0x38] sm:$0xff]
  %v25 = vld [vmem:[%s0 + $0x40] sm:$0xff]
  %v26 = vld [vmem:[%s0 + $0x48] sm:$0xff]
  %v27 = vld [vmem:[%s0 + $0x50] sm:$0xff]
  %v28 = vld [vmem:[%s0 + $0x58] sm:$0xff]
  %v29 = vld [vmem:[%s0 + $0x60] sm:$0xff]
  %v30 = vld [vmem:[%s0 + $0x68] sm:$0xff]
  %v31 = vld [vmem:[%s0 + $0x70] sm:$0xff]
  %v32 = vld [vmem:[%s0 + $0x78] sm:$0xff]
  %v33 = vld [vmem:[%s0 + $0x80] sm:$0xff]
  %v34 = vld [vmem:[%s0 + $0x88] sm:$0xff]
  %v35 = vld [vmem:[%s0 + $0x90] sm:$0xff]
  %v36 = vld [vmem:[%s0 + $0x98] sm:$0xff]
  %v37 = vld [vmem:[%s0 + $0xa0] sm:$0xff]
  %v38 = vld [vmem:[%s0 + $0xa8] sm:$0xff]
  %v39 = vld [vmem:[%s0 + $0xb0] sm:$0xff]
  %v40 = vld [vmem:[%s0 + $0xb8] sm:$0xff]
  %v41 = vld [vmem:[%s0 + $0xc0] sm:$0xff]
  %v42 = vld [vmem:[%s0 + $0xc8] sm:$0xff]
  %v43 = vld [vmem:[%s0 + $0xd0] sm:$0xff]
  %v44 = vld [vmem:[%s0 + $0xd8] sm:$0xff]
  %v45 = vld [vmem:[%s0 + $0xe0] sm:$0xff]
  %v46 = vld [vmem:[%s0 + $0xe8] sm:$0xff]
  %v47 = vld [vmem:[%s0 + $0xf0] sm:$0xff]
  %v48 = vld [vmem:[%s0 + $0xf8] sm:$0xff]
  %v49 = vld [vmem:[%s0 + $0x100] sm:$0xff]
  %v50 = vld [vmem:[%s0 + $0x108] sm:$0xff]
  %v51 = vld [vmem:[%s0 + $0x110] sm:$0xff]
  %v52 = vld [vmem:[%s1] sm:$0xff]
  %v53 = vld [vmem:[%s1 + $0x8] sm:$0xff]
  %v54 = vld [vmem:[%s1 + $0x10] sm:$0xff]
  %v55 = vld [vmem:[%s1 + $0x18] sm:$0xff]
  %v56 = vld [vmem:[%s1 + $0x20] sm:$0xff]
  %v57 = vld [vmem:[%s1 + $0x28] sm:$0xff]
  %v58 = vld [vmem:[%s1 + $0x30] sm:$0xff]
  %v59 = vld [vmem:[%s1 + $0x38] sm:$0xff]
  %vm60 = vcmask 523264
  %v62 = vsel %vm60, %v17, 0
  %v65 = vsel %vm60, %v18, 0
  %v68 = vsel %vm60, %v19, 0
  %v71 = vsel %vm60, %v20, 0
  %v74 = vsel %vm60, %v21, 0
  %v77 = vsel %vm60, %v22, 0
  %v80 = vsel %vm60, %v23, 0
  %v83 = vsel %vm60, %v24, 0
  %v86 = vsel %vm60, %v25, 0
  %v89 = vsel %vm60, %v26, 0
  %v92 = vsel %vm60, %v27, 0
  %v95 = vsel %vm60, %v28, 0
  %v98 = vsel %vm60, %v29, 0
  %v101 = vsel %vm60, %v30, 0
  %v104 = vsel %vm60, %v31, 0
  %v107 = vsel %vm60, %v32, 0
  %v110 = vsel %vm60, %v33, 0
  %v113 = vsel %vm60, %v34, 0
  %v116 = vsel %vm60, %v35, 0
  %v119 = vsel %vm60, %v36, 0
  %v122 = vsel %vm60, %v37, 0
  %v125 = vsel %vm60, %v38, 0
  %v128 = vsel %vm60, %v39, 0
  %v131 = vsel %vm60, %v40, 0
  %v134 = vsel %vm60, %v41, 0
  %v137 = vsel %vm60, %v42, 0
  %v140 = vsel %vm60, %v43, 0
  %v143 = vsel %vm60, %v44, 0
  %v146 = vsel %vm60, %v45, 0
  %v149 = vsel %vm60, %v46, 0
  %v152 = vsel %vm60, %v47, 0
  %v155 = vsel %vm60, %v48, 0
  %v158 = vsel %vm60, %v49, 0
  %v161 = vsel %vm60, %v50, 0
  %v164 = vsel %vm60, %v51, 0
  %166 = vmatprep.subr.mxu0 0.0
  %167 = vmatpush1.msra.mxu0 %v52
  %168 = vmatprep.subr.mxu0 0.0
  %169 = vmatpush1.msra.mxu0 %v53
  %170 = vmatprep.subr.mxu0 0.0
  %171 = vmatpush1.msra.mxu0 %v54
  %172 = vmatprep.subr.mxu0 0.0
  %173 = vmatpush1.msra.mxu0 %v55
  %174 = vmatprep.subr.mxu0 0.0
  %175 = vmatpush1.msra.mxu0 %v56
  %176 = vmatprep.subr.mxu0 0.0
  %177 = vmatpush1.msra.mxu0 %v57
  %178 = vmatprep.subr.mxu0 0.0
  %179 = vmatpush1.msra.mxu0 %v58
  %180 = vmatprep.subr.mxu0 0.0
  %181 = vmatpush1.msra.mxu0 %v59
  %182 = vmatprep.subr.mxu0 0.0
  %183 = vmatpush1.msra.mxu0 0.0
  %184 = vmatprep.subr.mxu0 0.0
  %185 = vmatpush1.msra.mxu0 0.0
  %186 = vmatprep.subr.mxu0 0.0
  %187 = vmatpush1.msra.mxu0 0.0
  %188 = vmatprep.subr.mxu0 0.0
  %189 = vmatpush1.msra.mxu0 0.0
  %190 = vmatprep.subr.mxu0 0.0
  %191 = vmatpush1.msra.mxu0 0.0
  %192 = vmatprep.subr.mxu0 0.0
  %193 = vmatpush1.msra.mxu0 0.0
  %194 = vmatprep.subr.mxu0 0.0
  %195 = vmatpush1.msra.mxu0 0.0
  %196 = vmatprep.subr.mxu0 0.0
  %197 = vmatpush1.msra.mxu0 0.0
  %198 = vmatprep.subr.mxu0 0.0
  %199 = vmatpush1.msra.mxu0 0.0
  %200 = vmatprep.subr.mxu0 0.0
  %201 = vmatpush1.msra.mxu0 0.0
  %202 = vmatprep.subr.mxu0 0.0
  %203 = vmatpush1.msra.mxu0 0.0
  %204 = vmatprep.subr.mxu0 0.0
  %205 = vmatpush1.msra.mxu0 0.0
  %206 = vmatprep.subr.mxu0 0.0
  %207 = vmatpush1.msra.mxu0 0.0
  %208 = vmatprep.subr.mxu0 0.0
  %209 = vmatpush1.msra.mxu0 0.0
  %210 = vmatprep.subr.mxu0 0.0
  %211 = vmatpush1.msra.mxu0 0.0
  %212 = vmatprep.subr.mxu0 0.0
  %213 = vmatpush1.msra.mxu0 0.0
  %214 = vmatprep.subr.mxu0 0.0
  %215 = vmatpush1.msra.mxu0 0.0
  %216 = vmatprep.subr.mxu0 0.0
  %217 = vmatpush1.msra.mxu0 0.0
  %218 = vmatprep.subr.mxu0 0.0
  %219 = vmatpush1.msra.mxu0 0.0
  %220 = vmatprep.subr.mxu0 0.0
  %221 = vmatpush1.msra.mxu0 0.0
  %222 = vmatprep.subr.mxu0 0.0
  %223 = vmatpush1.msra.mxu0 0.0
  %224 = vmatprep.subr.mxu0 0.0
  %225 = vmatpush1.msra.mxu0 0.0
  %226 = vmatprep.subr.mxu0 0.0
  %227 = vmatpush1.msra.mxu0 0.0
  %228 = vmatprep.subr.mxu0 0.0
  %229 = vmatpush1.msra.mxu0 0.0
  %230 = vmatprep.mubr.f32.mxu0 0.0
  %231 = vmatmul.mubr.f32.gmra.mrb[0].mxu0 %v62
  %v232 = vpop.f32.mrb[0].mxu0
  %v233 = vadd.f32 0.0, %v232
  %v234 = vpop.f32.mrb[0].mxu0
  %235 = vmatprep.mubr.f32.mxu0 0.0
  %236 = vmatmul.mubr.f32.gmra.mrb[0].mxu0 %v65
  %v237 = vpop.f32.mrb[0].mxu0
  %v238 = vadd.f32 0.0, %v237
  %v239 = vpop.f32.mrb[0].mxu0
  %240 = vmatprep.mubr.f32.mxu0 0.0
  %241 = vmatmul.mubr.f32.gmra.mrb[0].mxu0 %v68
  %v242 = vpop.f32.mrb[0].mxu0
  %v243 = vadd.f32 0.0, %v242
  %v244 = vpop.f32.mrb[0].mxu0
  %245 = vmatprep.mubr.f32.mxu0 0.0
  %246 = vmatmul.mubr.f32.gmra.mrb[0].mxu0 %v71
  %v247 = vpop.f32.mrb[0].mxu0
  %v248 = vadd.f32 0.0, %v247
  %v249 = vpop.f32.mrb[0].mxu0
  %250 = vmatprep.mubr.f32.mxu0 0.0
  %251 = vmatmul.mubr.f32.gmra.mrb[0].mxu0 %v74
  %v252 = vpop.f32.mrb[0].mxu0
  %v253 = vadd.f32 0.0, %v252
  %v254 = vpop.f32.mrb[0].mxu0
  %255 = vmatprep.mubr.f32.mxu0 0.0
  %256 = vmatmul.mubr.f32.gmra.mrb[0].mxu0 %v77
  %v257 = vpop.f32.mrb[0].mxu0
  %v258 = vadd.f32 0.0, %v257
  %v259 = vpop.f32.mrb[0].mxu0
  %260 = vmatprep.mubr.f32.mxu0 0.0
  %261 = vmatmul.mubr.f32.gmra.mrb[0].mxu0 %v80
  %v262 = vpop.f32.mrb[0].mxu0
  %v263 = vadd.f32 0.0, %v262
  %v264 = vpop.f32.mrb[0].mxu0
  %265 = vmatprep.mubr.f32.mxu0 0.0
  %266 = vmatmul.mubr.f32.gmra.mrb[0].mxu0 %v83
  %v267 = vpop.f32.mrb[0].mxu0
  %v268 = vadd.f32 0.0, %v267
  %v269 = vpop.f32.mrb[0].mxu0
  %270 = vmatprep.mubr.f32.mxu0 0.0
  %271 = vmatmul.mubr.f32.gmra.mrb[0].mxu0 %v86
  %v272 = vpop.f32.mrb[0].mxu0
  %v273 = vadd.f32 0.0, %v272
  %v274 = vpop.f32.mrb[0].mxu0
  %275 = vmatprep.mubr.f32.mxu0 0.0
  %276 = vmatmul.mubr.f32.gmra.mrb[0].mxu0 %v89
  %v277 = vpop.f32.mrb[0].mxu0
  %v278 = vadd.f32 0.0, %v277
  %v279 = vpop.f32.mrb[0].mxu0
  %280 = vmatprep.mubr.f32.mxu0 0.0
  %281 = vmatmul.mubr.f32.gmra.mrb[0].mxu0 %v92
  %v282 = vpop.f32.mrb[0].mxu0
  %v283 = vadd.f32 0.0, %v282
  %v284 = vpop.f32.mrb[0].mxu0
  %285 = vmatprep.mubr.f32.mxu0 0.0
  %286 = vmatmul.mubr.f32.gmra.mrb[0].mxu0 %v95
  %v287 = vpop.f32.mrb[0].mxu0
  %v288 = vadd.f32 0.0, %v287
  %v289 = vpop.f32.mrb[0].mxu0
  %290 = vmatprep.mubr.f32.mxu0 0.0
  %291 = vmatmul.mubr.f32.gmra.mrb[0].mxu0 %v98
  %v292 = vpop.f32.mrb[0].mxu0
  %v293 = vadd.f32 0.0, %v292
  %v294 = vpop.f32.mrb[0].mxu0
  %295 = vmatprep.mubr.f32.mxu0 0.0
  %296 = vmatmul.mubr.f32.gmra.mrb[0].mxu0 %v101
  %v297 = vpop.f32.mrb[0].mxu0
  %v298 = vadd.f32 0.0, %v297
  %v299 = vpop.f32.mrb[0].mxu0
  %300 = vmatprep.mubr.f32.mxu0 0.0
  %301 = vmatmul.mubr.f32.gmra.mrb[0].mxu0 %v104
  %v302 = vpop.f32.mrb[0].mxu0
  %v303 = vadd.f32 0.0, %v302
  %v304 = vpop.f32.mrb[0].mxu0
  %305 = vmatprep.mubr.f32.mxu0 0.0
  %306 = vmatmul.mubr.f32.gmra.mrb[0].mxu0 %v107
  %v307 = vpop.f32.mrb[0].mxu0
  %v308 = vadd.f32 0.0, %v307
  %v309 = vpop.f32.mrb[0].mxu0
  %310 = vmatprep.mubr.f32.mxu0 0.0
  %311 = vmatmul.mubr.f32.gmra.mrb[0].mxu0 %v110
  %v312 = vpop.f32.mrb[0].mxu0
  %v313 = vadd.f32 0.0, %v312
  %v314 = vpop.f32.mrb[0].mxu0
  %315 = vmatprep.mubr.f32.mxu0 0.0
  %316 = vmatmul.mubr.f32.gmra.mrb[0].mxu0 %v113
  %v317 = vpop.f32.mrb[0].mxu0
  %v318 = vadd.f32 0.0, %v317
  %v319 = vpop.f32.mrb[0].mxu0
  %320 = vmatprep.mubr.f32.mxu0 0.0
  %321 = vmatmul.mubr.f32.gmra.mrb[0].mxu0 %v116
  %v322 = vpop.f32.mrb[0].mxu0
  %v323 = vadd.f32 0.0, %v322
  %v324 = vpop.f32.mrb[0].mxu0
  %325 = vmatprep.mubr.f32.mxu0 0.0
  %326 = vmatmul.mubr.f32.gmra.mrb[0].mxu0 %v119
  %v327 = vpop.f32.mrb[0].mxu0
  %v328 = vadd.f32 0.0, %v327
  %v329 = vpop.f32.mrb[0].mxu0
  %330 = vmatprep.mubr.f32.mxu0 0.0
  %331 = vmatmul.mubr.f32.gmra.mrb[0].mxu0 %v122
  %v332 = vpop.f32.mrb[0].mxu0
  %v333 = vadd.f32 0.0, %v332
  %v334 = vpop.f32.mrb[0].mxu0
  %335 = vmatprep.mubr.f32.mxu0 0.0
  %336 = vmatmul.mubr.f32.gmra.mrb[0].mxu0 %v125
  %v337 = vpop.f32.mrb[0].mxu0
  %v338 = vadd.f32 0.0, %v337
  %v339 = vpop.f32.mrb[0].mxu0
  %340 = vmatprep.mubr.f32.mxu0 0.0
  %341 = vmatmul.mubr.f32.gmra.mrb[0].mxu0 %v128
  %v342 = vpop.f32.mrb[0].mxu0
  %v343 = vadd.f32 0.0, %v342
  %v344 = vpop.f32.mrb[0].mxu0
  %345 = vmatprep.mubr.f32.mxu0 0.0
  %346 = vmatmul.mubr.f32.gmra.mrb[0].mxu0 %v131
  %v347 = vpop.f32.mrb[0].mxu0
  %v348 = vadd.f32 0.0, %v347
  %v349 = vpop.f32.mrb[0].mxu0
  %350 = vmatprep.mubr.f32.mxu0 0.0
  %351 = vmatmul.mubr.f32.gmra.mrb[0].mxu0 %v134
  %v352 = vpop.f32.mrb[0].mxu0
  %v353 = vadd.f32 0.0, %v352
  %v354 = vpop.f32.mrb[0].mxu0
  %355 = vmatprep.mubr.f32.mxu0 0.0
  %356 = vmatmul.mubr.f32.gmra.mrb[0].mxu0 %v137
  %v357 = vpop.f32.mrb[0].mxu0
  %v358 = vadd.f32 0.0, %v357
  %v359 = vpop.f32.mrb[0].mxu0
  %360 = vmatprep.mubr.f32.mxu0 0.0
  %361 = vmatmul.mubr.f32.gmra.mrb[0].mxu0 %v140
  %v362 = vpop.f32.mrb[0].mxu0
  %v363 = vadd.f32 0.0, %v362
  %v364 = vpop.f32.mrb[0].mxu0
  %365 = vmatprep.mubr.f32.mxu0 0.0
  %366 = vmatmul.mubr.f32.gmra.mrb[0].mxu0 %v143
  %v367 = vpop.f32.mrb[0].mxu0
  %v368 = vadd.f32 0.0, %v367
  %v369 = vpop.f32.mrb[0].mxu0
  %370 = vmatprep.mubr.f32.mxu0 0.0
  %371 = vmatmul.mubr.f32.gmra.mrb[0].mxu0 %v146
  %v372 = vpop.f32.mrb[0].mxu0
  %v373 = vadd.f32 0.0, %v372
  %v374 = vpop.f32.mrb[0].mxu0
  %375 = vmatprep.mubr.f32.mxu0 0.0
  %376 = vmatmul.mubr.f32.gmra.mrb[0].mxu0 %v149
  %v377 = vpop.f32.mrb[0].mxu0
  %v378 = vadd.f32 0.0, %v377
  %v379 = vpop.f32.mrb[0].mxu0
  %380 = vmatprep.mubr.f32.mxu0 0.0
  %381 = vmatmul.mubr.f32.gmra.mrb[0].mxu0 %v152
  %v382 = vpop.f32.mrb[0].mxu0
  %v383 = vadd.f32 0.0, %v382
  %v384 = vpop.f32.mrb[0].mxu0
  %385 = vmatprep.mubr.f32.mxu0 0.0
  %386 = vmatmul.mubr.f32.gmra.mrb[0].mxu0 %v155
  %v387 = vpop.f32.mrb[0].mxu0
  %v388 = vadd.f32 0.0, %v387
  %v389 = vpop.f32.mrb[0].mxu0
  %390 = vmatprep.mubr.f32.mxu0 0.0
  %391 = vmatmul.mubr.f32.gmra.mrb[0].mxu0 %v158
  %v392 = vpop.f32.mrb[0].mxu0
  %v393 = vadd.f32 0.0, %v392
  %v394 = vpop.f32.mrb[0].mxu0
  %395 = vmatprep.mubr.f32.mxu0 0.0
  %396 = vmatmul.mubr.f32.gmra.mrb[0].mxu0 %v161
  %v397 = vpop.f32.mrb[0].mxu0
  %v398 = vadd.f32 0.0, %v397
  %v399 = vpop.f32.mrb[0].mxu0
  %400 = vmatprep.mubr.f32.mxu0 0.0
  %401 = vmatmul.mubr.f32.gmra.mrb[0].mxu0 %v164
  %v402 = vpop.f32.mrb[0].mxu0
  %v403 = vadd.f32 0.0, %v402
  %v404 = vpop.f32.mrb[0].mxu0
  %405 = vdwg.mxu0
  %v406 = vtanh.pop %v233
  %v407 = vtanh.pop %v238
  %v408 = vtanh.pop %v243
  %v409 = vtanh.pop %v248
  %v410 = vtanh.pop %v253
  %v411 = vtanh.pop %v258
  %v412 = vtanh.pop %v263
  %v413 = vtanh.pop %v268
  %v414 = vtanh.pop %v273
  %v415 = vtanh.pop %v278
  %v416 = vtanh.pop %v283
  %v417 = vtanh.pop %v288
  %v418 = vtanh.pop %v293
  %v419 = vtanh.pop %v298
  %v420 = vtanh.pop %v303
  %v421 = vtanh.pop %v308
  %v422 = vtanh.pop %v313
  %v423 = vtanh.pop %v318
  %v424 = vtanh.pop %v323
  %v425 = vtanh.pop %v328
  %v426 = vtanh.pop %v333
  %v427 = vtanh.pop %v338
  %v428 = vtanh.pop %v343
  %v429 = vtanh.pop %v348
  %v430 = vtanh.pop %v353
  %v431 = vtanh.pop %v358
  %v432 = vtanh.pop %v363
  %v433 = vtanh.pop %v368
  %v434 = vtanh.pop %v373
  %v435 = vtanh.pop %v378
  %v436 = vtanh.pop %v383
  %v437 = vtanh.pop %v388
  %v438 = vtanh.pop %v393
  %v439 = vtanh.pop %v398
  %v440 = vtanh.pop %v403
  %v441 = vld [vmem:[%s2] sm:$0xff]
  %v442 = vld [vmem:[%s2 + $0x8] sm:$0xff]
  %v443 = vld [vmem:[%s2 + $0x10] sm:$0xff]
  %v444 = vld [vmem:[%s2 + $0x18] sm:$0xff]
  %v445 = vld [vmem:[%s2 + $0x20] sm:$0xff]
  %v446 = vld [vmem:[%s2 + $0x28] sm:$0xff]
  %v447 = vld [vmem:[%s2 + $0x30] sm:$0xff]
  %v448 = vld [vmem:[%s2 + $0x38] sm:$0xff]
  %v449 = vld [vmem:[%s2 + $0x40] sm:$0xff]
  %v450 = vld [vmem:[%s2 + $0x48] sm:$0xff]
  %v451 = vld [vmem:[%s2 + $0x50] sm:$0xff]
  %v452 = vld [vmem:[%s2 + $0x58] sm:$0xff]
  %v453 = vld [vmem:[%s2 + $0x60] sm:$0xff]
  %v454 = vld [vmem:[%s2 + $0x68] sm:$0xff]
  %v455 = vld [vmem:[%s2 + $0x70] sm:$0xff]
  %v456 = vld [vmem:[%s2 + $0x78] sm:$0xff]
  %v457 = vld [vmem:[%s2 + $0x80] sm:$0xff]
  %v458 = vld [vmem:[%s2 + $0x88] sm:$0xff]
  %v459 = vld [vmem:[%s2 + $0x90] sm:$0xff]
  %v460 = vld [vmem:[%s2 + $0x98] sm:$0xff]
  %v461 = vld [vmem:[%s2 + $0xa0] sm:$0xff]
  %v462 = vld [vmem:[%s2 + $0xa8] sm:$0xff]
  %v463 = vld [vmem:[%s2 + $0xb0] sm:$0xff]
  %v464 = vld [vmem:[%s2 + $0xb8] sm:$0xff]
  %v465 = vld [vmem:[%s2 + $0xc0] sm:$0xff]
  %v466 = vld [vmem:[%s2 + $0xc8] sm:$0xff]
  %v467 = vld [vmem:[%s2 + $0xd0] sm:$0xff]
  %v468 = vld [vmem:[%s2 + $0xd8] sm:$0xff]
  %v469 = vld [vmem:[%s2 + $0xe0] sm:$0xff]
  %v470 = vld [vmem:[%s2 + $0xe8] sm:$0xff]
  %v471 = vld [vmem:[%s2 + $0xf0] sm:$0xff]
  %v472 = vld [vmem:[%s2 + $0xf8] sm:$0xff]
  %v473 = vld [vmem:[%s2 + $0x100] sm:$0xff]
  %v474 = vld [vmem:[%s2 + $0x108] sm:$0xff]
  %v475 = vld [vmem:[%s2 + $0x110] sm:$0xff]
  %v476 = vld [vmem:[%s2 + $0x118] sm:$0xff]
  %v477 = vld [vmem:[%s2 + $0x120] sm:$0xff]
  %v478 = vld [vmem:[%s2 + $0x128] sm:$0xff]
  %v479 = vld [vmem:[%s2 + $0x130] sm:$0xff]
  %v480 = vld [vmem:[%s2 + $0x138] sm:$0xff]
  %v481 = vld [vmem:[%s2 + $0x140] sm:$0xff]
  %v482 = vld [vmem:[%s2 + $0x148] sm:$0xff]
  %v483 = vld [vmem:[%s2 + $0x150] sm:$0xff]
  %v484 = vld [vmem:[%s2 + $0x158] sm:$0xff]
  %v485 = vld [vmem:[%s2 + $0x160] sm:$0xff]
  %v486 = vld [vmem:[%s2 + $0x168] sm:$0xff]
  %v487 = vld [vmem:[%s2 + $0x170] sm:$0xff]
  %v488 = vld [vmem:[%s2 + $0x178] sm:$0xff]
  %v489 = vld [vmem:[%s2 + $0x180] sm:$0xff]
  %v490 = vld [vmem:[%s2 + $0x188] sm:$0xff]
  %v491 = vld [vmem:[%s2 + $0x190] sm:$0xff]
  %v492 = vld [vmem:[%s2 + $0x198] sm:$0xff]
  %v493 = vld [vmem:[%s2 + $0x1a0] sm:$0xff]
  %v494 = vld [vmem:[%s2 + $0x1a8] sm:$0xff]
  %v495 = vld [vmem:[%s2 + $0x1b0] sm:$0xff]
  %v496 = vld [vmem:[%s2 + $0x1b8] sm:$0xff]
  %v497 = vld [vmem:[%s2 + $0x1c0] sm:$0xff]
  %v498 = vld [vmem:[%s2 + $0x1c8] sm:$0xff]
  %v499 = vld [vmem:[%s2 + $0x1d0] sm:$0xff]
  %v500 = vld [vmem:[%s2 + $0x1d8] sm:$0xff]
  %v501 = vld [vmem:[%s2 + $0x1e0] sm:$0xff]
  %v502 = vld [vmem:[%s2 + $0x1e8] sm:$0xff]
  %v503 = vld [vmem:[%s2 + $0x1f0] sm:$0xff]
  %v504 = vld [vmem:[%s2 + $0x1f8] sm:$0xff]
  %v505 = vld [vmem:[%s2 + $0x200] sm:$0xff]
  %v506 = vld [vmem:[%s2 + $0x208] sm:$0xff]
  %v507 = vld [vmem:[%s2 + $0x210] sm:$0xff]
  %v508 = vld [vmem:[%s2 + $0x218] sm:$0xff]
  %v509 = vld [vmem:[%s2 + $0x220] sm:$0xff]
  %v510 = vld [vmem:[%s2 + $0x228] sm:$0xff]
  %vm511 = vcmask 130048
  %v513 = vsel %vm511, %v406, 0
  %515 = vmatprep.subr.mxu0 0.0
  %516 = vmatpush1.msra.mxu0 %v441
  %517 = vmatprep.subr.mxu0 0.0
  %518 = vmatpush1.msra.mxu0 %v442
  %519 = vmatprep.subr.mxu0 0.0
  %520 = vmatpush1.msra.mxu0 0.0
  %521 = vmatprep.subr.mxu0 0.0
  %522 = vmatpush1.msra.mxu0 0.0
  %523 = vmatprep.subr.mxu0 0.0
  %524 = vmatpush1.msra.mxu0 0.0
  %525 = vmatprep.subr.mxu0 0.0
  %526 = vmatpush1.msra.mxu0 0.0
  %527 = vmatprep.subr.mxu0 0.0
  %528 = vmatpush1.msra.mxu0 0.0
  %529 = vmatprep.subr.mxu0 0.0
  %530 = vmatpush1.msra.mxu0 0.0
  %531 = vmatprep.subr.mxu0 0.0
  %532 = vmatpush1.msra.mxu0 0.0
  %533 = vmatprep.subr.mxu0 0.0
  %534 = vmatpush1.msra.mxu0 0.0
  %535 = vmatprep.subr.mxu0 0.0
  %536 = vmatpush1.msra.mxu0 0.0
  %537 = vmatprep.subr.mxu0 0.0
  %538 = vmatpush1.msra.mxu0 0.0
  %539 = vmatprep.subr.mxu0 0.0
  %540 = vmatpush1.msra.mxu0 0.0
  %541 = vmatprep.subr.mxu0 0.0
  %542 = vmatpush1.msra.mxu0 0.0
  %543 = vmatprep.subr.mxu0 0.0
  %544 = vmatpush1.msra.mxu0 0.0
  %545 = vmatprep.subr.mxu0 0.0
  %546 = vmatpush1.msra.mxu0 0.0
  %547 = vmatprep.subr.mxu0 0.0
  %548 = vmatpush1.msra.mxu0 0.0
  %549 = vmatprep.subr.mxu0 0.0
  %550 = vmatpush1.msra.mxu0 0.0
  %551 = vmatprep.subr.mxu0 0.0
  %552 = vmatpush1.msra.mxu0 0.0
  %553 = vmatprep.subr.mxu0 0.0
  %554 = vmatpush1.msra.mxu0 0.0
  %555 = vmatprep.subr.mxu0 0.0
  %556 = vmatpush1.msra.mxu0 0.0
  %557 = vmatprep.subr.mxu0 0.0
  %558 = vmatpush1.msra.mxu0 0.0
  %559 = vmatprep.subr.mxu0 0.0
  %560 = vmatpush1.msra.mxu0 0.0
  %561 = vmatprep.subr.mxu0 0.0
  %562 = vmatpush1.msra.mxu0 0.0
  %563 = vmatprep.subr.mxu0 0.0
  %564 = vmatpush1.msra.mxu0 0.0
  %565 = vmatprep.subr.mxu0 0.0
  %566 = vmatpush1.msra.mxu0 0.0
  %567 = vmatprep.subr.mxu0 0.0
  %568 = vmatpush1.msra.mxu0 0.0
  %569 = vmatprep.subr.mxu0 0.0
  %570 = vmatpush1.msra.mxu0 0.0
  %571 = vmatprep.subr.mxu0 0.0
  %572 = vmatpush1.msra.mxu0 0.0
  %573 = vmatprep.subr.mxu0 0.0
  %574 = vmatpush1.msra.mxu0 0.0
  %575 = vmatprep.subr.mxu0 0.0
  %576 = vmatpush1.msra.mxu0 0.0
  %577 = vmatprep.subr.mxu0 0.0
  %578 = vmatpush1.msra.mxu0 0.0
  %579 = vmatprep.mubr.f32.mxu0 0.0
  %580 = vmatmul.mubr.f32.gmra.mrb[0].mxu0 %v513
  %v581 = vpop.f32.mrb[0].mxu0
  %v582 = vadd.f32 0.0, %v581
  %v583 = vpop.f32.mrb[0].mxu0
  %584 = vdwg.mxu0
  %v586 = vsel %vm511, %v407, 0
  %588 = vmatprep.subr.mxu0 0.0
  %589 = vmatpush1.msra.mxu0 %v443
  %590 = vmatprep.subr.mxu0 0.0
  %591 = vmatpush1.msra.mxu0 %v444
  %592 = vmatprep.subr.mxu0 0.0
  %593 = vmatpush1.msra.mxu0 0.0
  %594 = vmatprep.subr.mxu0 0.0
  %595 = vmatpush1.msra.mxu0 0.0
  %596 = vmatprep.subr.mxu0 0.0
  %597 = vmatpush1.msra.mxu0 0.0
  %598 = vmatprep.subr.mxu0 0.0
  %599 = vmatpush1.msra.mxu0 0.0
  %600 = vmatprep.subr.mxu0 0.0
  %601 = vmatpush1.msra.mxu0 0.0
  %602 = vmatprep.subr.mxu0 0.0
  %603 = vmatpush1.msra.mxu0 0.0
  %604 = vmatprep.subr.mxu0 0.0
  %605 = vmatpush1.msra.mxu0 0.0
  %606 = vmatprep.subr.mxu0 0.0
  %607 = vmatpush1.msra.mxu0 0.0
  %608 = vmatprep.subr.mxu0 0.0
  %609 = vmatpush1.msra.mxu0 0.0
  %610 = vmatprep.subr.mxu0 0.0
  %611 = vmatpush1.msra.mxu0 0.0
  %612 = vmatprep.subr.mxu0 0.0
  %613 = vmatpush1.msra.mxu0 0.0
  %614 = vmatprep.subr.mxu0 0.0
  %615 = vmatpush1.msra.mxu0 0.0
  %616 = vmatprep.subr.mxu0 0.0
  %617 = vmatpush1.msra.mxu0 0.0
  %618 = vmatprep.subr.mxu0 0.0
  %619 = vmatpush1.msra.mxu0 0.0
  %620 = vmatprep.subr.mxu0 0.0
  %621 = vmatpush1.msra.mxu0 0.0
  %622 = vmatprep.subr.mxu0 0.0
  %623 = vmatpush1.msra.mxu0 0.0
  %624 = vmatprep.subr.mxu0 0.0
  %625 = vmatpush1.msra.mxu0 0.0
  %626 = vmatprep.subr.mxu0 0.0
  %627 = vmatpush1.msra.mxu0 0.0
  %628 = vmatprep.subr.mxu0 0.0
  %629 = vmatpush1.msra.mxu0 0.0
  %630 = vmatprep.subr.mxu0 0.0
  %631 = vmatpush1.msra.mxu0 0.0
  %632 = vmatprep.subr.mxu0 0.0
  %633 = vmatpush1.msra.mxu0 0.0
  %634 = vmatprep.subr.mxu0 0.0
  %635 = vmatpush1.msra.mxu0 0.0
  %636 = vmatprep.subr.mxu0 0.0
  %637 = vmatpush1.msra.mxu0 0.0
  %638 = vmatprep.subr.mxu0 0.0
  %639 = vmatpush1.msra.mxu0 0.0
  %640 = vmatprep.subr.mxu0 0.0
  %641 = vmatpush1.msra.mxu0 0.0
  %642 = vmatprep.subr.mxu0 0.0
  %643 = vmatpush1.msra.mxu0 0.0
  %644 = vmatprep.subr.mxu0 0.0
  %645 = vmatpush1.msra.mxu0 0.0
  %646 = vmatprep.subr.mxu0 0.0
  %647 = vmatpush1.msra.mxu0 0.0
  %648 = vmatprep.subr.mxu0 0.0
  %649 = vmatpush1.msra.mxu0 0.0
  %650 = vmatprep.subr.mxu0 0.0
  %651 = vmatpush1.msra.mxu0 0.0
  %652 = vmatprep.mubr.f32.mxu0 0.0
  %653 = vmatmul.mubr.f32.gmra.mrb[0].mxu0 %v586
  %v654 = vpop.f32.mrb[0].mxu0
  %v655 = vadd.f32 0.0, %v654
  %v656 = vpop.f32.mrb[0].mxu0
  %657 = vdwg.mxu0
  %v659 = vsel %vm511, %v408, 0
  %661 = vmatprep.subr.mxu0 0.0
  %662 = vmatpush1.msra.mxu0 %v445
  %663 = vmatprep.subr.mxu0 0.0
  %664 = vmatpush1.msra.mxu0 %v446
  %665 = vmatprep.subr.mxu0 0.0
  %666 = vmatpush1.msra.mxu0 0.0
  %667 = vmatprep.subr.mxu0 0.0
  %668 = vmatpush1.msra.mxu0 0.0
  %669 = vmatprep.subr.mxu0 0.0
  %670 = vmatpush1.msra.mxu0 0.0
  %671 = vmatprep.subr.mxu0 0.0
  %672 = vmatpush1.msra.mxu0 0.0
  %673 = vmatprep.subr.mxu0 0.0
  %674 = vmatpush1.msra.mxu0 0.0
  %675 = vmatprep.subr.mxu0 0.0
  %676 = vmatpush1.msra.mxu0 0.0
  %677 = vmatprep.subr.mxu0 0.0
  %678 = vmatpush1.msra.mxu0 0.0
  %679 = vmatprep.subr.mxu0 0.0
  %680 = vmatpush1.msra.mxu0 0.0
  %681 = vmatprep.subr.mxu0 0.0
  %682 = vmatpush1.msra.mxu0 0.0
  %683 = vmatprep.subr.mxu0 0.0
  %684 = vmatpush1.msra.mxu0 0.0
  %685 = vmatprep.subr.mxu0 0.0
  %686 = vmatpush1.msra.mxu0 0.0
  %687 = vmatprep.subr.mxu0 0.0
  %688 = vmatpush1.msra.mxu0 0.0
  %689 = vmatprep.subr.mxu0 0.0
  %690 = vmatpush1.msra.mxu0 0.0
  %691 = vmatprep.subr.mxu0 0.0
  %692 = vmatpush1.msra.mxu0 0.0
  %693 = vmatprep.subr.mxu0 0.0
  %694 = vmatpush1.msra.mxu0 0.0
  %695 = vmatprep.subr.mxu0 0.0
  %696 = vmatpush1.msra.mxu0 0.0
  %697 = vmatprep.subr.mxu0 0.0
  %698 = vmatpush1.msra.mxu0 0.0
  %699 = vmatprep.subr.mxu0 0.0
  %700 = vmatpush1.msra.mxu0 0.0
  %701 = vmatprep.subr.mxu0 0.0
  %702 = vmatpush1.msra.mxu0 0.0
  %703 = vmatprep.subr.mxu0 0.0
  %704 = vmatpush1.msra.mxu0 0.0
  %705 = vmatprep.subr.mxu0 0.0
  %706 = vmatpush1.msra.mxu0 0.0
  %707 = vmatprep.subr.mxu0 0.0
  %708 = vmatpush1.msra.mxu0 0.0
  %709 = vmatprep.subr.mxu0 0.0
  %710 = vmatpush1.msra.mxu0 0.0
  %711 = vmatprep.subr.mxu0 0.0
  %712 = vmatpush1.msra.mxu0 0.0
  %713 = vmatprep.subr.mxu0 0.0
  %714 = vmatpush1.msra.mxu0 0.0
  %715 = vmatprep.subr.mxu0 0.0
  %716 = vmatpush1.msra.mxu0 0.0
  %717 = vmatprep.subr.mxu0 0.0
  %718 = vmatpush1.msra.mxu0 0.0
  %719 = vmatprep.subr.mxu0 0.0
  %720 = vmatpush1.msra.mxu0 0.0
  %721 = vmatprep.subr.mxu0 0.0
  %722 = vmatpush1.msra.mxu0 0.0
  %723 = vmatprep.subr.mxu0 0.0
  %724 = vmatpush1.msra.mxu0 0.0
  %725 = vmatprep.mubr.f32.mxu0 0.0
  %726 = vmatmul.mubr.f32.gmra.mrb[0].mxu0 %v659
  %v727 = vpop.f32.mrb[0].mxu0
  %v728 = vadd.f32 0.0, %v727
  %v729 = vpop.f32.mrb[0].mxu0
  %730 = vdwg.mxu0
  %v732 = vsel %vm511, %v409, 0
  %734 = vmatprep.subr.mxu0 0.0
  %735 = vmatpush1.msra.mxu0 %v447
  %736 = vmatprep.subr.mxu0 0.0
  %737 = vmatpush1.msra.mxu0 %v448
  %738 = vmatprep.subr.mxu0 0.0
  %739 = vmatpush1.msra.mxu0 0.0
  %740 = vmatprep.subr.mxu0 0.0
  %741 = vmatpush1.msra.mxu0 0.0
  %742 = vmatprep.subr.mxu0 0.0
  %743 = vmatpush1.msra.mxu0 0.0
  %744 = vmatprep.subr.mxu0 0.0
  %745 = vmatpush1.msra.mxu0 0.0
  %746 = vmatprep.subr.mxu0 0.0
  %747 = vmatpush1.msra.mxu0 0.0
  %748 = vmatprep.subr.mxu0 0.0
  %749 = vmatpush1.msra.mxu0 0.0
  %750 = vmatprep.subr.mxu0 0.0
  %751 = vmatpush1.msra.mxu0 0.0
  %752 = vmatprep.subr.mxu0 0.0
  %753 = vmatpush1.msra.mxu0 0.0
  %754 = vmatprep.subr.mxu0 0.0
  %755 = vmatpush1.msra.mxu0 0.0
  %756 = vmatprep.subr.mxu0 0.0
  %757 = vmatpush1.msra.mxu0 0.0
  %758 = vmatprep.subr.mxu0 0.0
  %759 = vmatpush1.msra.mxu0 0.0
  %760 = vmatprep.subr.mxu0 0.0
  %761 = vmatpush1.msra.mxu0 0.0
  %762 = vmatprep.subr.mxu0 0.0
  %763 = vmatpush1.msra.mxu0 0.0
  %764 = vmatprep.subr.mxu0 0.0
  %765 = vmatpush1.msra.mxu0 0.0
  %766 = vmatprep.subr.mxu0 0.0
  %767 = vmatpush1.msra.mxu0 0.0
  %768 = vmatprep.subr.mxu0 0.0
  %769 = vmatpush1.msra.mxu0 0.0
  %770 = vmatprep.subr.mxu0 0.0
  %771 = vmatpush1.msra.mxu0 0.0
  %772 = vmatprep.subr.mxu0 0.0
  %773 = vmatpush1.msra.mxu0 0.0
  %774 = vmatprep.subr.mxu0 0.0
  %775 = vmatpush1.msra.mxu0 0.0
  %776 = vmatprep.subr.mxu0 0.0
  %777 = vmatpush1.msra.mxu0 0.0
  %778 = vmatprep.subr.mxu0 0.0
  %779 = vmatpush1.msra.mxu0 0.0
  %780 = vmatprep.subr.mxu0 0.0
  %781 = vmatpush1.msra.mxu0 0.0
  %782 = vmatprep.subr.mxu0 0.0
  %783 = vmatpush1.msra.mxu0 0.0
  %784 = vmatprep.subr.mxu0 0.0
  %785 = vmatpush1.msra.mxu0 0.0
  %786 = vmatprep.subr.mxu0 0.0
  %787 = vmatpush1.msra.mxu0 0.0
  %788 = vmatprep.subr.mxu0 0.0
  %789 = vmatpush1.msra.mxu0 0.0
  %790 = vmatprep.subr.mxu0 0.0
  %791 = vmatpush1.msra.mxu0 0.0
  %792 = vmatprep.subr.mxu0 0.0
  %793 = vmatpush1.msra.mxu0 0.0
  %794 = vmatprep.subr.mxu0 0.0
  %795 = vmatpush1.msra.mxu0 0.0
  %796 = vmatprep.subr.mxu0 0.0
  %797 = vmatpush1.msra.mxu0 0.0
  %798 = vmatprep.mubr.f32.mxu0 0.0
  %799 = vmatmul.mubr.f32.gmra.mrb[0].mxu0 %v732
  %v800 = vpop.f32.mrb[0].mxu0
  %v801 = vadd.f32 0.0, %v800
  %v802 = vpop.f32.mrb[0].mxu0
  %803 = vdwg.mxu0
  %v805 = vsel %vm511, %v410, 0
  %807 = vmatprep.subr.mxu0 0.0
  %808 = vmatpush1.msra.mxu0 %v449
  %809 = vmatprep.subr.mxu0 0.0
  %810 = vmatpush1.msra.mxu0 %v450
  %811 = vmatprep.subr.mxu0 0.0
  %812 = vmatpush1.msra.mxu0 0.0
  %813 = vmatprep.subr.mxu0 0.0
  %814 = vmatpush1.msra.mxu0 0.0
  %815 = vmatprep.subr.mxu0 0.0
  %816 = vmatpush1.msra.mxu0 0.0
  %817 = vmatprep.subr.mxu0 0.0
  %818 = vmatpush1.msra.mxu0 0.0
  %819 = vmatprep.subr.mxu0 0.0
  %820 = vmatpush1.msra.mxu0 0.0
  %821 = vmatprep.subr.mxu0 0.0
  %822 = vmatpush1.msra.mxu0 0.0
  %823 = vmatprep.subr.mxu0 0.0
  %824 = vmatpush1.msra.mxu0 0.0
  %825 = vmatprep.subr.mxu0 0.0
  %826 = vmatpush1.msra.mxu0 0.0
  %827 = vmatprep.subr.mxu0 0.0
  %828 = vmatpush1.msra.mxu0 0.0
  %829 = vmatprep.subr.mxu0 0.0
  %830 = vmatpush1.msra.mxu0 0.0
  %831 = vmatprep.subr.mxu0 0.0
  %832 = vmatpush1.msra.mxu0 0.0
  %833 = vmatprep.subr.mxu0 0.0
  %834 = vmatpush1.msra.mxu0 0.0
  %835 = vmatprep.subr.mxu0 0.0
  %836 = vmatpush1.msra.mxu0 0.0
  %837 = vmatprep.subr.mxu0 0.0
  %838 = vmatpush1.msra.mxu0 0.0
  %839 = vmatprep.subr.mxu0 0.0
  %840 = vmatpush1.msra.mxu0 0.0
  %841 = vmatprep.subr.mxu0 0.0
  %842 = vmatpush1.msra.mxu0 0.0
  %843 = vmatprep.subr.mxu0 0.0
  %844 = vmatpush1.msra.mxu0 0.0
  %845 = vmatprep.subr.mxu0 0.0
  %846 = vmatpush1.msra.mxu0 0.0
  %847 = vmatprep.subr.mxu0 0.0
  %848 = vmatpush1.msra.mxu0 0.0
  %849 = vmatprep.subr.mxu0 0.0
  %850 = vmatpush1.msra.mxu0 0.0
  %851 = vmatprep.subr.mxu0 0.0
  %852 = vmatpush1.msra.mxu0 0.0
  %853 = vmatprep.subr.mxu0 0.0
  %854 = vmatpush1.msra.mxu0 0.0
  %855 = vmatprep.subr.mxu0 0.0
  %856 = vmatpush1.msra.mxu0 0.0
  %857 = vmatprep.subr.mxu0 0.0
  %858 = vmatpush1.msra.mxu0 0.0
  %859 = vmatprep.subr.mxu0 0.0
  %860 = vmatpush1.msra.mxu0 0.0
  %861 = vmatprep.subr.mxu0 0.0
  %862 = vmatpush1.msra.mxu0 0.0
  %863 = vmatprep.subr.mxu0 0.0
  %864 = vmatpush1.msra.mxu0 0.0
  %865 = vmatprep.subr.mxu0 0.0
  %866 = vmatpush1.msra.mxu0 0.0
  %867 = vmatprep.subr.mxu0 0.0
  %868 = vmatpush1.msra.mxu0 0.0
  %869 = vmatprep.subr.mxu0 0.0
  %870 = vmatpush1.msra.mxu0 0.0
  %871 = vmatprep.mubr.f32.mxu0 0.0
  %872 = vmatmul.mubr.f32.gmra.mrb[0].mxu0 %v805
  %v873 = vpop.f32.mrb[0].mxu0
  %v874 = vadd.f32 0.0, %v873
  %v875 = vpop.f32.mrb[0].mxu0
  %876 = vdwg.mxu0
  %v878 = vsel %vm511, %v411, 0
  %880 = vmatprep.subr.mxu0 0.0
  %881 = vmatpush1.msra.mxu0 %v451
  %882 = vmatprep.subr.mxu0 0.0
  %883 = vmatpush1.msra.mxu0 %v452
  %884 = vmatprep.subr.mxu0 0.0
  %885 = vmatpush1.msra.mxu0 0.0
  %886 = vmatprep.subr.mxu0 0.0
  %887 = vmatpush1.msra.mxu0 0.0
  %888 = vmatprep.subr.mxu0 0.0
  %889 = vmatpush1.msra.mxu0 0.0
  %890 = vmatprep.subr.mxu0 0.0
  %891 = vmatpush1.msra.mxu0 0.0
  %892 = vmatprep.subr.mxu0 0.0
  %893 = vmatpush1.msra.mxu0 0.0
  %894 = vmatprep.subr.mxu0 0.0
  %895 = vmatpush1.msra.mxu0 0.0
  %896 = vmatprep.subr.mxu0 0.0
  %897 = vmatpush1.msra.mxu0 0.0
  %898 = vmatprep.subr.mxu0 0.0
  %899 = vmatpush1.msra.mxu0 0.0
  %900 = vmatprep.subr.mxu0 0.0
  %901 = vmatpush1.msra.mxu0 0.0
  %902 = vmatprep.subr.mxu0 0.0
  %903 = vmatpush1.msra.mxu0 0.0
  %904 = vmatprep.subr.mxu0 0.0
  %905 = vmatpush1.msra.mxu0 0.0
  %906 = vmatprep.subr.mxu0 0.0
  %907 = vmatpush1.msra.mxu0 0.0
  %908 = vmatprep.subr.mxu0 0.0
  %909 = vmatpush1.msra.mxu0 0.0
  %910 = vmatprep.subr.mxu0 0.0
  %911 = vmatpush1.msra.mxu0 0.0
  %912 = vmatprep.subr.mxu0 0.0
  %913 = vmatpush1.msra.mxu0 0.0
  %914 = vmatprep.subr.mxu0 0.0
  %915 = vmatpush1.msra.mxu0 0.0
  %916 = vmatprep.subr.mxu0 0.0
  %917 = vmatpush1.msra.mxu0 0.0
  %918 = vmatprep.subr.mxu0 0.0
  %919 = vmatpush1.msra.mxu0 0.0
  %920 = vmatprep.subr.mxu0 0.0
  %921 = vmatpush1.msra.mxu0 0.0
  %922 = vmatprep.subr.mxu0 0.0
  %923 = vmatpush1.msra.mxu0 0.0
  %924 = vmatprep.subr.mxu0 0.0
  %925 = vmatpush1.msra.mxu0 0.0
  %926 = vmatprep.subr.mxu0 0.0
  %927 = vmatpush1.msra.mxu0 0.0
  %928 = vmatprep.subr.mxu0 0.0
  %929 = vmatpush1.msra.mxu0 0.0
  %930 = vmatprep.subr.mxu0 0.0
  %931 = vmatpush1.msra.mxu0 0.0
  %932 = vmatprep.subr.mxu0 0.0
  %933 = vmatpush1.msra.mxu0 0.0
  %934 = vmatprep.subr.mxu0 0.0
  %935 = vmatpush1.msra.mxu0 0.0
  %936 = vmatprep.subr.mxu0 0.0
  %937 = vmatpush1.msra.mxu0 0.0
  %938 = vmatprep.subr.mxu0 0.0
  %939 = vmatpush1.msra.mxu0 0.0
  %940 = vmatprep.subr.mxu0 0.0
  %941 = vmatpush1.msra.mxu0 0.0
  %942 = vmatprep.subr.mxu0 0.0
  %943 = vmatpush1.msra.mxu0 0.0
  %944 = vmatprep.mubr.f32.mxu0 0.0
  %945 = vmatmul.mubr.f32.gmra.mrb[0].mxu0 %v878
  %v946 = vpop.f32.mrb[0].mxu0
  %v947 = vadd.f32 0.0, %v946
  %v948 = vpop.f32.mrb[0].mxu0
  %949 = vdwg.mxu0
  %v951 = vsel %vm511, %v412, 0
  %953 = vmatprep.subr.mxu0 0.0
  %954 = vmatpush1.msra.mxu0 %v453
  %955 = vmatprep.subr.mxu0 0.0
  %956 = vmatpush1.msra.mxu0 %v454
  %957 = vmatprep.subr.mxu0 0.0
  %958 = vmatpush1.msra.mxu0 0.0
  %959 = vmatprep.subr.mxu0 0.0
  %960 = vmatpush1.msra.mxu0 0.0
  %961 = vmatprep.subr.mxu0 0.0
  %962 = vmatpush1.msra.mxu0 0.0
  %963 = vmatprep.subr.mxu0 0.0
  %964 = vmatpush1.msra.mxu0 0.0
  %965 = vmatprep.subr.mxu0 0.0
  %966 = vmatpush1.msra.mxu0 0.0
  %967 = vmatprep.subr.mxu0 0.0
  %968 = vmatpush1.msra.mxu0 0.0
  %969 = vmatprep.subr.mxu0 0.0
  %970 = vmatpush1.msra.mxu0 0.0
  %971 = vmatprep.subr.mxu0 0.0
  %972 = vmatpush1.msra.mxu0 0.0
  %973 = vmatprep.subr.mxu0 0.0
  %974 = vmatpush1.msra.mxu0 0.0
  %975 = vmatprep.subr.mxu0 0.0
  %976 = vmatpush1.msra.mxu0 0.0
  %977 = vmatprep.subr.mxu0 0.0
  %978 = vmatpush1.msra.mxu0 0.0
  %979 = vmatprep.subr.mxu0 0.0
  %980 = vmatpush1.msra.mxu0 0.0
  %981 = vmatprep.subr.mxu0 0.0
  %982 = vmatpush1.msra.mxu0 0.0
  %983 = vmatprep.subr.mxu0 0.0
  %984 = vmatpush1.msra.mxu0 0.0
  %985 = vmatprep.subr.mxu0 0.0
  %986 = vmatpush1.msra.mxu0 0.0
  %987 = vmatprep.subr.mxu0 0.0
  %988 = vmatpush1.msra.mxu0 0.0
  %989 = vmatprep.subr.mxu0 0.0
  %990 = vmatpush1.msra.mxu0 0.0
  %991 = vmatprep.subr.mxu0 0.0
  %992 = vmatpush1.msra.mxu0 0.0
  %993 = vmatprep.subr.mxu0 0.0
  %994 = vmatpush1.msra.mxu0 0.0
  %995 = vmatprep.subr.mxu0 0.0
  %996 = vmatpush1.msra.mxu0 0.0
  %997 = vmatprep.subr.mxu0 0.0
  %998 = vmatpush1.msra.mxu0 0.0
  %999 = vmatprep.subr.mxu0 0.0
  %1000 = vmatpush1.msra.mxu0 0.0
  %1001 = vmatprep.subr.mxu0 0.0
  %1002 = vmatpush1.msra.mxu0 0.0
  %1003 = vmatprep.subr.mxu0 0.0
  %1004 = vmatpush1.msra.mxu0 0.0
  %1005 = vmatprep.subr.mxu0 0.0
  %1006 = vmatpush1.msra.mxu0 0.0
  %1007 = vmatprep.subr.mxu0 0.0
  %1008 = vmatpush1.msra.mxu0 0.0
  %1009 = vmatprep.subr.mxu0 0.0
  %1010 = vmatpush1.msra.mxu0 0.0
  %1011 = vmatprep.subr.mxu0 0.0
  %1012 = vmatpush1.msra.mxu0 0.0
  %1013 = vmatprep.subr.mxu0 0.0
  %1014 = vmatpush1.msra.mxu0 0.0
  %1015 = vmatprep.subr.mxu0 0.0
  %1016 = vmatpush1.msra.mxu0 0.0
  %1017 = vmatprep.mubr.f32.mxu0 0.0
  %1018 = vmatmul.mubr.f32.gmra.mrb[0].mxu0 %v951
  %v1019 = vpop.f32.mrb[0].mxu0
  %v1020 = vadd.f32 0.0, %v1019
  %v1021 = vpop.f32.mrb[0].mxu0
  %1022 = vdwg.mxu0
  %v1024 = vsel %vm511, %v413, 0
  %1026 = vmatprep.subr.mxu0 0.0
  %1027 = vmatpush1.msra.mxu0 %v455
  %1028 = vmatprep.subr.mxu0 0.0
  %1029 = vmatpush1.msra.mxu0 %v456
  %1030 = vmatprep.subr.mxu0 0.0
  %1031 = vmatpush1.msra.mxu0 0.0
  %1032 = vmatprep.subr.mxu0 0.0
  %1033 = vmatpush1.msra.mxu0 0.0
  %1034 = vmatprep.subr.mxu0 0.0
  %1035 = vmatpush1.msra.mxu0 0.0
  %1036 = vmatprep.subr.mxu0 0.0
  %1037 = vmatpush1.msra.mxu0 0.0
  %1038 = vmatprep.subr.mxu0 0.0
  %1039 = vmatpush1.msra.mxu0 0.0
  %1040 = vmatprep.subr.mxu0 0.0
  %1041 = vmatpush1.msra.mxu0 0.0
  %1042 = vmatprep.subr.mxu0 0.0
  %1043 = vmatpush1.msra.mxu0 0.0
  %1044 = vmatprep.subr.mxu0 0.0
  %1045 = vmatpush1.msra.mxu0 0.0
  %1046 = vmatprep.subr.mxu0 0.0
  %1047 = vmatpush1.msra.mxu0 0.0
  %1048 = vmatprep.subr.mxu0 0.0
  %1049 = vmatpush1.msra.mxu0 0.0
  %1050 = vmatprep.subr.mxu0 0.0
  %1051 = vmatpush1.msra.mxu0 0.0
  %1052 = vmatprep.subr.mxu0 0.0
  %1053 = vmatpush1.msra.mxu0 0.0
  %1054 = vmatprep.subr.mxu0 0.0
  %1055 = vmatpush1.msra.mxu0 0.0
  %1056 = vmatprep.subr.mxu0 0.0
  %1057 = vmatpush1.msra.mxu0 0.0
  %1058 = vmatprep.subr.mxu0 0.0
  %1059 = vmatpush1.msra.mxu0 0.0
  %1060 = vmatprep.subr.mxu0 0.0
  %1061 = vmatpush1.msra.mxu0 0.0
  %1062 = vmatprep.subr.mxu0 0.0
  %1063 = vmatpush1.msra.mxu0 0.0
  %1064 = vmatprep.subr.mxu0 0.0
  %1065 = vmatpush1.msra.mxu0 0.0
  %1066 = vmatprep.subr.mxu0 0.0
  %1067 = vmatpush1.msra.mxu0 0.0
  %1068 = vmatprep.subr.mxu0 0.0
  %1069 = vmatpush1.msra.mxu0 0.0
  %1070 = vmatprep.subr.mxu0 0.0
  %1071 = vmatpush1.msra.mxu0 0.0
  %1072 = vmatprep.subr.mxu0 0.0
  %1073 = vmatpush1.msra.mxu0 0.0
  %1074 = vmatprep.subr.mxu0 0.0
  %1075 = vmatpush1.msra.mxu0 0.0
  %1076 = vmatprep.subr.mxu0 0.0
  %1077 = vmatpush1.msra.mxu0 0.0
  %1078 = vmatprep.subr.mxu0 0.0
  %1079 = vmatpush1.msra.mxu0 0.0
  %1080 = vmatprep.subr.mxu0 0.0
  %1081 = vmatpush1.msra.mxu0 0.0
  %1082 = vmatprep.subr.mxu0 0.0
  %1083 = vmatpush1.msra.mxu0 0.0
  %1084 = vmatprep.subr.mxu0 0.0
  %1085 = vmatpush1.msra.mxu0 0.0
  %1086 = vmatprep.subr.mxu0 0.0
  %1087 = vmatpush1.msra.mxu0 0.0
  %1088 = vmatprep.subr.mxu0 0.0
  %1089 = vmatpush1.msra.mxu0 0.0
  %1090 = vmatprep.mubr.f32.mxu0 0.0
  %1091 = vmatmul.mubr.f32.gmra.mrb[0].mxu0 %v1024
  %v1092 = vpop.f32.mrb[0].mxu0
  %v1093 = vadd.f32 0.0, %v1092
  %v1094 = vpop.f32.mrb[0].mxu0
  %1095 = vdwg.mxu0
  %v1097 = vsel %vm511, %v414, 0
  %1099 = vmatprep.subr.mxu0 0.0
  %1100 = vmatpush1.msra.mxu0 %v457
  %1101 = vmatprep.subr.mxu0 0.0
  %1102 = vmatpush1.msra.mxu0 %v458
  %1103 = vmatprep.subr.mxu0 0.0
  %1104 = vmatpush1.msra.mxu0 0.0
  %1105 = vmatprep.subr.mxu0 0.0
  %1106 = vmatpush1.msra.mxu0 0.0
  %1107 = vmatprep.subr.mxu0 0.0
  %1108 = vmatpush1.msra.mxu0 0.0
  %1109 = vmatprep.subr.mxu0 0.0
  %1110 = vmatpush1.msra.mxu0 0.0
  %1111 = vmatprep.subr.mxu0 0.0
  %1112 = vmatpush1.msra.mxu0 0.0
  %1113 = vmatprep.subr.mxu0 0.0
  %1114 = vmatpush1.msra.mxu0 0.0
  %1115 = vmatprep.subr.mxu0 0.0
  %1116 = vmatpush1.msra.mxu0 0.0
  %1117 = vmatprep.subr.mxu0 0.0
  %1118 = vmatpush1.msra.mxu0 0.0
  %1119 = vmatprep.subr.mxu0 0.0
  %1120 = vmatpush1.msra.mxu0 0.0
  %1121 = vmatprep.subr.mxu0 0.0
  %1122 = vmatpush1.msra.mxu0 0.0
  %1123 = vmatprep.subr.mxu0 0.0
  %1124 = vmatpush1.msra.mxu0 0.0
  %1125 = vmatprep.subr.mxu0 0.0
  %1126 = vmatpush1.msra.mxu0 0.0
  %1127 = vmatprep.subr.mxu0 0.0
  %1128 = vmatpush1.msra.mxu0 0.0
  %1129 = vmatprep.subr.mxu0 0.0
  %1130 = vmatpush1.msra.mxu0 0.0
  %1131 = vmatprep.subr.mxu0 0.0
  %1132 = vmatpush1.msra.mxu0 0.0
  %1133 = vmatprep.subr.mxu0 0.0
  %1134 = vmatpush1.msra.mxu0 0.0
  %1135 = vmatprep.subr.mxu0 0.0
  %1136 = vmatpush1.msra.mxu0 0.0
  %1137 = vmatprep.subr.mxu0 0.0
  %1138 = vmatpush1.msra.mxu0 0.0
  %1139 = vmatprep.subr.mxu0 0.0
  %1140 = vmatpush1.msra.mxu0 0.0
  %1141 = vmatprep.subr.mxu0 0.0
  %1142 = vmatpush1.msra.mxu0 0.0
  %1143 = vmatprep.subr.mxu0 0.0
  %1144 = vmatpush1.msra.mxu0 0.0
  %1145 = vmatprep.subr.mxu0 0.0
  %1146 = vmatpush1.msra.mxu0 0.0
  %1147 = vmatprep.subr.mxu0 0.0
  %1148 = vmatpush1.msra.mxu0 0.0
  %1149 = vmatprep.subr.mxu0 0.0
  %1150 = vmatpush1.msra.mxu0 0.0
  %1151 = vmatprep.subr.mxu0 0.0
  %1152 = vmatpush1.msra.mxu0 0.0
  %1153 = vmatprep.subr.mxu0 0.0
  %1154 = vmatpush1.msra.mxu0 0.0
  %1155 = vmatprep.subr.mxu0 0.0
  %1156 = vmatpush1.msra.mxu0 0.0
  %1157 = vmatprep.subr.mxu0 0.0
  %1158 = vmatpush1.msra.mxu0 0.0
  %1159 = vmatprep.subr.mxu0 0.0
  %1160 = vmatpush1.msra.mxu0 0.0
  %1161 = vmatprep.subr.mxu0 0.0
  %1162 = vmatpush1.msra.mxu0 0.0
  %1163 = vmatprep.mubr.f32.mxu0 0.0
  %1164 = vmatmul.mubr.f32.gmra.mrb[0].mxu0 %v1097
  %v1165 = vpop.f32.mrb[0].mxu0
  %v1166 = vadd.f32 0.0, %v1165
  %v1167 = vpop.f32.mrb[0].mxu0
  %1168 = vdwg.mxu0
  %v1170 = vsel %vm511, %v415, 0
  %1172 = vmatprep.subr.mxu0 0.0
  %1173 = vmatpush1.msra.mxu0 %v459
  %1174 = vmatprep.subr.mxu0 0.0
  %1175 = vmatpush1.msra.mxu0 %v460
  %1176 = vmatprep.subr.mxu0 0.0
  %1177 = vmatpush1.msra.mxu0 0.0
  %1178 = vmatprep.subr.mxu0 0.0
  %1179 = vmatpush1.msra.mxu0 0.0
  %1180 = vmatprep.subr.mxu0 0.0
  %1181 = vmatpush1.msra.mxu0 0.0
  %1182 = vmatprep.subr.mxu0 0.0
  %1183 = vmatpush1.msra.mxu0 0.0
  %1184 = vmatprep.subr.mxu0 0.0
  %1185 = vmatpush1.msra.mxu0 0.0
  %1186 = vmatprep.subr.mxu0 0.0
  %1187 = vmatpush1.msra.mxu0 0.0
  %1188 = vmatprep.subr.mxu0 0.0
  %1189 = vmatpush1.msra.mxu0 0.0
  %1190 = vmatprep.subr.mxu0 0.0
  %1191 = vmatpush1.msra.mxu0 0.0
  %1192 = vmatprep.subr.mxu0 0.0
  %1193 = vmatpush1.msra.mxu0 0.0
  %1194 = vmatprep.subr.mxu0 0.0
  %1195 = vmatpush1.msra.mxu0 0.0
  %1196 = vmatprep.subr.mxu0 0.0
  %1197 = vmatpush1.msra.mxu0 0.0
  %1198 = vmatprep.subr.mxu0 0.0
  %1199 = vmatpush1.msra.mxu0 0.0
  %1200 = vmatprep.subr.mxu0 0.0
  %1201 = vmatpush1.msra.mxu0 0.0
  %1202 = vmatprep.subr.mxu0 0.0
  %1203 = vmatpush1.msra.mxu0 0.0
  %1204 = vmatprep.subr.mxu0 0.0
  %1205 = vmatpush1.msra.mxu0 0.0
  %1206 = vmatprep.subr.mxu0 0.0
  %1207 = vmatpush1.msra.mxu0 0.0
  %1208 = vmatprep.subr.mxu0 0.0
  %1209 = vmatpush1.msra.mxu0 0.0
  %1210 = vmatprep.subr.mxu0 0.0
  %1211 = vmatpush1.msra.mxu0 0.0
  %1212 = vmatprep.subr.mxu0 0.0
  %1213 = vmatpush1.msra.mxu0 0.0
  %1214 = vmatprep.subr.mxu0 0.0
  %1215 = vmatpush1.msra.mxu0 0.0
  %1216 = vmatprep.subr.mxu0 0.0
  %1217 = vmatpush1.msra.mxu0 0.0
  %1218 = vmatprep.subr.mxu0 0.0
  %1219 = vmatpush1.msra.mxu0 0.0
  %1220 = vmatprep.subr.mxu0 0.0
  %1221 = vmatpush1.msra.mxu0 0.0
  %1222 = vmatprep.subr.mxu0 0.0
  %1223 = vmatpush1.msra.mxu0 0.0
  %1224 = vmatprep.subr.mxu0 0.0
  %1225 = vmatpush1.msra.mxu0 0.0
  %1226 = vmatprep.subr.mxu0 0.0
  %1227 = vmatpush1.msra.mxu0 0.0
  %1228 = vmatprep.subr.mxu0 0.0
  %1229 = vmatpush1.msra.mxu0 0.0
  %1230 = vmatprep.subr.mxu0 0.0
  %1231 = vmatpush1.msra.mxu0 0.0
  %1232 = vmatprep.subr.mxu0 0.0
  %1233 = vmatpush1.msra.mxu0 0.0
  %1234 = vmatprep.subr.mxu0 0.0
  %1235 = vmatpush1.msra.mxu0 0.0
  %1236 = vmatprep.mubr.f32.mxu0 0.0
  %1237 = vmatmul.mubr.f32.gmra.mrb[0].mxu0 %v1170
  %v1238 = vpop.f32.mrb[0].mxu0
  %v1239 = vadd.f32 0.0, %v1238
  %v1240 = vpop.f32.mrb[0].mxu0
  %1241 = vdwg.mxu0
  %v1243 = vsel %vm511, %v416, 0
  %1245 = vmatprep.subr.mxu0 0.0
  %1246 = vmatpush1.msra.mxu0 %v461
  %1247 = vmatprep.subr.mxu0 0.0
  %1248 = vmatpush1.msra.mxu0 %v462
  %1249 = vmatprep.subr.mxu0 0.0
  %1250 = vmatpush1.msra.mxu0 0.0
  %1251 = vmatprep.subr.mxu0 0.0
  %1252 = vmatpush1.msra.mxu0 0.0
  %1253 = vmatprep.subr.mxu0 0.0
  %1254 = vmatpush1.msra.mxu0 0.0
  %1255 = vmatprep.subr.mxu0 0.0
  %1256 = vmatpush1.msra.mxu0 0.0
  %1257 = vmatprep.subr.mxu0 0.0
  %1258 = vmatpush1.msra.mxu0 0.0
  %1259 = vmatprep.subr.mxu0 0.0
  %1260 = vmatpush1.msra.mxu0 0.0
  %1261 = vmatprep.subr.mxu0 0.0
  %1262 = vmatpush1.msra.mxu0 0.0
  %1263 = vmatprep.subr.mxu0 0.0
  %1264 = vmatpush1.msra.mxu0 0.0
  %1265 = vmatprep.subr.mxu0 0.0
  %1266 = vmatpush1.msra.mxu0 0.0
  %1267 = vmatprep.subr.mxu0 0.0
  %1268 = vmatpush1.msra.mxu0 0.0
  %1269 = vmatprep.subr.mxu0 0.0
  %1270 = vmatpush1.msra.mxu0 0.0
  %1271 = vmatprep.subr.mxu0 0.0
  %1272 = vmatpush1.msra.mxu0 0.0
  %1273 = vmatprep.subr.mxu0 0.0
  %1274 = vmatpush1.msra.mxu0 0.0
  %1275 = vmatprep.subr.mxu0 0.0
  %1276 = vmatpush1.msra.mxu0 0.0
  %1277 = vmatprep.subr.mxu0 0.0
  %1278 = vmatpush1.msra.mxu0 0.0
  %1279 = vmatprep.subr.mxu0 0.0
  %1280 = vmatpush1.msra.mxu0 0.0
  %1281 = vmatprep.subr.mxu0 0.0
  %1282 = vmatpush1.msra.mxu0 0.0
  %1283 = vmatprep.subr.mxu0 0.0
  %1284 = vmatpush1.msra.mxu0 0.0
  %1285 = vmatprep.subr.mxu0 0.0
  %1286 = vmatpush1.msra.mxu0 0.0
  %1287 = vmatprep.subr.mxu0 0.0
  %1288 = vmatpush1.msra.mxu0 0.0
  %1289 = vmatprep.subr.mxu0 0.0
  %1290 = vmatpush1.msra.mxu0 0.0
  %1291 = vmatprep.subr.mxu0 0.0
  %1292 = vmatpush1.msra.mxu0 0.0
  %1293 = vmatprep.subr.mxu0 0.0
  %1294 = vmatpush1.msra.mxu0 0.0
  %1295 = vmatprep.subr.mxu0 0.0
  %1296 = vmatpush1.msra.mxu0 0.0
  %1297 = vmatprep.subr.mxu0 0.0
  %1298 = vmatpush1.msra.mxu0 0.0
  %1299 = vmatprep.subr.mxu0 0.0
  %1300 = vmatpush1.msra.mxu0 0.0
  %1301 = vmatprep.subr.mxu0 0.0
  %1302 = vmatpush1.msra.mxu0 0.0
  %1303 = vmatprep.subr.mxu0 0.0
  %1304 = vmatpush1.msra.mxu0 0.0
  %1305 = vmatprep.subr.mxu0 0.0
  %1306 = vmatpush1.msra.mxu0 0.0
  %1307 = vmatprep.subr.mxu0 0.0
  %1308 = vmatpush1.msra.mxu0 0.0
  %1309 = vmatprep.mubr.f32.mxu0 0.0
  %1310 = vmatmul.mubr.f32.gmra.mrb[0].mxu0 %v1243
  %v1311 = vpop.f32.mrb[0].mxu0
  %v1312 = vadd.f32 0.0, %v1311
  %v1313 = vpop.f32.mrb[0].mxu0
  %1314 = vdwg.mxu0
  %v1316 = vsel %vm511, %v417, 0
  %1318 = vmatprep.subr.mxu0 0.0
  %1319 = vmatpush1.msra.mxu0 %v463
  %1320 = vmatprep.subr.mxu0 0.0
  %1321 = vmatpush1.msra.mxu0 %v464
  %1322 = vmatprep.subr.mxu0 0.0
  %1323 = vmatpush1.msra.mxu0 0.0
  %1324 = vmatprep.subr.mxu0 0.0
  %1325 = vmatpush1.msra.mxu0 0.0
  %1326 = vmatprep.subr.mxu0 0.0
  %1327 = vmatpush1.msra.mxu0 0.0
  %1328 = vmatprep.subr.mxu0 0.0
  %1329 = vmatpush1.msra.mxu0 0.0
  %1330 = vmatprep.subr.mxu0 0.0
  %1331 = vmatpush1.msra.mxu0 0.0
  %1332 = vmatprep.subr.mxu0 0.0
  %1333 = vmatpush1.msra.mxu0 0.0
  %1334 = vmatprep.subr.mxu0 0.0
  %1335 = vmatpush1.msra.mxu0 0.0
  %1336 = vmatprep.subr.mxu0 0.0
  %1337 = vmatpush1.msra.mxu0 0.0
  %1338 = vmatprep.subr.mxu0 0.0
  %1339 = vmatpush1.msra.mxu0 0.0
  %1340 = vmatprep.subr.mxu0 0.0
  %1341 = vmatpush1.msra.mxu0 0.0
  %1342 = vmatprep.subr.mxu0 0.0
  %1343 = vmatpush1.msra.mxu0 0.0
  %1344 = vmatprep.subr.mxu0 0.0
  %1345 = vmatpush1.msra.mxu0 0.0
  %1346 = vmatprep.subr.mxu0 0.0
  %1347 = vmatpush1.msra.mxu0 0.0
  %1348 = vmatprep.subr.mxu0 0.0
  %1349 = vmatpush1.msra.mxu0 0.0
  %1350 = vmatprep.subr.mxu0 0.0
  %1351 = vmatpush1.msra.mxu0 0.0
  %1352 = vmatprep.subr.mxu0 0.0
  %1353 = vmatpush1.msra.mxu0 0.0
  %1354 = vmatprep.subr.mxu0 0.0
  %1355 = vmatpush1.msra.mxu0 0.0
  %1356 = vmatprep.subr.mxu0 0.0
  %1357 = vmatpush1.msra.mxu0 0.0
  %1358 = vmatprep.subr.mxu0 0.0
  %1359 = vmatpush1.msra.mxu0 0.0
  %1360 = vmatprep.subr.mxu0 0.0
  %1361 = vmatpush1.msra.mxu0 0.0
  %1362 = vmatprep.subr.mxu0 0.0
  %1363 = vmatpush1.msra.mxu0 0.0
  %1364 = vmatprep.subr.mxu0 0.0
  %1365 = vmatpush1.msra.mxu0 0.0
  %1366 = vmatprep.subr.mxu0 0.0
  %1367 = vmatpush1.msra.mxu0 0.0
  %1368 = vmatprep.subr.mxu0 0.0
  %1369 = vmatpush1.msra.mxu0 0.0
  %1370 = vmatprep.subr.mxu0 0.0
  %1371 = vmatpush1.msra.mxu0 0.0
  %1372 = vmatprep.subr.mxu0 0.0
  %1373 = vmatpush1.msra.mxu0 0.0
  %1374 = vmatprep.subr.mxu0 0.0
  %1375 = vmatpush1.msra.mxu0 0.0
  %1376 = vmatprep.subr.mxu0 0.0
  %1377 = vmatpush1.msra.mxu0 0.0
  %1378 = vmatprep.subr.mxu0 0.0
  %1379 = vmatpush1.msra.mxu0 0.0
  %1380 = vmatprep.subr.mxu0 0.0
  %1381 = vmatpush1.msra.mxu0 0.0
  %1382 = vmatprep.mubr.f32.mxu0 0.0
  %1383 = vmatmul.mubr.f32.gmra.mrb[0].mxu0 %v1316
  %v1384 = vpop.f32.mrb[0].mxu0
  %v1385 = vadd.f32 0.0, %v1384
  %v1386 = vpop.f32.mrb[0].mxu0
  %1387 = vdwg.mxu0
  %v1389 = vsel %vm511, %v418, 0
  %1391 = vmatprep.subr.mxu0 0.0
  %1392 = vmatpush1.msra.mxu0 %v465
  %1393 = vmatprep.subr.mxu0 0.0
  %1394 = vmatpush1.msra.mxu0 %v466
  %1395 = vmatprep.subr.mxu0 0.0
  %1396 = vmatpush1.msra.mxu0 0.0
  %1397 = vmatprep.subr.mxu0 0.0
  %1398 = vmatpush1.msra.mxu0 0.0
  %1399 = vmatprep.subr.mxu0 0.0
  %1400 = vmatpush1.msra.mxu0 0.0
  %1401 = vmatprep.subr.mxu0 0.0
  %1402 = vmatpush1.msra.mxu0 0.0
  %1403 = vmatprep.subr.mxu0 0.0
  %1404 = vmatpush1.msra.mxu0 0.0
  %1405 = vmatprep.subr.mxu0 0.0
  %1406 = vmatpush1.msra.mxu0 0.0
  %1407 = vmatprep.subr.mxu0 0.0
  %1408 = vmatpush1.msra.mxu0 0.0
  %1409 = vmatprep.subr.mxu0 0.0
  %1410 = vmatpush1.msra.mxu0 0.0
  %1411 = vmatprep.subr.mxu0 0.0
  %1412 = vmatpush1.msra.mxu0 0.0
  %1413 = vmatprep.subr.mxu0 0.0
  %1414 = vmatpush1.msra.mxu0 0.0
  %1415 = vmatprep.subr.mxu0 0.0
  %1416 = vmatpush1.msra.mxu0 0.0
  %1417 = vmatprep.subr.mxu0 0.0
  %1418 = vmatpush1.msra.mxu0 0.0
  %1419 = vmatprep.subr.mxu0 0.0
  %1420 = vmatpush1.msra.mxu0 0.0
  %1421 = vmatprep.subr.mxu0 0.0
  %1422 = vmatpush1.msra.mxu0 0.0
  %1423 = vmatprep.subr.mxu0 0.0
  %1424 = vmatpush1.msra.mxu0 0.0
  %1425 = vmatprep.subr.mxu0 0.0
  %1426 = vmatpush1.msra.mxu0 0.0
  %1427 = vmatprep.subr.mxu0 0.0
  %1428 = vmatpush1.msra.mxu0 0.0
  %1429 = vmatprep.subr.mxu0 0.0
  %1430 = vmatpush1.msra.mxu0 0.0
  %1431 = vmatprep.subr.mxu0 0.0
  %1432 = vmatpush1.msra.mxu0 0.0
  %1433 = vmatprep.subr.mxu0 0.0
  %1434 = vmatpush1.msra.mxu0 0.0
  %1435 = vmatprep.subr.mxu0 0.0
  %1436 = vmatpush1.msra.mxu0 0.0
  %1437 = vmatprep.subr.mxu0 0.0
  %1438 = vmatpush1.msra.mxu0 0.0
  %1439 = vmatprep.subr.mxu0 0.0
  %1440 = vmatpush1.msra.mxu0 0.0
  %1441 = vmatprep.subr.mxu0 0.0
  %1442 = vmatpush1.msra.mxu0 0.0
  %1443 = vmatprep.subr.mxu0 0.0
  %1444 = vmatpush1.msra.mxu0 0.0
  %1445 = vmatprep.subr.mxu0 0.0
  %1446 = vmatpush1.msra.mxu0 0.0
  %1447 = vmatprep.subr.mxu0 0.0
  %1448 = vmatpush1.msra.mxu0 0.0
  %1449 = vmatprep.subr.mxu0 0.0
  %1450 = vmatpush1.msra.mxu0 0.0
  %1451 = vmatprep.subr.mxu0 0.0
  %1452 = vmatpush1.msra.mxu0 0.0
  %1453 = vmatprep.subr.mxu0 0.0
  %1454 = vmatpush1.msra.mxu0 0.0
  %1455 = vmatprep.mubr.f32.mxu0 0.0
  %1456 = vmatmul.mubr.f32.gmra.mrb[0].mxu0 %v1389
  %v1457 = vpop.f32.mrb[0].mxu0
  %v1458 = vadd.f32 0.0, %v1457
  %v1459 = vpop.f32.mrb[0].mxu0
  %1460 = vdwg.mxu0
  %v1462 = vsel %vm511, %v419, 0
  %1464 = vmatprep.subr.mxu0 0.0
  %1465 = vmatpush1.msra.mxu0 %v467
  %1466 = vmatprep.subr.mxu0 0.0
  %1467 = vmatpush1.msra.mxu0 %v468
  %1468 = vmatprep.subr.mxu0 0.0
  %1469 = vmatpush1.msra.mxu0 0.0
  %1470 = vmatprep.subr.mxu0 0.0
  %1471 = vmatpush1.msra.mxu0 0.0
  %1472 = vmatprep.subr.mxu0 0.0
  %1473 = vmatpush1.msra.mxu0 0.0
  %1474 = vmatprep.subr.mxu0 0.0
  %1475 = vmatpush1.msra.mxu0 0.0
  %1476 = vmatprep.subr.mxu0 0.0
  %1477 = vmatpush1.msra.mxu0 0.0
  %1478 = vmatprep.subr.mxu0 0.0
  %1479 = vmatpush1.msra.mxu0 0.0
  %1480 = vmatprep.subr.mxu0 0.0
  %1481 = vmatpush1.msra.mxu0 0.0
  %1482 = vmatprep.subr.mxu0 0.0
  %1483 = vmatpush1.msra.mxu0 0.0
  %1484 = vmatprep.subr.mxu0 0.0
  %1485 = vmatpush1.msra.mxu0 0.0
  %1486 = vmatprep.subr.mxu0 0.0
  %1487 = vmatpush1.msra.mxu0 0.0
  %1488 = vmatprep.subr.mxu0 0.0
  %1489 = vmatpush1.msra.mxu0 0.0
  %1490 = vmatprep.subr.mxu0 0.0
  %1491 = vmatpush1.msra.mxu0 0.0
  %1492 = vmatprep.subr.mxu0 0.0
  %1493 = vmatpush1.msra.mxu0 0.0
  %1494 = vmatprep.subr.mxu0 0.0
  %1495 = vmatpush1.msra.mxu0 0.0
  %1496 = vmatprep.subr.mxu0 0.0
  %1497 = vmatpush1.msra.mxu0 0.0
  %1498 = vmatprep.subr.mxu0 0.0
  %1499 = vmatpush1.msra.mxu0 0.0
  %1500 = vmatprep.subr.mxu0 0.0
  %1501 = vmatpush1.msra.mxu0 0.0
  %1502 = vmatprep.subr.mxu0 0.0
  %1503 = vmatpush1.msra.mxu0 0.0
  %1504 = vmatprep.subr.mxu0 0.0
  %1505 = vmatpush1.msra.mxu0 0.0
  %1506 = vmatprep.subr.mxu0 0.0
  %1507 = vmatpush1.msra.mxu0 0.0
  %1508 = vmatprep.subr.mxu0 0.0
  %1509 = vmatpush1.msra.mxu0 0.0
  %1510 = vmatprep.subr.mxu0 0.0
  %1511 = vmatpush1.msra.mxu0 0.0
  %1512 = vmatprep.subr.mxu0 0.0
  %1513 = vmatpush1.msra.mxu0 0.0
  %1514 = vmatprep.subr.mxu0 0.0
  %1515 = vmatpush1.msra.mxu0 0.0
  %1516 = vmatprep.subr.mxu0 0.0
  %1517 = vmatpush1.msra.mxu0 0.0
  %1518 = vmatprep.subr.mxu0 0.0
  %1519 = vmatpush1.msra.mxu0 0.0
  %1520 = vmatprep.subr.mxu0 0.0
  %1521 = vmatpush1.msra.mxu0 0.0
  %1522 = vmatprep.subr.mxu0 0.0
  %1523 = vmatpush1.msra.mxu0 0.0
  %1524 = vmatprep.subr.mxu0 0.0
  %1525 = vmatpush1.msra.mxu0 0.0
  %1526 = vmatprep.subr.mxu0 0.0
  %1527 = vmatpush1.msra.mxu0 0.0
  %1528 = vmatprep.mubr.f32.mxu0 0.0
  %1529 = vmatmul.mubr.f32.gmra.mrb[0].mxu0 %v1462
  %v1530 = vpop.f32.mrb[0].mxu0
  %v1531 = vadd.f32 0.0, %v1530
  %v1532 = vpop.f32.mrb[0].mxu0
  %1533 = vdwg.mxu0
  %v1535 = vsel %vm511, %v420, 0
  %1537 = vmatprep.subr.mxu0 0.0
  %1538 = vmatpush1.msra.mxu0 %v469
  %1539 = vmatprep.subr.mxu0 0.0
  %1540 = vmatpush1.msra.mxu0 %v470
  %1541 = vmatprep.subr.mxu0 0.0
  %1542 = vmatpush1.msra.mxu0 0.0
  %1543 = vmatprep.subr.mxu0 0.0
  %1544 = vmatpush1.msra.mxu0 0.0
  %1545 = vmatprep.subr.mxu0 0.0
  %1546 = vmatpush1.msra.mxu0 0.0
  %1547 = vmatprep.subr.mxu0 0.0
  %1548 = vmatpush1.msra.mxu0 0.0
  %1549 = vmatprep.subr.mxu0 0.0
  %1550 = vmatpush1.msra.mxu0 0.0
  %1551 = vmatprep.subr.mxu0 0.0
  %1552 = vmatpush1.msra.mxu0 0.0
  %1553 = vmatprep.subr.mxu0 0.0
  %1554 = vmatpush1.msra.mxu0 0.0
  %1555 = vmatprep.subr.mxu0 0.0
  %1556 = vmatpush1.msra.mxu0 0.0
  %1557 = vmatprep.subr.mxu0 0.0
  %1558 = vmatpush1.msra.mxu0 0.0
  %1559 = vmatprep.subr.mxu0 0.0
  %1560 = vmatpush1.msra.mxu0 0.0
  %1561 = vmatprep.subr.mxu0 0.0
  %1562 = vmatpush1.msra.mxu0 0.0
  %1563 = vmatprep.subr.mxu0 0.0
  %1564 = vmatpush1.msra.mxu0 0.0
  %1565 = vmatprep.subr.mxu0 0.0
  %1566 = vmatpush1.msra.mxu0 0.0
  %1567 = vmatprep.subr.mxu0 0.0
  %1568 = vmatpush1.msra.mxu0 0.0
  %1569 = vmatprep.subr.mxu0 0.0
  %1570 = vmatpush1.msra.mxu0 0.0
  %1571 = vmatprep.subr.mxu0 0.0
  %1572 = vmatpush1.msra.mxu0 0.0
  %1573 = vmatprep.subr.mxu0 0.0
  %1574 = vmatpush1.msra.mxu0 0.0
  %1575 = vmatprep.subr.mxu0 0.0
  %1576 = vmatpush1.msra.mxu0 0.0
  %1577 = vmatprep.subr.mxu0 0.0
  %1578 = vmatpush1.msra.mxu0 0.0
  %1579 = vmatprep.subr.mxu0 0.0
  %1580 = vmatpush1.msra.mxu0 0.0
  %1581 = vmatprep.subr.mxu0 0.0
  %1582 = vmatpush1.msra.mxu0 0.0
  %1583 = vmatprep.subr.mxu0 0.0
  %1584 = vmatpush1.msra.mxu0 0.0
  %1585 = vmatprep.subr.mxu0 0.0
  %1586 = vmatpush1.msra.mxu0 0.0
  %1587 = vmatprep.subr.mxu0 0.0
  %1588 = vmatpush1.msra.mxu0 0.0
  %1589 = vmatprep.subr.mxu0 0.0
  %1590 = vmatpush1.msra.mxu0 0.0
  %1591 = vmatprep.subr.mxu0 0.0
  %1592 = vmatpush1.msra.mxu0 0.0
  %1593 = vmatprep.subr.mxu0 0.0
  %1594 = vmatpush1.msra.mxu0 0.0
  %1595 = vmatprep.subr.mxu0 0.0
  %1596 = vmatpush1.msra.mxu0 0.0
  %1597 = vmatprep.subr.mxu0 0.0
  %1598 = vmatpush1.msra.mxu0 0.0
  %1599 = vmatprep.subr.mxu0 0.0
  %1600 = vmatpush1.msra.mxu0 0.0
  %1601 = vmatprep.mubr.f32.mxu0 0.0
  %1602 = vmatmul.mubr.f32.gmra.mrb[0].mxu0 %v1535
  %v1603 = vpop.f32.mrb[0].mxu0
  %v1604 = vadd.f32 0.0, %v1603
  %v1605 = vpop.f32.mrb[0].mxu0
  %1606 = vdwg.mxu0
  %v1608 = vsel %vm511, %v421, 0
  %1610 = vmatprep.subr.mxu0 0.0
  %1611 = vmatpush1.msra.mxu0 %v471
  %1612 = vmatprep.subr.mxu0 0.0
  %1613 = vmatpush1.msra.mxu0 %v472
  %1614 = vmatprep.subr.mxu0 0.0
  %1615 = vmatpush1.msra.mxu0 0.0
  %1616 = vmatprep.subr.mxu0 0.0
  %1617 = vmatpush1.msra.mxu0 0.0
  %1618 = vmatprep.subr.mxu0 0.0
  %1619 = vmatpush1.msra.mxu0 0.0
  %1620 = vmatprep.subr.mxu0 0.0
  %1621 = vmatpush1.msra.mxu0 0.0
  %1622 = vmatprep.subr.mxu0 0.0
  %1623 = vmatpush1.msra.mxu0 0.0
  %1624 = vmatprep.subr.mxu0 0.0
  %1625 = vmatpush1.msra.mxu0 0.0
  %1626 = vmatprep.subr.mxu0 0.0
  %1627 = vmatpush1.msra.mxu0 0.0
  %1628 = vmatprep.subr.mxu0 0.0
  %1629 = vmatpush1.msra.mxu0 0.0
  %1630 = vmatprep.subr.mxu0 0.0
  %1631 = vmatpush1.msra.mxu0 0.0
  %1632 = vmatprep.subr.mxu0 0.0
  %1633 = vmatpush1.msra.mxu0 0.0
  %1634 = vmatprep.subr.mxu0 0.0
  %1635 = vmatpush1.msra.mxu0 0.0
  %1636 = vmatprep.subr.mxu0 0.0
  %1637 = vmatpush1.msra.mxu0 0.0
  %1638 = vmatprep.subr.mxu0 0.0
  %1639 = vmatpush1.msra.mxu0 0.0
  %1640 = vmatprep.subr.mxu0 0.0
  %1641 = vmatpush1.msra.mxu0 0.0
  %1642 = vmatprep.subr.mxu0 0.0
  %1643 = vmatpush1.msra.mxu0 0.0
  %1644 = vmatprep.subr.mxu0 0.0
  %1645 = vmatpush1.msra.mxu0 0.0
  %1646 = vmatprep.subr.mxu0 0.0
  %1647 = vmatpush1.msra.mxu0 0.0
  %1648 = vmatprep.subr.mxu0 0.0
  %1649 = vmatpush1.msra.mxu0 0.0
  %1650 = vmatprep.subr.mxu0 0.0
  %1651 = vmatpush1.msra.mxu0 0.0
  %1652 = vmatprep.subr.mxu0 0.0
  %1653 = vmatpush1.msra.mxu0 0.0
  %1654 = vmatprep.subr.mxu0 0.0
  %1655 = vmatpush1.msra.mxu0 0.0
  %1656 = vmatprep.subr.mxu0 0.0
  %1657 = vmatpush1.msra.mxu0 0.0
  %1658 = vmatprep.subr.mxu0 0.0
  %1659 = vmatpush1.msra.mxu0 0.0
  %1660 = vmatprep.subr.mxu0 0.0
  %1661 = vmatpush1.msra.mxu0 0.0
  %1662 = vmatprep.subr.mxu0 0.0
  %1663 = vmatpush1.msra.mxu0 0.0
  %1664 = vmatprep.subr.mxu0 0.0
  %1665 = vmatpush1.msra.mxu0 0.0
  %1666 = vmatprep.subr.mxu0 0.0
  %1667 = vmatpush1.msra.mxu0 0.0
  %1668 = vmatprep.subr.mxu0 0.0
  %1669 = vmatpush1.msra.mxu0 0.0
  %1670 = vmatprep.subr.mxu0 0.0
  %1671 = vmatpush1.msra.mxu0 0.0
  %1672 = vmatprep.subr.mxu0 0.0
  %1673 = vmatpush1.msra.mxu0 0.0
  %1674 = vmatprep.mubr.f32.mxu0 0.0
  %1675 = vmatmul.mubr.f32.gmra.mrb[0].mxu0 %v1608
  %v1676 = vpop.f32.mrb[0].mxu0
  %v1677 = vadd.f32 0.0, %v1676
  %v1678 = vpop.f32.mrb[0].mxu0
  %1679 = vdwg.mxu0
  %v1681 = vsel %vm511, %v422, 0
  %1683 = vmatprep.subr.mxu0 0.0
  %1684 = vmatpush1.msra.mxu0 %v473
  %1685 = vmatprep.subr.mxu0 0.0
  %1686 = vmatpush1.msra.mxu0 %v474
  %1687 = vmatprep.subr.mxu0 0.0
  %1688 = vmatpush1.msra.mxu0 0.0
  %1689 = vmatprep.subr.mxu0 0.0
  %1690 = vmatpush1.msra.mxu0 0.0
  %1691 = vmatprep.subr.mxu0 0.0
  %1692 = vmatpush1.msra.mxu0 0.0
  %1693 = vmatprep.subr.mxu0 0.0
  %1694 = vmatpush1.msra.mxu0 0.0
  %1695 = vmatprep.subr.mxu0 0.0
  %1696 = vmatpush1.msra.mxu0 0.0
  %1697 = vmatprep.subr.mxu0 0.0
  %1698 = vmatpush1.msra.mxu0 0.0
  %1699 = vmatprep.subr.mxu0 0.0
  %1700 = vmatpush1.msra.mxu0 0.0
  %1701 = vmatprep.subr.mxu0 0.0
  %1702 = vmatpush1.msra.mxu0 0.0
  %1703 = vmatprep.subr.mxu0 0.0
  %1704 = vmatpush1.msra.mxu0 0.0
  %1705 = vmatprep.subr.mxu0 0.0
  %1706 = vmatpush1.msra.mxu0 0.0
  %1707 = vmatprep.subr.mxu0 0.0
  %1708 = vmatpush1.msra.mxu0 0.0
  %1709 = vmatprep.subr.mxu0 0.0
  %1710 = vmatpush1.msra.mxu0 0.0
  %1711 = vmatprep.subr.mxu0 0.0
  %1712 = vmatpush1.msra.mxu0 0.0
  %1713 = vmatprep.subr.mxu0 0.0
  %1714 = vmatpush1.msra.mxu0 0.0
  %1715 = vmatprep.subr.mxu0 0.0
  %1716 = vmatpush1.msra.mxu0 0.0
  %1717 = vmatprep.subr.mxu0 0.0
  %1718 = vmatpush1.msra.mxu0 0.0
  %1719 = vmatprep.subr.mxu0 0.0
  %1720 = vmatpush1.msra.mxu0 0.0
  %1721 = vmatprep.subr.mxu0 0.0
  %1722 = vmatpush1.msra.mxu0 0.0
  %1723 = vmatprep.subr.mxu0 0.0
  %1724 = vmatpush1.msra.mxu0 0.0
  %1725 = vmatprep.subr.mxu0 0.0
  %1726 = vmatpush1.msra.mxu0 0.0
  %1727 = vmatprep.subr.mxu0 0.0
  %1728 = vmatpush1.msra.mxu0 0.0
  %1729 = vmatprep.subr.mxu0 0.0
  %1730 = vmatpush1.msra.mxu0 0.0
  %1731 = vmatprep.subr.mxu0 0.0
  %1732 = vmatpush1.msra.mxu0 0.0
  %1733 = vmatprep.subr.mxu0 0.0
  %1734 = vmatpush1.msra.mxu0 0.0
  %1735 = vmatprep.subr.mxu0 0.0
  %1736 = vmatpush1.msra.mxu0 0.0
  %1737 = vmatprep.subr.mxu0 0.0
  %1738 = vmatpush1.msra.mxu0 0.0
  %1739 = vmatprep.subr.mxu0 0.0
  %1740 = vmatpush1.msra.mxu0 0.0
  %1741 = vmatprep.subr.mxu0 0.0
  %1742 = vmatpush1.msra.mxu0 0.0
  %1743 = vmatprep.subr.mxu0 0.0
  %1744 = vmatpush1.msra.mxu0 0.0
  %1745 = vmatprep.subr.mxu0 0.0
  %1746 = vmatpush1.msra.mxu0 0.0
  %1747 = vmatprep.mubr.f32.mxu0 0.0
  %1748 = vmatmul.mubr.f32.gmra.mrb[0].mxu0 %v1681
  %v1749 = vpop.f32.mrb[0].mxu0
  %v1750 = vadd.f32 0.0, %v1749
  %v1751 = vpop.f32.mrb[0].mxu0
  %1752 = vdwg.mxu0
  %v1754 = vsel %vm511, %v423, 0
  %1756 = vmatprep.subr.mxu0 0.0
  %1757 = vmatpush1.msra.mxu0 %v475
  %1758 = vmatprep.subr.mxu0 0.0
  %1759 = vmatpush1.msra.mxu0 %v476
  %1760 = vmatprep.subr.mxu0 0.0
  %1761 = vmatpush1.msra.mxu0 0.0
  %1762 = vmatprep.subr.mxu0 0.0
  %1763 = vmatpush1.msra.mxu0 0.0
  %1764 = vmatprep.subr.mxu0 0.0
  %1765 = vmatpush1.msra.mxu0 0.0
  %1766 = vmatprep.subr.mxu0 0.0
  %1767 = vmatpush1.msra.mxu0 0.0
  %1768 = vmatprep.subr.mxu0 0.0
  %1769 = vmatpush1.msra.mxu0 0.0
  %1770 = vmatprep.subr.mxu0 0.0
  %1771 = vmatpush1.msra.mxu0 0.0
  %1772 = vmatprep.subr.mxu0 0.0
  %1773 = vmatpush1.msra.mxu0 0.0
  %1774 = vmatprep.subr.mxu0 0.0
  %1775 = vmatpush1.msra.mxu0 0.0
  %1776 = vmatprep.subr.mxu0 0.0
  %1777 = vmatpush1.msra.mxu0 0.0
  %1778 = vmatprep.subr.mxu0 0.0
  %1779 = vmatpush1.msra.mxu0 0.0
  %1780 = vmatprep.subr.mxu0 0.0
  %1781 = vmatpush1.msra.mxu0 0.0
  %1782 = vmatprep.subr.mxu0 0.0
  %1783 = vmatpush1.msra.mxu0 0.0
  %1784 = vmatprep.subr.mxu0 0.0
  %1785 = vmatpush1.msra.mxu0 0.0
  %1786 = vmatprep.subr.mxu0 0.0
  %1787 = vmatpush1.msra.mxu0 0.0
  %1788 = vmatprep.subr.mxu0 0.0
  %1789 = vmatpush1.msra.mxu0 0.0
  %1790 = vmatprep.subr.mxu0 0.0
  %1791 = vmatpush1.msra.mxu0 0.0
  %1792 = vmatprep.subr.mxu0 0.0
  %1793 = vmatpush1.msra.mxu0 0.0
  %1794 = vmatprep.subr.mxu0 0.0
  %1795 = vmatpush1.msra.mxu0 0.0
  %1796 = vmatprep.subr.mxu0 0.0
  %1797 = vmatpush1.msra.mxu0 0.0
  %1798 = vmatprep.subr.mxu0 0.0
  %1799 = vmatpush1.msra.mxu0 0.0
  %1800 = vmatprep.subr.mxu0 0.0
  %1801 = vmatpush1.msra.mxu0 0.0
  %1802 = vmatprep.subr.mxu0 0.0
  %1803 = vmatpush1.msra.mxu0 0.0
  %1804 = vmatprep.subr.mxu0 0.0
  %1805 = vmatpush1.msra.mxu0 0.0
  %1806 = vmatprep.subr.mxu0 0.0
  %1807 = vmatpush1.msra.mxu0 0.0
  %1808 = vmatprep.subr.mxu0 0.0
  %1809 = vmatpush1.msra.mxu0 0.0
  %1810 = vmatprep.subr.mxu0 0.0
  %1811 = vmatpush1.msra.mxu0 0.0
  %1812 = vmatprep.subr.mxu0 0.0
  %1813 = vmatpush1.msra.mxu0 0.0
  %1814 = vmatprep.subr.mxu0 0.0
  %1815 = vmatpush1.msra.mxu0 0.0
  %1816 = vmatprep.subr.mxu0 0.0
  %1817 = vmatpush1.msra.mxu0 0.0
  %1818 = vmatprep.subr.mxu0 0.0
  %1819 = vmatpush1.msra.mxu0 0.0
  %1820 = vmatprep.mubr.f32.mxu0 0.0
  %1821 = vmatmul.mubr.f32.gmra.mrb[0].mxu0 %v1754
  %v1822 = vpop.f32.mrb[0].mxu0
  %v1823 = vadd.f32 0.0, %v1822
  %v1824 = vpop.f32.mrb[0].mxu0
  %1825 = vdwg.mxu0
  %v1827 = vsel %vm511, %v424, 0
  %1829 = vmatprep.subr.mxu0 0.0
  %1830 = vmatpush1.msra.mxu0 %v477
  %1831 = vmatprep.subr.mxu0 0.0
  %1832 = vmatpush1.msra.mxu0 %v478
  %1833 = vmatprep.subr.mxu0 0.0
  %1834 = vmatpush1.msra.mxu0 0.0
  %1835 = vmatprep.subr.mxu0 0.0
  %1836 = vmatpush1.msra.mxu0 0.0
  %1837 = vmatprep.subr.mxu0 0.0
  %1838 = vmatpush1.msra.mxu0 0.0
  %1839 = vmatprep.subr.mxu0 0.0
  %1840 = vmatpush1.msra.mxu0 0.0
  %1841 = vmatprep.subr.mxu0 0.0
  %1842 = vmatpush1.msra.mxu0 0.0
  %1843 = vmatprep.subr.mxu0 0.0
  %1844 = vmatpush1.msra.mxu0 0.0
  %1845 = vmatprep.subr.mxu0 0.0
  %1846 = vmatpush1.msra.mxu0 0.0
  %1847 = vmatprep.subr.mxu0 0.0
  %1848 = vmatpush1.msra.mxu0 0.0
  %1849 = vmatprep.subr.mxu0 0.0
  %1850 = vmatpush1.msra.mxu0 0.0
  %1851 = vmatprep.subr.mxu0 0.0
  %1852 = vmatpush1.msra.mxu0 0.0
  %1853 = vmatprep.subr.mxu0 0.0
  %1854 = vmatpush1.msra.mxu0 0.0
  %1855 = vmatprep.subr.mxu0 0.0
  %1856 = vmatpush1.msra.mxu0 0.0
  %1857 = vmatprep.subr.mxu0 0.0
  %1858 = vmatpush1.msra.mxu0 0.0
  %1859 = vmatprep.subr.mxu0 0.0
  %1860 = vmatpush1.msra.mxu0 0.0
  %1861 = vmatprep.subr.mxu0 0.0
  %1862 = vmatpush1.msra.mxu0 0.0
  %1863 = vmatprep.subr.mxu0 0.0
  %1864 = vmatpush1.msra.mxu0 0.0
  %1865 = vmatprep.subr.mxu0 0.0
  %1866 = vmatpush1.msra.mxu0 0.0
  %1867 = vmatprep.subr.mxu0 0.0
  %1868 = vmatpush1.msra.mxu0 0.0
  %1869 = vmatprep.subr.mxu0 0.0
  %1870 = vmatpush1.msra.mxu0 0.0
  %1871 = vmatprep.subr.mxu0 0.0
  %1872 = vmatpush1.msra.mxu0 0.0
  %1873 = vmatprep.subr.mxu0 0.0
  %1874 = vmatpush1.msra.mxu0 0.0
  %1875 = vmatprep.subr.mxu0 0.0
  %1876 = vmatpush1.msra.mxu0 0.0
  %1877 = vmatprep.subr.mxu0 0.0
  %1878 = vmatpush1.msra.mxu0 0.0
  %1879 = vmatprep.subr.mxu0 0.0
  %1880 = vmatpush1.msra.mxu0 0.0
  %1881 = vmatprep.subr.mxu0 0.0
  %1882 = vmatpush1.msra.mxu0 0.0
  %1883 = vmatprep.subr.mxu0 0.0
  %1884 = vmatpush1.msra.mxu0 0.0
  %1885 = vmatprep.subr.mxu0 0.0
  %1886 = vmatpush1.msra.mxu0 0.0
  %1887 = vmatprep.subr.mxu0 0.0
  %1888 = vmatpush1.msra.mxu0 0.0
  %1889 = vmatprep.subr.mxu0 0.0
  %1890 = vmatpush1.msra.mxu0 0.0
  %1891 = vmatprep.subr.mxu0 0.0
  %1892 = vmatpush1.msra.mxu0 0.0
  %1893 = vmatprep.mubr.f32.mxu0 0.0
  %1894 = vmatmul.mubr.f32.gmra.mrb[0].mxu0 %v1827
  %v1895 = vpop.f32.mrb[0].mxu0
  %v1896 = vadd.f32 0.0, %v1895
  %v1897 = vpop.f32.mrb[0].mxu0
  %1898 = vdwg.mxu0
  %v1900 = vsel %vm511, %v425, 0
  %1902 = vmatprep.subr.mxu0 0.0
  %1903 = vmatpush1.msra.mxu0 %v479
  %1904 = vmatprep.subr.mxu0 0.0
  %1905 = vmatpush1.msra.mxu0 %v480
  %1906 = vmatprep.subr.mxu0 0.0
  %1907 = vmatpush1.msra.mxu0 0.0
  %1908 = vmatprep.subr.mxu0 0.0
  %1909 = vmatpush1.msra.mxu0 0.0
  %1910 = vmatprep.subr.mxu0 0.0
  %1911 = vmatpush1.msra.mxu0 0.0
  %1912 = vmatprep.subr.mxu0 0.0
  %1913 = vmatpush1.msra.mxu0 0.0
  %1914 = vmatprep.subr.mxu0 0.0
  %1915 = vmatpush1.msra.mxu0 0.0
  %1916 = vmatprep.subr.mxu0 0.0
  %1917 = vmatpush1.msra.mxu0 0.0
  %1918 = vmatprep.subr.mxu0 0.0
  %1919 = vmatpush1.msra.mxu0 0.0
  %1920 = vmatprep.subr.mxu0 0.0
  %1921 = vmatpush1.msra.mxu0 0.0
  %1922 = vmatprep.subr.mxu0 0.0
  %1923 = vmatpush1.msra.mxu0 0.0
  %1924 = vmatprep.subr.mxu0 0.0
  %1925 = vmatpush1.msra.mxu0 0.0
  %1926 = vmatprep.subr.mxu0 0.0
  %1927 = vmatpush1.msra.mxu0 0.0
  %1928 = vmatprep.subr.mxu0 0.0
  %1929 = vmatpush1.msra.mxu0 0.0
  %1930 = vmatprep.subr.mxu0 0.0
  %1931 = vmatpush1.msra.mxu0 0.0
  %1932 = vmatprep.subr.mxu0 0.0
  %1933 = vmatpush1.msra.mxu0 0.0
  %1934 = vmatprep.subr.mxu0 0.0
  %1935 = vmatpush1.msra.mxu0 0.0
  %1936 = vmatprep.subr.mxu0 0.0
  %1937 = vmatpush1.msra.mxu0 0.0
  %1938 = vmatprep.subr.mxu0 0.0
  %1939 = vmatpush1.msra.mxu0 0.0
  %1940 = vmatprep.subr.mxu0 0.0
  %1941 = vmatpush1.msra.mxu0 0.0
  %1942 = vmatprep.subr.mxu0 0.0
  %1943 = vmatpush1.msra.mxu0 0.0
  %1944 = vmatprep.subr.mxu0 0.0
  %1945 = vmatpush1.msra.mxu0 0.0
  %1946 = vmatprep.subr.mxu0 0.0
  %1947 = vmatpush1.msra.mxu0 0.0
  %1948 = vmatprep.subr.mxu0 0.0
  %1949 = vmatpush1.msra.mxu0 0.0
  %1950 = vmatprep.subr.mxu0 0.0
  %1951 = vmatpush1.msra.mxu0 0.0
  %1952 = vmatprep.subr.mxu0 0.0
  %1953 = vmatpush1.msra.mxu0 0.0
  %1954 = vmatprep.subr.mxu0 0.0
  %1955 = vmatpush1.msra.mxu0 0.0
  %1956 = vmatprep.subr.mxu0 0.0
  %1957 = vmatpush1.msra.mxu0 0.0
  %1958 = vmatprep.subr.mxu0 0.0
  %1959 = vmatpush1.msra.mxu0 0.0
  %1960 = vmatprep.subr.mxu0 0.0
  %1961 = vmatpush1.msra.mxu0 0.0
  %1962 = vmatprep.subr.mxu0 0.0
  %1963 = vmatpush1.msra.mxu0 0.0
  %1964 = vmatprep.subr.mxu0 0.0
  %1965 = vmatpush1.msra.mxu0 0.0
  %1966 = vmatprep.mubr.f32.mxu0 0.0
  %1967 = vmatmul.mubr.f32.gmra.mrb[0].mxu0 %v1900
  %v1968 = vpop.f32.mrb[0].mxu0
  %v1969 = vadd.f32 0.0, %v1968
  %v1970 = vpop.f32.mrb[0].mxu0
  %1971 = vdwg.mxu0
  %v1973 = vsel %vm511, %v426, 0
  %1975 = vmatprep.subr.mxu0 0.0
  %1976 = vmatpush1.msra.mxu0 %v481
  %1977 = vmatprep.subr.mxu0 0.0
  %1978 = vmatpush1.msra.mxu0 %v482
  %1979 = vmatprep.subr.mxu0 0.0
  %1980 = vmatpush1.msra.mxu0 0.0
  %1981 = vmatprep.subr.mxu0 0.0
  %1982 = vmatpush1.msra.mxu0 0.0
  %1983 = vmatprep.subr.mxu0 0.0
  %1984 = vmatpush1.msra.mxu0 0.0
  %1985 = vmatprep.subr.mxu0 0.0
  %1986 = vmatpush1.msra.mxu0 0.0
  %1987 = vmatprep.subr.mxu0 0.0
  %1988 = vmatpush1.msra.mxu0 0.0
  %1989 = vmatprep.subr.mxu0 0.0
  %1990 = vmatpush1.msra.mxu0 0.0
  %1991 = vmatprep.subr.mxu0 0.0
  %1992 = vmatpush1.msra.mxu0 0.0
  %1993 = vmatprep.subr.mxu0 0.0
  %1994 = vmatpush1.msra.mxu0 0.0
  %1995 = vmatprep.subr.mxu0 0.0
  %1996 = vmatpush1.msra.mxu0 0.0
  %1997 = vmatprep.subr.mxu0 0.0
  %1998 = vmatpush1.msra.mxu0 0.0
  %1999 = vmatprep.subr.mxu0 0.0
  %2000 = vmatpush1.msra.mxu0 0.0
  %2001 = vmatprep.subr.mxu0 0.0
  %2002 = vmatpush1.msra.mxu0 0.0
  %2003 = vmatprep.subr.mxu0 0.0
  %2004 = vmatpush1.msra.mxu0 0.0
  %2005 = vmatprep.subr.mxu0 0.0
  %2006 = vmatpush1.msra.mxu0 0.0
  %2007 = vmatprep.subr.mxu0 0.0
  %2008 = vmatpush1.msra.mxu0 0.0
  %2009 = vmatprep.subr.mxu0 0.0
  %2010 = vmatpush1.msra.mxu0 0.0
  %2011 = vmatprep.subr.mxu0 0.0
  %2012 = vmatpush1.msra.mxu0 0.0
  %2013 = vmatprep.subr.mxu0 0.0
  %2014 = vmatpush1.msra.mxu0 0.0
  %2015 = vmatprep.subr.mxu0 0.0
  %2016 = vmatpush1.msra.mxu0 0.0
  %2017 = vmatprep.subr.mxu0 0.0
  %2018 = vmatpush1.msra.mxu0 0.0
  %2019 = vmatprep.subr.mxu0 0.0
  %2020 = vmatpush1.msra.mxu0 0.0
  %2021 = vmatprep.subr.mxu0 0.0
  %2022 = vmatpush1.msra.mxu0 0.0
  %2023 = vmatprep.subr.mxu0 0.0
  %2024 = vmatpush1.msra.mxu0 0.0
  %2025 = vmatprep.subr.mxu0 0.0
  %2026 = vmatpush1.msra.mxu0 0.0
  %2027 = vmatprep.subr.mxu0 0.0
  %2028 = vmatpush1.msra.mxu0 0.0
  %2029 = vmatprep.subr.mxu0 0.0
  %2030 = vmatpush1.msra.mxu0 0.0
  %2031 = vmatprep.subr.mxu0 0.0
  %2032 = vmatpush1.msra.mxu0 0.0
  %2033 = vmatprep.subr.mxu0 0.0
  %2034 = vmatpush1.msra.mxu0 0.0
  %2035 = vmatprep.subr.mxu0 0.0
  %2036 = vmatpush1.msra.mxu0 0.0
  %2037 = vmatprep.subr.mxu0 0.0
  %2038 = vmatpush1.msra.mxu0 0.0
  %2039 = vmatprep.mubr.f32.mxu0 0.0
  %2040 = vmatmul.mubr.f32.gmra.mrb[0].mxu0 %v1973
  %v2041 = vpop.f32.mrb[0].mxu0
  %v2042 = vadd.f32 0.0, %v2041
  %v2043 = vpop.f32.mrb[0].mxu0
  %2044 = vdwg.mxu0
  %v2046 = vsel %vm511, %v427, 0
  %2048 = vmatprep.subr.mxu0 0.0
  %2049 = vmatpush1.msra.mxu0 %v483
  %2050 = vmatprep.subr.mxu0 0.0
  %2051 = vmatpush1.msra.mxu0 %v484
  %2052 = vmatprep.subr.mxu0 0.0
  %2053 = vmatpush1.msra.mxu0 0.0
  %2054 = vmatprep.subr.mxu0 0.0
  %2055 = vmatpush1.msra.mxu0 0.0
  %2056 = vmatprep.subr.mxu0 0.0
  %2057 = vmatpush1.msra.mxu0 0.0
  %2058 = vmatprep.subr.mxu0 0.0
  %2059 = vmatpush1.msra.mxu0 0.0
  %2060 = vmatprep.subr.mxu0 0.0
  %2061 = vmatpush1.msra.mxu0 0.0
  %2062 = vmatprep.subr.mxu0 0.0
  %2063 = vmatpush1.msra.mxu0 0.0
  %2064 = vmatprep.subr.mxu0 0.0
  %2065 = vmatpush1.msra.mxu0 0.0
  %2066 = vmatprep.subr.mxu0 0.0
  %2067 = vmatpush1.msra.mxu0 0.0
  %2068 = vmatprep.subr.mxu0 0.0
  %2069 = vmatpush1.msra.mxu0 0.0
  %2070 = vmatprep.subr.mxu0 0.0
  %2071 = vmatpush1.msra.mxu0 0.0
  %2072 = vmatprep.subr.mxu0 0.0
  %2073 = vmatpush1.msra.mxu0 0.0
  %2074 = vmatprep.subr.mxu0 0.0
  %2075 = vmatpush1.msra.mxu0 0.0
  %2076 = vmatprep.subr.mxu0 0.0
  %2077 = vmatpush1.msra.mxu0 0.0
  %2078 = vmatprep.subr.mxu0 0.0
  %2079 = vmatpush1.msra.mxu0 0.0
  %2080 = vmatprep.subr.mxu0 0.0
  %2081 = vmatpush1.msra.mxu0 0.0
  %2082 = vmatprep.subr.mxu0 0.0
  %2083 = vmatpush1.msra.mxu0 0.0
  %2084 = vmatprep.subr.mxu0 0.0
  %2085 = vmatpush1.msra.mxu0 0.0
  %2086 = vmatprep.subr.mxu0 0.0
  %2087 = vmatpush1.msra.mxu0 0.0
  %2088 = vmatprep.subr.mxu0 0.0
  %2089 = vmatpush1.msra.mxu0 0.0
  %2090 = vmatprep.subr.mxu0 0.0
  %2091 = vmatpush1.msra.mxu0 0.0
  %2092 = vmatprep.subr.mxu0 0.0
  %2093 = vmatpush1.msra.mxu0 0.0
  %2094 = vmatprep.subr.mxu0 0.0
  %2095 = vmatpush1.msra.mxu0 0.0
  %2096 = vmatprep.subr.mxu0 0.0
  %2097 = vmatpush1.msra.mxu0 0.0
  %2098 = vmatprep.subr.mxu0 0.0
  %2099 = vmatpush1.msra.mxu0 0.0
  %2100 = vmatprep.subr.mxu0 0.0
  %2101 = vmatpush1.msra.mxu0 0.0
  %2102 = vmatprep.subr.mxu0 0.0
  %2103 = vmatpush1.msra.mxu0 0.0
  %2104 = vmatprep.subr.mxu0 0.0
  %2105 = vmatpush1.msra.mxu0 0.0
  %2106 = vmatprep.subr.mxu0 0.0
  %2107 = vmatpush1.msra.mxu0 0.0
  %2108 = vmatprep.subr.mxu0 0.0
  %2109 = vmatpush1.msra.mxu0 0.0
  %2110 = vmatprep.subr.mxu0 0.0
  %2111 = vmatpush1.msra.mxu0 0.0
  %2112 = vmatprep.mubr.f32.mxu0 0.0
  %2113 = vmatmul.mubr.f32.gmra.mrb[0].mxu0 %v2046
  %v2114 = vpop.f32.mrb[0].mxu0
  %v2115 = vadd.f32 0.0, %v2114
  %v2116 = vpop.f32.mrb[0].mxu0
  %2117 = vdwg.mxu0
  %v2119 = vsel %vm511, %v428, 0
  %2121 = vmatprep.subr.mxu0 0.0
  %2122 = vmatpush1.msra.mxu0 %v485
  %2123 = vmatprep.subr.mxu0 0.0
  %2124 = vmatpush1.msra.mxu0 %v486
  %2125 = vmatprep.subr.mxu0 0.0
  %2126 = vmatpush1.msra.mxu0 0.0
  %2127 = vmatprep.subr.mxu0 0.0
  %2128 = vmatpush1.msra.mxu0 0.0
  %2129 = vmatprep.subr.mxu0 0.0
  %2130 = vmatpush1.msra.mxu0 0.0
  %2131 = vmatprep.subr.mxu0 0.0
  %2132 = vmatpush1.msra.mxu0 0.0
  %2133 = vmatprep.subr.mxu0 0.0
  %2134 = vmatpush1.msra.mxu0 0.0
  %2135 = vmatprep.subr.mxu0 0.0
  %2136 = vmatpush1.msra.mxu0 0.0
  %2137 = vmatprep.subr.mxu0 0.0
  %2138 = vmatpush1.msra.mxu0 0.0
  %2139 = vmatprep.subr.mxu0 0.0
  %2140 = vmatpush1.msra.mxu0 0.0
  %2141 = vmatprep.subr.mxu0 0.0
  %2142 = vmatpush1.msra.mxu0 0.0
  %2143 = vmatprep.subr.mxu0 0.0
  %2144 = vmatpush1.msra.mxu0 0.0
  %2145 = vmatprep.subr.mxu0 0.0
  %2146 = vmatpush1.msra.mxu0 0.0
  %2147 = vmatprep.subr.mxu0 0.0
  %2148 = vmatpush1.msra.mxu0 0.0
  %2149 = vmatprep.subr.mxu0 0.0
  %2150 = vmatpush1.msra.mxu0 0.0
  %2151 = vmatprep.subr.mxu0 0.0
  %2152 = vmatpush1.msra.mxu0 0.0
  %2153 = vmatprep.subr.mxu0 0.0
  %2154 = vmatpush1.msra.mxu0 0.0
  %2155 = vmatprep.subr.mxu0 0.0
  %2156 = vmatpush1.msra.mxu0 0.0
  %2157 = vmatprep.subr.mxu0 0.0
  %2158 = vmatpush1.msra.mxu0 0.0
  %2159 = vmatprep.subr.mxu0 0.0
  %2160 = vmatpush1.msra.mxu0 0.0
  %2161 = vmatprep.subr.mxu0 0.0
  %2162 = vmatpush1.msra.mxu0 0.0
  %2163 = vmatprep.subr.mxu0 0.0
  %2164 = vmatpush1.msra.mxu0 0.0
  %2165 = vmatprep.subr.mxu0 0.0
  %2166 = vmatpush1.msra.mxu0 0.0
  %2167 = vmatprep.subr.mxu0 0.0
  %2168 = vmatpush1.msra.mxu0 0.0
  %2169 = vmatprep.subr.mxu0 0.0
  %2170 = vmatpush1.msra.mxu0 0.0
  %2171 = vmatprep.subr.mxu0 0.0
  %2172 = vmatpush1.msra.mxu0 0.0
  %2173 = vmatprep.subr.mxu0 0.0
  %2174 = vmatpush1.msra.mxu0 0.0
  %2175 = vmatprep.subr.mxu0 0.0
  %2176 = vmatpush1.msra.mxu0 0.0
  %2177 = vmatprep.subr.mxu0 0.0
  %2178 = vmatpush1.msra.mxu0 0.0
  %2179 = vmatprep.subr.mxu0 0.0
  %2180 = vmatpush1.msra.mxu0 0.0
  %2181 = vmatprep.subr.mxu0 0.0
  %2182 = vmatpush1.msra.mxu0 0.0
  %2183 = vmatprep.subr.mxu0 0.0
  %2184 = vmatpush1.msra.mxu0 0.0
  %2185 = vmatprep.mubr.f32.mxu0 0.0
  %2186 = vmatmul.mubr.f32.gmra.mrb[0].mxu0 %v2119
  %v2187 = vpop.f32.mrb[0].mxu0
  %v2188 = vadd.f32 0.0, %v2187
  %v2189 = vpop.f32.mrb[0].mxu0
  %2190 = vdwg.mxu0
  %v2192 = vsel %vm511, %v429, 0
  %2194 = vmatprep.subr.mxu0 0.0
  %2195 = vmatpush1.msra.mxu0 %v487
  %2196 = vmatprep.subr.mxu0 0.0
  %2197 = vmatpush1.msra.mxu0 %v488
  %2198 = vmatprep.subr.mxu0 0.0
  %2199 = vmatpush1.msra.mxu0 0.0
  %2200 = vmatprep.subr.mxu0 0.0
  %2201 = vmatpush1.msra.mxu0 0.0
  %2202 = vmatprep.subr.mxu0 0.0
  %2203 = vmatpush1.msra.mxu0 0.0
  %2204 = vmatprep.subr.mxu0 0.0
  %2205 = vmatpush1.msra.mxu0 0.0
  %2206 = vmatprep.subr.mxu0 0.0
  %2207 = vmatpush1.msra.mxu0 0.0
  %2208 = vmatprep.subr.mxu0 0.0
  %2209 = vmatpush1.msra.mxu0 0.0
  %2210 = vmatprep.subr.mxu0 0.0
  %2211 = vmatpush1.msra.mxu0 0.0
  %2212 = vmatprep.subr.mxu0 0.0
  %2213 = vmatpush1.msra.mxu0 0.0
  %2214 = vmatprep.subr.mxu0 0.0
  %2215 = vmatpush1.msra.mxu0 0.0
  %2216 = vmatprep.subr.mxu0 0.0
  %2217 = vmatpush1.msra.mxu0 0.0
  %2218 = vmatprep.subr.mxu0 0.0
  %2219 = vmatpush1.msra.mxu0 0.0
  %2220 = vmatprep.subr.mxu0 0.0
  %2221 = vmatpush1.msra.mxu0 0.0
  %2222 = vmatprep.subr.mxu0 0.0
  %2223 = vmatpush1.msra.mxu0 0.0
  %2224 = vmatprep.subr.mxu0 0.0
  %2225 = vmatpush1.msra.mxu0 0.0
  %2226 = vmatprep.subr.mxu0 0.0
  %2227 = vmatpush1.msra.mxu0 0.0
  %2228 = vmatprep.subr.mxu0 0.0
  %2229 = vmatpush1.msra.mxu0 0.0
  %2230 = vmatprep.subr.mxu0 0.0
  %2231 = vmatpush1.msra.mxu0 0.0
  %2232 = vmatprep.subr.mxu0 0.0
  %2233 = vmatpush1.msra.mxu0 0.0
  %2234 = vmatprep.subr.mxu0 0.0
  %2235 = vmatpush1.msra.mxu0 0.0
  %2236 = vmatprep.subr.mxu0 0.0
  %2237 = vmatpush1.msra.mxu0 0.0
  %2238 = vmatprep.subr.mxu0 0.0
  %2239 = vmatpush1.msra.mxu0 0.0
  %2240 = vmatprep.subr.mxu0 0.0
  %2241 = vmatpush1.msra.mxu0 0.0
  %2242 = vmatprep.subr.mxu0 0.0
  %2243 = vmatpush1.msra.mxu0 0.0
  %2244 = vmatprep.subr.mxu0 0.0
  %2245 = vmatpush1.msra.mxu0 0.0
  %2246 = vmatprep.subr.mxu0 0.0
  %2247 = vmatpush1.msra.mxu0 0.0
  %2248 = vmatprep.subr.mxu0 0.0
  %2249 = vmatpush1.msra.mxu0 0.0
  %2250 = vmatprep.subr.mxu0 0.0
  %2251 = vmatpush1.msra.mxu0 0.0
  %2252 = vmatprep.subr.mxu0 0.0
  %2253 = vmatpush1.msra.mxu0 0.0
  %2254 = vmatprep.subr.mxu0 0.0
  %2255 = vmatpush1.msra.mxu0 0.0
  %2256 = vmatprep.subr.mxu0 0.0
  %2257 = vmatpush1.msra.mxu0 0.0
  %2258 = vmatprep.mubr.f32.mxu0 0.0
  %2259 = vmatmul.mubr.f32.gmra.mrb[0].mxu0 %v2192
  %v2260 = vpop.f32.mrb[0].mxu0
  %v2261 = vadd.f32 0.0, %v2260
  %v2262 = vpop.f32.mrb[0].mxu0
  %2263 = vdwg.mxu0
  %v2265 = vsel %vm511, %v430, 0
  %2267 = vmatprep.subr.mxu0 0.0
  %2268 = vmatpush1.msra.mxu0 %v489
  %2269 = vmatprep.subr.mxu0 0.0
  %2270 = vmatpush1.msra.mxu0 %v490
  %2271 = vmatprep.subr.mxu0 0.0
  %2272 = vmatpush1.msra.mxu0 0.0
  %2273 = vmatprep.subr.mxu0 0.0
  %2274 = vmatpush1.msra.mxu0 0.0
  %2275 = vmatprep.subr.mxu0 0.0
  %2276 = vmatpush1.msra.mxu0 0.0
  %2277 = vmatprep.subr.mxu0 0.0
  %2278 = vmatpush1.msra.mxu0 0.0
  %2279 = vmatprep.subr.mxu0 0.0
  %2280 = vmatpush1.msra.mxu0 0.0
  %2281 = vmatprep.subr.mxu0 0.0
  %2282 = vmatpush1.msra.mxu0 0.0
  %2283 = vmatprep.subr.mxu0 0.0
  %2284 = vmatpush1.msra.mxu0 0.0
  %2285 = vmatprep.subr.mxu0 0.0
  %2286 = vmatpush1.msra.mxu0 0.0
  %2287 = vmatprep.subr.mxu0 0.0
  %2288 = vmatpush1.msra.mxu0 0.0
  %2289 = vmatprep.subr.mxu0 0.0
  %2290 = vmatpush1.msra.mxu0 0.0
  %2291 = vmatprep.subr.mxu0 0.0
  %2292 = vmatpush1.msra.mxu0 0.0
  %2293 = vmatprep.subr.mxu0 0.0
  %2294 = vmatpush1.msra.mxu0 0.0
  %2295 = vmatprep.subr.mxu0 0.0
  %2296 = vmatpush1.msra.mxu0 0.0
  %2297 = vmatprep.subr.mxu0 0.0
  %2298 = vmatpush1.msra.mxu0 0.0
  %2299 = vmatprep.subr.mxu0 0.0
  %2300 = vmatpush1.msra.mxu0 0.0
  %2301 = vmatprep.subr.mxu0 0.0
  %2302 = vmatpush1.msra.mxu0 0.0
  %2303 = vmatprep.subr.mxu0 0.0
  %2304 = vmatpush1.msra.mxu0 0.0
  %2305 = vmatprep.subr.mxu0 0.0
  %2306 = vmatpush1.msra.mxu0 0.0
  %2307 = vmatprep.subr.mxu0 0.0
  %2308 = vmatpush1.msra.mxu0 0.0
  %2309 = vmatprep.subr.mxu0 0.0
  %2310 = vmatpush1.msra.mxu0 0.0
  %2311 = vmatprep.subr.mxu0 0.0
  %2312 = vmatpush1.msra.mxu0 0.0
  %2313 = vmatprep.subr.mxu0 0.0
  %2314 = vmatpush1.msra.mxu0 0.0
  %2315 = vmatprep.subr.mxu0 0.0
  %2316 = vmatpush1.msra.mxu0 0.0
  %2317 = vmatprep.subr.mxu0 0.0
  %2318 = vmatpush1.msra.mxu0 0.0
  %2319 = vmatprep.subr.mxu0 0.0
  %2320 = vmatpush1.msra.mxu0 0.0
  %2321 = vmatprep.subr.mxu0 0.0
  %2322 = vmatpush1.msra.mxu0 0.0
  %2323 = vmatprep.subr.mxu0 0.0
  %2324 = vmatpush1.msra.mxu0 0.0
  %2325 = vmatprep.subr.mxu0 0.0
  %2326 = vmatpush1.msra.mxu0 0.0
  %2327 = vmatprep.subr.mxu0 0.0
  %2328 = vmatpush1.msra.mxu0 0.0
  %2329 = vmatprep.subr.mxu0 0.0
  %2330 = vmatpush1.msra.mxu0 0.0
  %2331 = vmatprep.mubr.f32.mxu0 0.0
  %2332 = vmatmul.mubr.f32.gmra.mrb[0].mxu0 %v2265
  %v2333 = vpop.f32.mrb[0].mxu0
  %v2334 = vadd.f32 0.0, %v2333
  %v2335 = vpop.f32.mrb[0].mxu0
  %2336 = vdwg.mxu0
  %v2338 = vsel %vm511, %v431, 0
  %2340 = vmatprep.subr.mxu0 0.0
  %2341 = vmatpush1.msra.mxu0 %v491
  %2342 = vmatprep.subr.mxu0 0.0
  %2343 = vmatpush1.msra.mxu0 %v492
  %2344 = vmatprep.subr.mxu0 0.0
  %2345 = vmatpush1.msra.mxu0 0.0
  %2346 = vmatprep.subr.mxu0 0.0
  %2347 = vmatpush1.msra.mxu0 0.0
  %2348 = vmatprep.subr.mxu0 0.0
  %2349 = vmatpush1.msra.mxu0 0.0
  %2350 = vmatprep.subr.mxu0 0.0
  %2351 = vmatpush1.msra.mxu0 0.0
  %2352 = vmatprep.subr.mxu0 0.0
  %2353 = vmatpush1.msra.mxu0 0.0
  %2354 = vmatprep.subr.mxu0 0.0
  %2355 = vmatpush1.msra.mxu0 0.0
  %2356 = vmatprep.subr.mxu0 0.0
  %2357 = vmatpush1.msra.mxu0 0.0
  %2358 = vmatprep.subr.mxu0 0.0
  %2359 = vmatpush1.msra.mxu0 0.0
  %2360 = vmatprep.subr.mxu0 0.0
  %2361 = vmatpush1.msra.mxu0 0.0
  %2362 = vmatprep.subr.mxu0 0.0
  %2363 = vmatpush1.msra.mxu0 0.0
  %2364 = vmatprep.subr.mxu0 0.0
  %2365 = vmatpush1.msra.mxu0 0.0
  %2366 = vmatprep.subr.mxu0 0.0
  %2367 = vmatpush1.msra.mxu0 0.0
  %2368 = vmatprep.subr.mxu0 0.0
  %2369 = vmatpush1.msra.mxu0 0.0
  %2370 = vmatprep.subr.mxu0 0.0
  %2371 = vmatpush1.msra.mxu0 0.0
  %2372 = vmatprep.subr.mxu0 0.0
  %2373 = vmatpush1.msra.mxu0 0.0
  %2374 = vmatprep.subr.mxu0 0.0
  %2375 = vmatpush1.msra.mxu0 0.0
  %2376 = vmatprep.subr.mxu0 0.0
  %2377 = vmatpush1.msra.mxu0 0.0
  %2378 = vmatprep.subr.mxu0 0.0
  %2379 = vmatpush1.msra.mxu0 0.0
  %2380 = vmatprep.subr.mxu0 0.0
  %2381 = vmatpush1.msra.mxu0 0.0
  %2382 = vmatprep.subr.mxu0 0.0
  %2383 = vmatpush1.msra.mxu0 0.0
  %2384 = vmatprep.subr.mxu0 0.0
  %2385 = vmatpush1.msra.mxu0 0.0
  %2386 = vmatprep.subr.mxu0 0.0
  %2387 = vmatpush1.msra.mxu0 0.0
  %2388 = vmatprep.subr.mxu0 0.0
  %2389 = vmatpush1.msra.mxu0 0.0
  %2390 = vmatprep.subr.mxu0 0.0
  %2391 = vmatpush1.msra.mxu0 0.0
  %2392 = vmatprep.subr.mxu0 0.0
  %2393 = vmatpush1.msra.mxu0 0.0
  %2394 = vmatprep.subr.mxu0 0.0
  %2395 = vmatpush1.msra.mxu0 0.0
  %2396 = vmatprep.subr.mxu0 0.0
  %2397 = vmatpush1.msra.mxu0 0.0
  %2398 = vmatprep.subr.mxu0 0.0
  %2399 = vmatpush1.msra.mxu0 0.0
  %2400 = vmatprep.subr.mxu0 0.0
  %2401 = vmatpush1.msra.mxu0 0.0
  %2402 = vmatprep.subr.mxu0 0.0
  %2403 = vmatpush1.msra.mxu0 0.0
  %2404 = vmatprep.mubr.f32.mxu0 0.0
  %2405 = vmatmul.mubr.f32.gmra.mrb[0].mxu0 %v2338
  %v2406 = vpop.f32.mrb[0].mxu0
  %v2407 = vadd.f32 0.0, %v2406
  %v2408 = vpop.f32.mrb[0].mxu0
  %2409 = vdwg.mxu0
  %v2411 = vsel %vm511, %v432, 0
  %2413 = vmatprep.subr.mxu0 0.0
  %2414 = vmatpush1.msra.mxu0 %v493
  %2415 = vmatprep.subr.mxu0 0.0
  %2416 = vmatpush1.msra.mxu0 %v494
  %2417 = vmatprep.subr.mxu0 0.0
  %2418 = vmatpush1.msra.mxu0 0.0
  %2419 = vmatprep.subr.mxu0 0.0
  %2420 = vmatpush1.msra.mxu0 0.0
  %2421 = vmatprep.subr.mxu0 0.0
  %2422 = vmatpush1.msra.mxu0 0.0
  %2423 = vmatprep.subr.mxu0 0.0
  %2424 = vmatpush1.msra.mxu0 0.0
  %2425 = vmatprep.subr.mxu0 0.0
  %2426 = vmatpush1.msra.mxu0 0.0
  %2427 = vmatprep.subr.mxu0 0.0
  %2428 = vmatpush1.msra.mxu0 0.0
  %2429 = vmatprep.subr.mxu0 0.0
  %2430 = vmatpush1.msra.mxu0 0.0
  %2431 = vmatprep.subr.mxu0 0.0
  %2432 = vmatpush1.msra.mxu0 0.0
  %2433 = vmatprep.subr.mxu0 0.0
  %2434 = vmatpush1.msra.mxu0 0.0
  %2435 = vmatprep.subr.mxu0 0.0
  %2436 = vmatpush1.msra.mxu0 0.0
  %2437 = vmatprep.subr.mxu0 0.0
  %2438 = vmatpush1.msra.mxu0 0.0
  %2439 = vmatprep.subr.mxu0 0.0
  %2440 = vmatpush1.msra.mxu0 0.0
  %2441 = vmatprep.subr.mxu0 0.0
  %2442 = vmatpush1.msra.mxu0 0.0
  %2443 = vmatprep.subr.mxu0 0.0
  %2444 = vmatpush1.msra.mxu0 0.0
  %2445 = vmatprep.subr.mxu0 0.0
  %2446 = vmatpush1.msra.mxu0 0.0
  %2447 = vmatprep.subr.mxu0 0.0
  %2448 = vmatpush1.msra.mxu0 0.0
  %2449 = vmatprep.subr.mxu0 0.0
  %2450 = vmatpush1.msra.mxu0 0.0
  %2451 = vmatprep.subr.mxu0 0.0
  %2452 = vmatpush1.msra.mxu0 0.0
  %2453 = vmatprep.subr.mxu0 0.0
  %2454 = vmatpush1.msra.mxu0 0.0
  %2455 = vmatprep.subr.mxu0 0.0
  %2456 = vmatpush1.msra.mxu0 0.0
  %2457 = vmatprep.subr.mxu0 0.0
  %2458 = vmatpush1.msra.mxu0 0.0
  %2459 = vmatprep.subr.mxu0 0.0
  %2460 = vmatpush1.msra.mxu0 0.0
  %2461 = vmatprep.subr.mxu0 0.0
  %2462 = vmatpush1.msra.mxu0 0.0
  %2463 = vmatprep.subr.mxu0 0.0
  %2464 = vmatpush1.msra.mxu0 0.0
  %2465 = vmatprep.subr.mxu0 0.0
  %2466 = vmatpush1.msra.mxu0 0.0
  %2467 = vmatprep.subr.mxu0 0.0
  %2468 = vmatpush1.msra.mxu0 0.0
  %2469 = vmatprep.subr.mxu0 0.0
  %2470 = vmatpush1.msra.mxu0 0.0
  %2471 = vmatprep.subr.mxu0 0.0
  %2472 = vmatpush1.msra.mxu0 0.0
  %2473 = vmatprep.subr.mxu0 0.0
  %2474 = vmatpush1.msra.mxu0 0.0
  %2475 = vmatprep.subr.mxu0 0.0
  %2476 = vmatpush1.msra.mxu0 0.0
  %2477 = vmatprep.mubr.f32.mxu0 0.0
  %2478 = vmatmul.mubr.f32.gmra.mrb[0].mxu0 %v2411
  %v2479 = vpop.f32.mrb[0].mxu0
  %v2480 = vadd.f32 0.0, %v2479
  %v2481 = vpop.f32.mrb[0].mxu0
  %2482 = vdwg.mxu0
  %v2484 = vsel %vm511, %v433, 0
  %2486 = vmatprep.subr.mxu0 0.0
  %2487 = vmatpush1.msra.mxu0 %v495
  %2488 = vmatprep.subr.mxu0 0.0
  %2489 = vmatpush1.msra.mxu0 %v496
  %2490 = vmatprep.subr.mxu0 0.0
  %2491 = vmatpush1.msra.mxu0 0.0
  %2492 = vmatprep.subr.mxu0 0.0
  %2493 = vmatpush1.msra.mxu0 0.0
  %2494 = vmatprep.subr.mxu0 0.0
  %2495 = vmatpush1.msra.mxu0 0.0
  %2496 = vmatprep.subr.mxu0 0.0
  %2497 = vmatpush1.msra.mxu0 0.0
  %2498 = vmatprep.subr.mxu0 0.0
  %2499 = vmatpush1.msra.mxu0 0.0
  %2500 = vmatprep.subr.mxu0 0.0
  %2501 = vmatpush1.msra.mxu0 0.0
  %2502 = vmatprep.subr.mxu0 0.0
  %2503 = vmatpush1.msra.mxu0 0.0
  %2504 = vmatprep.subr.mxu0 0.0
  %2505 = vmatpush1.msra.mxu0 0.0
  %2506 = vmatprep.subr.mxu0 0.0
  %2507 = vmatpush1.msra.mxu0 0.0
  %2508 = vmatprep.subr.mxu0 0.0
  %2509 = vmatpush1.msra.mxu0 0.0
  %2510 = vmatprep.subr.mxu0 0.0
  %2511 = vmatpush1.msra.mxu0 0.0
  %2512 = vmatprep.subr.mxu0 0.0
  %2513 = vmatpush1.msra.mxu0 0.0
  %2514 = vmatprep.subr.mxu0 0.0
  %2515 = vmatpush1.msra.mxu0 0.0
  %2516 = vmatprep.subr.mxu0 0.0
  %2517 = vmatpush1.msra.mxu0 0.0
  %2518 = vmatprep.subr.mxu0 0.0
  %2519 = vmatpush1.msra.mxu0 0.0
  %2520 = vmatprep.subr.mxu0 0.0
  %2521 = vmatpush1.msra.mxu0 0.0
  %2522 = vmatprep.subr.mxu0 0.0
  %2523 = vmatpush1.msra.mxu0 0.0
  %2524 = vmatprep.subr.mxu0 0.0
  %2525 = vmatpush1.msra.mxu0 0.0
  %2526 = vmatprep.subr.mxu0 0.0
  %2527 = vmatpush1.msra.mxu0 0.0
  %2528 = vmatprep.subr.mxu0 0.0
  %2529 = vmatpush1.msra.mxu0 0.0
  %2530 = vmatprep.subr.mxu0 0.0
  %2531 = vmatpush1.msra.mxu0 0.0
  %2532 = vmatprep.subr.mxu0 0.0
  %2533 = vmatpush1.msra.mxu0 0.0
  %2534 = vmatprep.subr.mxu0 0.0
  %2535 = vmatpush1.msra.mxu0 0.0
  %2536 = vmatprep.subr.mxu0 0.0
  %2537 = vmatpush1.msra.mxu0 0.0
  %2538 = vmatprep.subr.mxu0 0.0
  %2539 = vmatpush1.msra.mxu0 0.0
  %2540 = vmatprep.subr.mxu0 0.0
  %2541 = vmatpush1.msra.mxu0 0.0
  %2542 = vmatprep.subr.mxu0 0.0
  %2543 = vmatpush1.msra.mxu0 0.0
  %2544 = vmatprep.subr.mxu0 0.0
  %2545 = vmatpush1.msra.mxu0 0.0
  %2546 = vmatprep.subr.mxu0 0.0
  %2547 = vmatpush1.msra.mxu0 0.0
  %2548 = vmatprep.subr.mxu0 0.0
  %2549 = vmatpush1.msra.mxu0 0.0
  %2550 = vmatprep.mubr.f32.mxu0 0.0
  %2551 = vmatmul.mubr.f32.gmra.mrb[0].mxu0 %v2484
  %v2552 = vpop.f32.mrb[0].mxu0
  %v2553 = vadd.f32 0.0, %v2552
  %v2554 = vpop.f32.mrb[0].mxu0
  %2555 = vdwg.mxu0
  %v2557 = vsel %vm511, %v434, 0
  %2559 = vmatprep.subr.mxu0 0.0
  %2560 = vmatpush1.msra.mxu0 %v497
  %2561 = vmatprep.subr.mxu0 0.0
  %2562 = vmatpush1.msra.mxu0 %v498
  %2563 = vmatprep.subr.mxu0 0.0
  %2564 = vmatpush1.msra.mxu0 0.0
  %2565 = vmatprep.subr.mxu0 0.0
  %2566 = vmatpush1.msra.mxu0 0.0
  %2567 = vmatprep.subr.mxu0 0.0
  %2568 = vmatpush1.msra.mxu0 0.0
  %2569 = vmatprep.subr.mxu0 0.0
  %2570 = vmatpush1.msra.mxu0 0.0
  %2571 = vmatprep.subr.mxu0 0.0
  %2572 = vmatpush1.msra.mxu0 0.0
  %2573 = vmatprep.subr.mxu0 0.0
  %2574 = vmatpush1.msra.mxu0 0.0
  %2575 = vmatprep.subr.mxu0 0.0
  %2576 = vmatpush1.msra.mxu0 0.0
  %2577 = vmatprep.subr.mxu0 0.0
  %2578 = vmatpush1.msra.mxu0 0.0
  %2579 = vmatprep.subr.mxu0 0.0
  %2580 = vmatpush1.msra.mxu0 0.0
  %2581 = vmatprep.subr.mxu0 0.0
  %2582 = vmatpush1.msra.mxu0 0.0
  %2583 = vmatprep.subr.mxu0 0.0
  %2584 = vmatpush1.msra.mxu0 0.0
  %2585 = vmatprep.subr.mxu0 0.0
  %2586 = vmatpush1.msra.mxu0 0.0
  %2587 = vmatprep.subr.mxu0 0.0
  %2588 = vmatpush1.msra.mxu0 0.0
  %2589 = vmatprep.subr.mxu0 0.0
  %2590 = vmatpush1.msra.mxu0 0.0
  %2591 = vmatprep.subr.mxu0 0.0
  %2592 = vmatpush1.msra.mxu0 0.0
  %2593 = vmatprep.subr.mxu0 0.0
  %2594 = vmatpush1.msra.mxu0 0.0
  %2595 = vmatprep.subr.mxu0 0.0
  %2596 = vmatpush1.msra.mxu0 0.0
  %2597 = vmatprep.subr.mxu0 0.0
  %2598 = vmatpush1.msra.mxu0 0.0
  %2599 = vmatprep.subr.mxu0 0.0
  %2600 = vmatpush1.msra.mxu0 0.0
  %2601 = vmatprep.subr.mxu0 0.0
  %2602 = vmatpush1.msra.mxu0 0.0
  %2603 = vmatprep.subr.mxu0 0.0
  %2604 = vmatpush1.msra.mxu0 0.0
  %2605 = vmatprep.subr.mxu0 0.0
  %2606 = vmatpush1.msra.mxu0 0.0
  %2607 = vmatprep.subr.mxu0 0.0
  %2608 = vmatpush1.msra.mxu0 0.0
  %2609 = vmatprep.subr.mxu0 0.0
  %2610 = vmatpush1.msra.mxu0 0.0
  %2611 = vmatprep.subr.mxu0 0.0
  %2612 = vmatpush1.msra.mxu0 0.0
  %2613 = vmatprep.subr.mxu0 0.0
  %2614 = vmatpush1.msra.mxu0 0.0
  %2615 = vmatprep.subr.mxu0 0.0
  %2616 = vmatpush1.msra.mxu0 0.0
  %2617 = vmatprep.subr.mxu0 0.0
  %2618 = vmatpush1.msra.mxu0 0.0
  %2619 = vmatprep.subr.mxu0 0.0
  %2620 = vmatpush1.msra.mxu0 0.0
  %2621 = vmatprep.subr.mxu0 0.0
  %2622 = vmatpush1.msra.mxu0 0.0
  %2623 = vmatprep.mubr.f32.mxu0 0.0
  %2624 = vmatmul.mubr.f32.gmra.mrb[0].mxu0 %v2557
  %v2625 = vpop.f32.mrb[0].mxu0
  %v2626 = vadd.f32 0.0, %v2625
  %v2627 = vpop.f32.mrb[0].mxu0
  %2628 = vdwg.mxu0
  %v2630 = vsel %vm511, %v435, 0
  %2632 = vmatprep.subr.mxu0 0.0
  %2633 = vmatpush1.msra.mxu0 %v499
  %2634 = vmatprep.subr.mxu0 0.0
  %2635 = vmatpush1.msra.mxu0 %v500
  %2636 = vmatprep.subr.mxu0 0.0
  %2637 = vmatpush1.msra.mxu0 0.0
  %2638 = vmatprep.subr.mxu0 0.0
  %2639 = vmatpush1.msra.mxu0 0.0
  %2640 = vmatprep.subr.mxu0 0.0
  %2641 = vmatpush1.msra.mxu0 0.0
  %2642 = vmatprep.subr.mxu0 0.0
  %2643 = vmatpush1.msra.mxu0 0.0
  %2644 = vmatprep.subr.mxu0 0.0
  %2645 = vmatpush1.msra.mxu0 0.0
  %2646 = vmatprep.subr.mxu0 0.0
  %2647 = vmatpush1.msra.mxu0 0.0
  %2648 = vmatprep.subr.mxu0 0.0
  %2649 = vmatpush1.msra.mxu0 0.0
  %2650 = vmatprep.subr.mxu0 0.0
  %2651 = vmatpush1.msra.mxu0 0.0
  %2652 = vmatprep.subr.mxu0 0.0
  %2653 = vmatpush1.msra.mxu0 0.0
  %2654 = vmatprep.subr.mxu0 0.0
  %2655 = vmatpush1.msra.mxu0 0.0
  %2656 = vmatprep.subr.mxu0 0.0
  %2657 = vmatpush1.msra.mxu0 0.0
  %2658 = vmatprep.subr.mxu0 0.0
  %2659 = vmatpush1.msra.mxu0 0.0
  %2660 = vmatprep.subr.mxu0 0.0
  %2661 = vmatpush1.msra.mxu0 0.0
  %2662 = vmatprep.subr.mxu0 0.0
  %2663 = vmatpush1.msra.mxu0 0.0
  %2664 = vmatprep.subr.mxu0 0.0
  %2665 = vmatpush1.msra.mxu0 0.0
  %2666 = vmatprep.subr.mxu0 0.0
  %2667 = vmatpush1.msra.mxu0 0.0
  %2668 = vmatprep.subr.mxu0 0.0
  %2669 = vmatpush1.msra.mxu0 0.0
  %2670 = vmatprep.subr.mxu0 0.0
  %2671 = vmatpush1.msra.mxu0 0.0
  %2672 = vmatprep.subr.mxu0 0.0
  %2673 = vmatpush1.msra.mxu0 0.0
  %2674 = vmatprep.subr.mxu0 0.0
  %2675 = vmatpush1.msra.mxu0 0.0
  %2676 = vmatprep.subr.mxu0 0.0
  %2677 = vmatpush1.msra.mxu0 0.0
  %2678 = vmatprep.subr.mxu0 0.0
  %2679 = vmatpush1.msra.mxu0 0.0
  %2680 = vmatprep.subr.mxu0 0.0
  %2681 = vmatpush1.msra.mxu0 0.0
  %2682 = vmatprep.subr.mxu0 0.0
  %2683 = vmatpush1.msra.mxu0 0.0
  %2684 = vmatprep.subr.mxu0 0.0
  %2685 = vmatpush1.msra.mxu0 0.0
  %2686 = vmatprep.subr.mxu0 0.0
  %2687 = vmatpush1.msra.mxu0 0.0
  %2688 = vmatprep.subr.mxu0 0.0
  %2689 = vmatpush1.msra.mxu0 0.0
  %2690 = vmatprep.subr.mxu0 0.0
  %2691 = vmatpush1.msra.mxu0 0.0
  %2692 = vmatprep.subr.mxu0 0.0
  %2693 = vmatpush1.msra.mxu0 0.0
  %2694 = vmatprep.subr.mxu0 0.0
  %2695 = vmatpush1.msra.mxu0 0.0
  %2696 = vmatprep.mubr.f32.mxu0 0.0
  %2697 = vmatmul.mubr.f32.gmra.mrb[0].mxu0 %v2630
  %v2698 = vpop.f32.mrb[0].mxu0
  %v2699 = vadd.f32 0.0, %v2698
  %v2700 = vpop.f32.mrb[0].mxu0
  %2701 = vdwg.mxu0
  %v2703 = vsel %vm511, %v436, 0
  %2705 = vmatprep.subr.mxu0 0.0
  %2706 = vmatpush1.msra.mxu0 %v501
  %2707 = vmatprep.subr.mxu0 0.0
  %2708 = vmatpush1.msra.mxu0 %v502
  %2709 = vmatprep.subr.mxu0 0.0
  %2710 = vmatpush1.msra.mxu0 0.0
  %2711 = vmatprep.subr.mxu0 0.0
  %2712 = vmatpush1.msra.mxu0 0.0
  %2713 = vmatprep.subr.mxu0 0.0
  %2714 = vmatpush1.msra.mxu0 0.0
  %2715 = vmatprep.subr.mxu0 0.0
  %2716 = vmatpush1.msra.mxu0 0.0
  %2717 = vmatprep.subr.mxu0 0.0
  %2718 = vmatpush1.msra.mxu0 0.0
  %2719 = vmatprep.subr.mxu0 0.0
  %2720 = vmatpush1.msra.mxu0 0.0
  %2721 = vmatprep.subr.mxu0 0.0
  %2722 = vmatpush1.msra.mxu0 0.0
  %2723 = vmatprep.subr.mxu0 0.0
  %2724 = vmatpush1.msra.mxu0 0.0
  %2725 = vmatprep.subr.mxu0 0.0
  %2726 = vmatpush1.msra.mxu0 0.0
  %2727 = vmatprep.subr.mxu0 0.0
  %2728 = vmatpush1.msra.mxu0 0.0
  %2729 = vmatprep.subr.mxu0 0.0
  %2730 = vmatpush1.msra.mxu0 0.0
  %2731 = vmatprep.subr.mxu0 0.0
  %2732 = vmatpush1.msra.mxu0 0.0
  %2733 = vmatprep.subr.mxu0 0.0
  %2734 = vmatpush1.msra.mxu0 0.0
  %2735 = vmatprep.subr.mxu0 0.0
  %2736 = vmatpush1.msra.mxu0 0.0
  %2737 = vmatprep.subr.mxu0 0.0
  %2738 = vmatpush1.msra.mxu0 0.0
  %2739 = vmatprep.subr.mxu0 0.0
  %2740 = vmatpush1.msra.mxu0 0.0
  %2741 = vmatprep.subr.mxu0 0.0
  %2742 = vmatpush1.msra.mxu0 0.0
  %2743 = vmatprep.subr.mxu0 0.0
  %2744 = vmatpush1.msra.mxu0 0.0
  %2745 = vmatprep.subr.mxu0 0.0
  %2746 = vmatpush1.msra.mxu0 0.0
  %2747 = vmatprep.subr.mxu0 0.0
  %2748 = vmatpush1.msra.mxu0 0.0
  %2749 = vmatprep.subr.mxu0 0.0
  %2750 = vmatpush1.msra.mxu0 0.0
  %2751 = vmatprep.subr.mxu0 0.0
  %2752 = vmatpush1.msra.mxu0 0.0
  %2753 = vmatprep.subr.mxu0 0.0
  %2754 = vmatpush1.msra.mxu0 0.0
  %2755 = vmatprep.subr.mxu0 0.0
  %2756 = vmatpush1.msra.mxu0 0.0
  %2757 = vmatprep.subr.mxu0 0.0
  %2758 = vmatpush1.msra.mxu0 0.0
  %2759 = vmatprep.subr.mxu0 0.0
  %2760 = vmatpush1.msra.mxu0 0.0
  %2761 = vmatprep.subr.mxu0 0.0
  %2762 = vmatpush1.msra.mxu0 0.0
  %2763 = vmatprep.subr.mxu0 0.0
  %2764 = vmatpush1.msra.mxu0 0.0
  %2765 = vmatprep.subr.mxu0 0.0
  %2766 = vmatpush1.msra.mxu0 0.0
  %2767 = vmatprep.subr.mxu0 0.0
  %2768 = vmatpush1.msra.mxu0 0.0
  %2769 = vmatprep.mubr.f32.mxu0 0.0
  %2770 = vmatmul.mubr.f32.gmra.mrb[0].mxu0 %v2703
  %v2771 = vpop.f32.mrb[0].mxu0
  %v2772 = vadd.f32 0.0, %v2771
  %v2773 = vpop.f32.mrb[0].mxu0
  %2774 = vdwg.mxu0
  %v2776 = vsel %vm511, %v437, 0
  %2778 = vmatprep.subr.mxu0 0.0
  %2779 = vmatpush1.msra.mxu0 %v503
  %2780 = vmatprep.subr.mxu0 0.0
  %2781 = vmatpush1.msra.mxu0 %v504
  %2782 = vmatprep.subr.mxu0 0.0
  %2783 = vmatpush1.msra.mxu0 0.0
  %2784 = vmatprep.subr.mxu0 0.0
  %2785 = vmatpush1.msra.mxu0 0.0
  %2786 = vmatprep.subr.mxu0 0.0
  %2787 = vmatpush1.msra.mxu0 0.0
  %2788 = vmatprep.subr.mxu0 0.0
  %2789 = vmatpush1.msra.mxu0 0.0
  %2790 = vmatprep.subr.mxu0 0.0
  %2791 = vmatpush1.msra.mxu0 0.0
  %2792 = vmatprep.subr.mxu0 0.0
  %2793 = vmatpush1.msra.mxu0 0.0
  %2794 = vmatprep.subr.mxu0 0.0
  %2795 = vmatpush1.msra.mxu0 0.0
  %2796 = vmatprep.subr.mxu0 0.0
  %2797 = vmatpush1.msra.mxu0 0.0
  %2798 = vmatprep.subr.mxu0 0.0
  %2799 = vmatpush1.msra.mxu0 0.0
  %2800 = vmatprep.subr.mxu0 0.0
  %2801 = vmatpush1.msra.mxu0 0.0
  %2802 = vmatprep.subr.mxu0 0.0
  %2803 = vmatpush1.msra.mxu0 0.0
  %2804 = vmatprep.subr.mxu0 0.0
  %2805 = vmatpush1.msra.mxu0 0.0
  %2806 = vmatprep.subr.mxu0 0.0
  %2807 = vmatpush1.msra.mxu0 0.0
  %2808 = vmatprep.subr.mxu0 0.0
  %2809 = vmatpush1.msra.mxu0 0.0
  %2810 = vmatprep.subr.mxu0 0.0
  %2811 = vmatpush1.msra.mxu0 0.0
  %2812 = vmatprep.subr.mxu0 0.0
  %2813 = vmatpush1.msra.mxu0 0.0
  %2814 = vmatprep.subr.mxu0 0.0
  %2815 = vmatpush1.msra.mxu0 0.0
  %2816 = vmatprep.subr.mxu0 0.0
  %2817 = vmatpush1.msra.mxu0 0.0
  %2818 = vmatprep.subr.mxu0 0.0
  %2819 = vmatpush1.msra.mxu0 0.0
  %2820 = vmatprep.subr.mxu0 0.0
  %2821 = vmatpush1.msra.mxu0 0.0
  %2822 = vmatprep.subr.mxu0 0.0
  %2823 = vmatpush1.msra.mxu0 0.0
  %2824 = vmatprep.subr.mxu0 0.0
  %2825 = vmatpush1.msra.mxu0 0.0
  %2826 = vmatprep.subr.mxu0 0.0
  %2827 = vmatpush1.msra.mxu0 0.0
  %2828 = vmatprep.subr.mxu0 0.0
  %2829 = vmatpush1.msra.mxu0 0.0
  %2830 = vmatprep.subr.mxu0 0.0
  %2831 = vmatpush1.msra.mxu0 0.0
  %2832 = vmatprep.subr.mxu0 0.0
  %2833 = vmatpush1.msra.mxu0 0.0
  %2834 = vmatprep.subr.mxu0 0.0
  %2835 = vmatpush1.msra.mxu0 0.0
  %2836 = vmatprep.subr.mxu0 0.0
  %2837 = vmatpush1.msra.mxu0 0.0
  %2838 = vmatprep.subr.mxu0 0.0
  %2839 = vmatpush1.msra.mxu0 0.0
  %2840 = vmatprep.subr.mxu0 0.0
  %2841 = vmatpush1.msra.mxu0 0.0
  %2842 = vmatprep.mubr.f32.mxu0 0.0
  %2843 = vmatmul.mubr.f32.gmra.mrb[0].mxu0 %v2776
  %v2844 = vpop.f32.mrb[0].mxu0
  %v2845 = vadd.f32 0.0, %v2844
  %v2846 = vpop.f32.mrb[0].mxu0
  %2847 = vdwg.mxu0
  %v2849 = vsel %vm511, %v438, 0
  %2851 = vmatprep.subr.mxu0 0.0
  %2852 = vmatpush1.msra.mxu0 %v505
  %2853 = vmatprep.subr.mxu0 0.0
  %2854 = vmatpush1.msra.mxu0 %v506
  %2855 = vmatprep.subr.mxu0 0.0
  %2856 = vmatpush1.msra.mxu0 0.0
  %2857 = vmatprep.subr.mxu0 0.0
  %2858 = vmatpush1.msra.mxu0 0.0
  %2859 = vmatprep.subr.mxu0 0.0
  %2860 = vmatpush1.msra.mxu0 0.0
  %2861 = vmatprep.subr.mxu0 0.0
  %2862 = vmatpush1.msra.mxu0 0.0
  %2863 = vmatprep.subr.mxu0 0.0
  %2864 = vmatpush1.msra.mxu0 0.0
  %2865 = vmatprep.subr.mxu0 0.0
  %2866 = vmatpush1.msra.mxu0 0.0
  %2867 = vmatprep.subr.mxu0 0.0
  %2868 = vmatpush1.msra.mxu0 0.0
  %2869 = vmatprep.subr.mxu0 0.0
  %2870 = vmatpush1.msra.mxu0 0.0
  %2871 = vmatprep.subr.mxu0 0.0
  %2872 = vmatpush1.msra.mxu0 0.0
  %2873 = vmatprep.subr.mxu0 0.0
  %2874 = vmatpush1.msra.mxu0 0.0
  %2875 = vmatprep.subr.mxu0 0.0
  %2876 = vmatpush1.msra.mxu0 0.0
  %2877 = vmatprep.subr.mxu0 0.0
  %2878 = vmatpush1.msra.mxu0 0.0
  %2879 = vmatprep.subr.mxu0 0.0
  %2880 = vmatpush1.msra.mxu0 0.0
  %2881 = vmatprep.subr.mxu0 0.0
  %2882 = vmatpush1.msra.mxu0 0.0
  %2883 = vmatprep.subr.mxu0 0.0
  %2884 = vmatpush1.msra.mxu0 0.0
  %2885 = vmatprep.subr.mxu0 0.0
  %2886 = vmatpush1.msra.mxu0 0.0
  %2887 = vmatprep.subr.mxu0 0.0
  %2888 = vmatpush1.msra.mxu0 0.0
  %2889 = vmatprep.subr.mxu0 0.0
  %2890 = vmatpush1.msra.mxu0 0.0
  %2891 = vmatprep.subr.mxu0 0.0
  %2892 = vmatpush1.msra.mxu0 0.0
  %2893 = vmatprep.subr.mxu0 0.0
  %2894 = vmatpush1.msra.mxu0 0.0
  %2895 = vmatprep.subr.mxu0 0.0
  %2896 = vmatpush1.msra.mxu0 0.0
  %2897 = vmatprep.subr.mxu0 0.0
  %2898 = vmatpush1.msra.mxu0 0.0
  %2899 = vmatprep.subr.mxu0 0.0
  %2900 = vmatpush1.msra.mxu0 0.0
  %2901 = vmatprep.subr.mxu0 0.0
  %2902 = vmatpush1.msra.mxu0 0.0
  %2903 = vmatprep.subr.mxu0 0.0
  %2904 = vmatpush1.msra.mxu0 0.0
  %2905 = vmatprep.subr.mxu0 0.0
  %2906 = vmatpush1.msra.mxu0 0.0
  %2907 = vmatprep.subr.mxu0 0.0
  %2908 = vmatpush1.msra.mxu0 0.0
  %2909 = vmatprep.subr.mxu0 0.0
  %2910 = vmatpush1.msra.mxu0 0.0
  %2911 = vmatprep.subr.mxu0 0.0
  %2912 = vmatpush1.msra.mxu0 0.0
  %2913 = vmatprep.subr.mxu0 0.0
  %2914 = vmatpush1.msra.mxu0 0.0
  %2915 = vmatprep.mubr.f32.mxu0 0.0
  %2916 = vmatmul.mubr.f32.gmra.mrb[0].mxu0 %v2849
  %v2917 = vpop.f32.mrb[0].mxu0
  %v2918 = vadd.f32 0.0, %v2917
  %v2919 = vpop.f32.mrb[0].mxu0
  %2920 = vdwg.mxu0
  %v2922 = vsel %vm511, %v439, 0
  %2924 = vmatprep.subr.mxu0 0.0
  %2925 = vmatpush1.msra.mxu0 %v507
  %2926 = vmatprep.subr.mxu0 0.0
  %2927 = vmatpush1.msra.mxu0 %v508
  %2928 = vmatprep.subr.mxu0 0.0
  %2929 = vmatpush1.msra.mxu0 0.0
  %2930 = vmatprep.subr.mxu0 0.0
  %2931 = vmatpush1.msra.mxu0 0.0
  %2932 = vmatprep.subr.mxu0 0.0
  %2933 = vmatpush1.msra.mxu0 0.0
  %2934 = vmatprep.subr.mxu0 0.0
  %2935 = vmatpush1.msra.mxu0 0.0
  %2936 = vmatprep.subr.mxu0 0.0
  %2937 = vmatpush1.msra.mxu0 0.0
  %2938 = vmatprep.subr.mxu0 0.0
  %2939 = vmatpush1.msra.mxu0 0.0
  %2940 = vmatprep.subr.mxu0 0.0
  %2941 = vmatpush1.msra.mxu0 0.0
  %2942 = vmatprep.subr.mxu0 0.0
  %2943 = vmatpush1.msra.mxu0 0.0
  %2944 = vmatprep.subr.mxu0 0.0
  %2945 = vmatpush1.msra.mxu0 0.0
  %2946 = vmatprep.subr.mxu0 0.0
  %2947 = vmatpush1.msra.mxu0 0.0
  %2948 = vmatprep.subr.mxu0 0.0
  %2949 = vmatpush1.msra.mxu0 0.0
  %2950 = vmatprep.subr.mxu0 0.0
  %2951 = vmatpush1.msra.mxu0 0.0
  %2952 = vmatprep.subr.mxu0 0.0
  %2953 = vmatpush1.msra.mxu0 0.0
  %2954 = vmatprep.subr.mxu0 0.0
  %2955 = vmatpush1.msra.mxu0 0.0
  %2956 = vmatprep.subr.mxu0 0.0
  %2957 = vmatpush1.msra.mxu0 0.0
  %2958 = vmatprep.subr.mxu0 0.0
  %2959 = vmatpush1.msra.mxu0 0.0
  %2960 = vmatprep.subr.mxu0 0.0
  %2961 = vmatpush1.msra.mxu0 0.0
  %2962 = vmatprep.subr.mxu0 0.0
  %2963 = vmatpush1.msra.mxu0 0.0
  %2964 = vmatprep.subr.mxu0 0.0
  %2965 = vmatpush1.msra.mxu0 0.0
  %2966 = vmatprep.subr.mxu0 0.0
  %2967 = vmatpush1.msra.mxu0 0.0
  %2968 = vmatprep.subr.mxu0 0.0
  %2969 = vmatpush1.msra.mxu0 0.0
  %2970 = vmatprep.subr.mxu0 0.0
  %2971 = vmatpush1.msra.mxu0 0.0
  %2972 = vmatprep.subr.mxu0 0.0
  %2973 = vmatpush1.msra.mxu0 0.0
  %2974 = vmatprep.subr.mxu0 0.0
  %2975 = vmatpush1.msra.mxu0 0.0
  %2976 = vmatprep.subr.mxu0 0.0
  %2977 = vmatpush1.msra.mxu0 0.0
  %2978 = vmatprep.subr.mxu0 0.0
  %2979 = vmatpush1.msra.mxu0 0.0
  %2980 = vmatprep.subr.mxu0 0.0
  %2981 = vmatpush1.msra.mxu0 0.0
  %2982 = vmatprep.subr.mxu0 0.0
  %2983 = vmatpush1.msra.mxu0 0.0
  %2984 = vmatprep.subr.mxu0 0.0
  %2985 = vmatpush1.msra.mxu0 0.0
  %2986 = vmatprep.subr.mxu0 0.0
  %2987 = vmatpush1.msra.mxu0 0.0
  %2988 = vmatprep.mubr.f32.mxu0 0.0
  %2989 = vmatmul.mubr.f32.gmra.mrb[0].mxu0 %v2922
  %v2990 = vpop.f32.mrb[0].mxu0
  %v2991 = vadd.f32 0.0, %v2990
  %v2992 = vpop.f32.mrb[0].mxu0
  %2993 = vdwg.mxu0
  %v2995 = vsel %vm511, %v440, 0
  %2997 = vmatprep.subr.mxu0 0.0
  %2998 = vmatpush1.msra.mxu0 %v509
  %2999 = vmatprep.subr.mxu0 0.0
  %3000 = vmatpush1.msra.mxu0 %v510
  %3001 = vmatprep.subr.mxu0 0.0
  %3002 = vmatpush1.msra.mxu0 0.0
  %3003 = vmatprep.subr.mxu0 0.0
  %3004 = vmatpush1.msra.mxu0 0.0
  %3005 = vmatprep.subr.mxu0 0.0
  %3006 = vmatpush1.msra.mxu0 0.0
  %3007 = vmatprep.subr.mxu0 0.0
  %3008 = vmatpush1.msra.mxu0 0.0
  %3009 = vmatprep.subr.mxu0 0.0
  %3010 = vmatpush1.msra.mxu0 0.0
  %3011 = vmatprep.subr.mxu0 0.0
  %3012 = vmatpush1.msra.mxu0 0.0
  %3013 = vmatprep.subr.mxu0 0.0
  %3014 = vmatpush1.msra.mxu0 0.0
  %3015 = vmatprep.subr.mxu0 0.0
  %3016 = vmatpush1.msra.mxu0 0.0
  %3017 = vmatprep.subr.mxu0 0.0
  %3018 = vmatpush1.msra.mxu0 0.0
  %3019 = vmatprep.subr.mxu0 0.0
  %3020 = vmatpush1.msra.mxu0 0.0
  %3021 = vmatprep.subr.mxu0 0.0
  %3022 = vmatpush1.msra.mxu0 0.0
  %3023 = vmatprep.subr.mxu0 0.0
  %3024 = vmatpush1.msra.mxu0 0.0
  %3025 = vmatprep.subr.mxu0 0.0
  %3026 = vmatpush1.msra.mxu0 0.0
  %3027 = vmatprep.subr.mxu0 0.0
  %3028 = vmatpush1.msra.mxu0 0.0
  %3029 = vmatprep.subr.mxu0 0.0
  %3030 = vmatpush1.msra.mxu0 0.0
  %3031 = vmatprep.subr.mxu0 0.0
  %3032 = vmatpush1.msra.mxu0 0.0
  %3033 = vmatprep.subr.mxu0 0.0
  %3034 = vmatpush1.msra.mxu0 0.0
  %3035 = vmatprep.subr.mxu0 0.0
  %3036 = vmatpush1.msra.mxu0 0.0
  %3037 = vmatprep.subr.mxu0 0.0
  %3038 = vmatpush1.msra.mxu0 0.0
  %3039 = vmatprep.subr.mxu0 0.0
  %3040 = vmatpush1.msra.mxu0 0.0
  %3041 = vmatprep.subr.mxu0 0.0
  %3042 = vmatpush1.msra.mxu0 0.0
  %3043 = vmatprep.subr.mxu0 0.0
  %3044 = vmatpush1.msra.mxu0 0.0
  %3045 = vmatprep.subr.mxu0 0.0
  %3046 = vmatpush1.msra.mxu0 0.0
  %3047 = vmatprep.subr.mxu0 0.0
  %3048 = vmatpush1.msra.mxu0 0.0
  %3049 = vmatprep.subr.mxu0 0.0
  %3050 = vmatpush1.msra.mxu0 0.0
  %3051 = vmatprep.subr.mxu0 0.0
  %3052 = vmatpush1.msra.mxu0 0.0
  %3053 = vmatprep.subr.mxu0 0.0
  %3054 = vmatpush1.msra.mxu0 0.0
  %3055 = vmatprep.subr.mxu0 0.0
  %3056 = vmatpush1.msra.mxu0 0.0
  %3057 = vmatprep.subr.mxu0 0.0
  %3058 = vmatpush1.msra.mxu0 0.0
  %3059 = vmatprep.subr.mxu0 0.0
  %3060 = vmatpush1.msra.mxu0 0.0
  %3061 = vmatprep.mubr.f32.mxu0 0.0
  %3062 = vmatmul.mubr.f32.gmra.mrb[0].mxu0 %v2995
  %v3063 = vpop.f32.mrb[0].mxu0
  %v3064 = vadd.f32 0.0, %v3063
  %v3065 = vpop.f32.mrb[0].mxu0
  %3066 = vdwg.mxu0
  %vm3067 = vcmask 80896
  %v3068 = vsel %vm3067, %v582, 0.0
  %v3069 = vsel %vm3067, %v655, 0.0
  %v3070 = vadd.f32 %v3068, %v3069
  %v3071 = vsel %vm3067, %v728, 0.0
  %v3072 = vadd.f32 %v3070, %v3071
  %v3073 = vsel %vm3067, %v801, 0.0
  %v3074 = vadd.f32 %v3072, %v3073
  %v3075 = vsel %vm3067, %v874, 0.0
  %v3076 = vadd.f32 %v3074, %v3075
  %v3077 = vsel %vm3067, %v947, 0.0
  %v3078 = vadd.f32 %v3076, %v3077
  %v3079 = vsel %vm3067, %v1020, 0.0
  %v3080 = vadd.f32 %v3078, %v3079
  %v3081 = vsel %vm3067, %v1093, 0.0
  %v3082 = vadd.f32 %v3080, %v3081
  %v3083 = vsel %vm3067, %v1166, 0.0
  %v3084 = vadd.f32 %v3082, %v3083
  %v3085 = vsel %vm3067, %v1239, 0.0
  %v3086 = vadd.f32 %v3084, %v3085
  %v3087 = vsel %vm3067, %v1312, 0.0
  %v3088 = vadd.f32 %v3086, %v3087
  %v3089 = vsel %vm3067, %v1385, 0.0
  %v3090 = vadd.f32 %v3088, %v3089
  %v3091 = vsel %vm3067, %v1458, 0.0
  %v3092 = vadd.f32 %v3090, %v3091
  %v3093 = vsel %vm3067, %v1531, 0.0
  %v3094 = vadd.f32 %v3092, %v3093
  %v3095 = vsel %vm3067, %v1604, 0.0
  %v3096 = vadd.f32 %v3094, %v3095
  %v3097 = vsel %vm3067, %v1677, 0.0
  %v3098 = vadd.f32 %v3096, %v3097
  %v3099 = vsel %vm3067, %v1750, 0.0
  %v3100 = vadd.f32 %v3098, %v3099
  %v3101 = vsel %vm3067, %v1823, 0.0
  %v3102 = vadd.f32 %v3100, %v3101
  %v3103 = vsel %vm3067, %v1896, 0.0
  %v3104 = vadd.f32 %v3102, %v3103
  %v3105 = vsel %vm3067, %v1969, 0.0
  %v3106 = vadd.f32 %v3104, %v3105
  %v3107 = vsel %vm3067, %v2042, 0.0
  %v3108 = vadd.f32 %v3106, %v3107
  %v3109 = vsel %vm3067, %v2115, 0.0
  %v3110 = vadd.f32 %v3108, %v3109
  %v3111 = vsel %vm3067, %v2188, 0.0
  %v3112 = vadd.f32 %v3110, %v3111
  %v3113 = vsel %vm3067, %v2261, 0.0
  %v3114 = vadd.f32 %v3112, %v3113
  %v3115 = vsel %vm3067, %v2334, 0.0
  %v3116 = vadd.f32 %v3114, %v3115
  %v3117 = vsel %vm3067, %v2407, 0.0
  %v3118 = vadd.f32 %v3116, %v3117
  %v3119 = vsel %vm3067, %v2480, 0.0
  %v3120 = vadd.f32 %v3118, %v3119
  %v3121 = vsel %vm3067, %v2553, 0.0
  %v3122 = vadd.f32 %v3120, %v3121
  %v3123 = vsel %vm3067, %v2626, 0.0
  %v3124 = vadd.f32 %v3122, %v3123
  %v3125 = vsel %vm3067, %v2699, 0.0
  %v3126 = vadd.f32 %v3124, %v3125
  %v3127 = vsel %vm3067, %v2772, 0.0
  %v3128 = vadd.f32 %v3126, %v3127
  %v3129 = vsel %vm3067, %v2845, 0.0
  %v3130 = vadd.f32 %v3128, %v3129
  %v3131 = vsel %vm3067, %v2918, 0.0
  %v3132 = vadd.f32 %v3130, %v3131
  %v3133 = vsel %vm3067, %v2991, 0.0
  %v3134 = vadd.f32 %v3132, %v3133
  %v3135 = vsel %vm3067, %v3064, 0.0
  %v3136 = vadd.f32 %v3134, %v3135
  %v3137 = vld [vmem:[%s3 + $0x14] sm:$0x1]
  %v3138 = vlaneseq
  %v3139 = vshrl.u32 %v3138, 7
  %v3140 = vsub.s32 0, %v3139
  %v3141 = vrot.slane %v3137, %v3140
  %v3142 = vadd.f32 %v3136, %v3141
  %v3143 = vtanh.pop %v3142
  %v3144 = vld [vmem:[%s3] sm:$0xff]
  %v3145 = vld [vmem:[%s3 + $0x8] sm:$0x3]
  %v3146 = vld [vmem:[%s3 + $0x15] sm:$0x1]
  %v3147 = vlaneseq
  %v3148 = vshrl.u32 %v3147, 7
  %v3149 = vsub.s32 0, %v3148
  %v3150 = vrot.slane %v3146, %v3149
  %v3152 = vsel %vm3067, %v3143, 0
  %vm3154 = vcmask 1041408
  %v3156 = vsel %vm3154, %v3145, 0
  %3158 = vmatprep.subr.mxu0 0.0
  %3159 = vmatpush1.msra.mxu0 %v3144
  %3160 = vmatprep.subr.mxu0 0.0
  %3161 = vmatpush1.msra.mxu0 %v3156
  %3162 = vmatprep.subr.mxu0 0.0
  %3163 = vmatpush1.msra.mxu0 0.0
  %3164 = vmatprep.subr.mxu0 0.0
  %3165 = vmatpush1.msra.mxu0 0.0
  %3166 = vmatprep.subr.mxu0 0.0
  %3167 = vmatpush1.msra.mxu0 0.0
  %3168 = vmatprep.subr.mxu0 0.0
  %3169 = vmatpush1.msra.mxu0 0.0
  %3170 = vmatprep.subr.mxu0 0.0
  %3171 = vmatpush1.msra.mxu0 0.0
  %3172 = vmatprep.subr.mxu0 0.0
  %3173 = vmatpush1.msra.mxu0 0.0
  %3174 = vmatprep.subr.mxu0 0.0
  %3175 = vmatpush1.msra.mxu0 0.0
  %3176 = vmatprep.subr.mxu0 0.0
  %3177 = vmatpush1.msra.mxu0 0.0
  %3178 = vmatprep.subr.mxu0 0.0
  %3179 = vmatpush1.msra.mxu0 0.0
  %3180 = vmatprep.subr.mxu0 0.0
  %3181 = vmatpush1.msra.mxu0 0.0
  %3182 = vmatprep.subr.mxu0 0.0
  %3183 = vmatpush1.msra.mxu0 0.0
  %3184 = vmatprep.subr.mxu0 0.0
  %3185 = vmatpush1.msra.mxu0 0.0
  %3186 = vmatprep.subr.mxu0 0.0
  %3187 = vmatpush1.msra.mxu0 0.0
  %3188 = vmatprep.subr.mxu0 0.0
  %3189 = vmatpush1.msra.mxu0 0.0
  %3190 = vmatprep.subr.mxu0 0.0
  %3191 = vmatpush1.msra.mxu0 0.0
  %3192 = vmatprep.subr.mxu0 0.0
  %3193 = vmatpush1.msra.mxu0 0.0
  %3194 = vmatprep.subr.mxu0 0.0
  %3195 = vmatpush1.msra.mxu0 0.0
  %3196 = vmatprep.subr.mxu0 0.0
  %3197 = vmatpush1.msra.mxu0 0.0
  %3198 = vmatprep.subr.mxu0 0.0
  %3199 = vmatpush1.msra.mxu0 0.0
  %3200 = vmatprep.subr.mxu0 0.0
  %3201 = vmatpush1.msra.mxu0 0.0
  %3202 = vmatprep.subr.mxu0 0.0
  %3203 = vmatpush1.msra.mxu0 0.0
  %3204 = vmatprep.subr.mxu0 0.0
  %3205 = vmatpush1.msra.mxu0 0.0
  %3206 = vmatprep.subr.mxu0 0.0
  %3207 = vmatpush1.msra.mxu0 0.0
  %3208 = vmatprep.subr.mxu0 0.0
  %3209 = vmatpush1.msra.mxu0 0.0
  %3210 = vmatprep.subr.mxu0 0.0
  %3211 = vmatpush1.msra.mxu0 0.0
  %3212 = vmatprep.subr.mxu0 0.0
  %3213 = vmatpush1.msra.mxu0 0.0
  %3214 = vmatprep.subr.mxu0 0.0
  %3215 = vmatpush1.msra.mxu0 0.0
  %3216 = vmatprep.subr.mxu0 0.0
  %3217 = vmatpush1.msra.mxu0 0.0
  %3218 = vmatprep.subr.mxu0 0.0
  %3219 = vmatpush1.msra.mxu0 0.0
  %3220 = vmatprep.subr.mxu0 0.0
  %3221 = vmatpush1.msra.mxu0 0.0
  %3222 = vmatprep.mubr.f32.mxu0 0.0
  %3223 = vmatmul.mubr.f32.gmra.mrb[0].mxu0 %v3152
  %v3224 = vpop.f32.mrb[0].mxu0
  %v3225 = vadd.f32 %v3150, %v3224
  %v3226 = vpop.f32.mrb[0].mxu0
  %3227 = vdwg.mxu0
  %v3228 = vld [vmem:[%s3 + $0xa] sm:$0xff]
  %v3229 = vld [vmem:[%s3 + $0x12] sm:$0x3]
  %v3230 = vld [vmem:[%s3 + $0x16] sm:$0x1]
  %v3231 = vlaneseq
  %v3232 = vshrl.u32 %v3231, 7
  %v3233 = vsub.s32 0, %v3232
  %v3234 = vrot.slane %v3230, %v3233
  %v3236 = vsel %vm3067, %v3225, 0
  %v3239 = vsel %vm3154, %v3229, 0
  %3241 = vmatprep.subr.mxu0 0.0
  %3242 = vmatpush1.msra.mxu0 %v3228
  %3243 = vmatprep.subr.mxu0 0.0
  %3244 = vmatpush1.msra.mxu0 %v3239
  %3245 = vmatprep.subr.mxu0 0.0
  %3246 = vmatpush1.msra.mxu0 0.0
  %3247 = vmatprep.subr.mxu0 0.0
  %3248 = vmatpush1.msra.mxu0 0.0
  %3249 = vmatprep.subr.mxu0 0.0
  %3250 = vmatpush1.msra.mxu0 0.0
  %3251 = vmatprep.subr.mxu0 0.0
  %3252 = vmatpush1.msra.mxu0 0.0
  %3253 = vmatprep.subr.mxu0 0.0
  %3254 = vmatpush1.msra.mxu0 0.0
  %3255 = vmatprep.subr.mxu0 0.0
  %3256 = vmatpush1.msra.mxu0 0.0
  %3257 = vmatprep.subr.mxu0 0.0
  %3258 = vmatpush1.msra.mxu0 0.0
  %3259 = vmatprep.subr.mxu0 0.0
  %3260 = vmatpush1.msra.mxu0 0.0
  %3261 = vmatprep.subr.mxu0 0.0
  %3262 = vmatpush1.msra.mxu0 0.0
  %3263 = vmatprep.subr.mxu0 0.0
  %3264 = vmatpush1.msra.mxu0 0.0
  %3265 = vmatprep.subr.mxu0 0.0
  %3266 = vmatpush1.msra.mxu0 0.0
  %3267 = vmatprep.subr.mxu0 0.0
  %3268 = vmatpush1.msra.mxu0 0.0
  %3269 = vmatprep.subr.mxu0 0.0
  %3270 = vmatpush1.msra.mxu0 0.0
  %3271 = vmatprep.subr.mxu0 0.0
  %3272 = vmatpush1.msra.mxu0 0.0
  %3273 = vmatprep.subr.mxu0 0.0
  %3274 = vmatpush1.msra.mxu0 0.0
  %3275 = vmatprep.subr.mxu0 0.0
  %3276 = vmatpush1.msra.mxu0 0.0
  %3277 = vmatprep.subr.mxu0 0.0
  %3278 = vmatpush1.msra.mxu0 0.0
  %3279 = vmatprep.subr.mxu0 0.0
  %3280 = vmatpush1.msra.mxu0 0.0
  %3281 = vmatprep.subr.mxu0 0.0
  %3282 = vmatpush1.msra.mxu0 0.0
  %3283 = vmatprep.subr.mxu0 0.0
  %3284 = vmatpush1.msra.mxu0 0.0
  %3285 = vmatprep.subr.mxu0 0.0
  %3286 = vmatpush1.msra.mxu0 0.0
  %3287 = vmatprep.subr.mxu0 0.0
  %3288 = vmatpush1.msra.mxu0 0.0
  %3289 = vmatprep.subr.mxu0 0.0
  %3290 = vmatpush1.msra.mxu0 0.0
  %3291 = vmatprep.subr.mxu0 0.0
  %3292 = vmatpush1.msra.mxu0 0.0
  %3293 = vmatprep.subr.mxu0 0.0
  %3294 = vmatpush1.msra.mxu0 0.0
  %3295 = vmatprep.subr.mxu0 0.0
  %3296 = vmatpush1.msra.mxu0 0.0
  %3297 = vmatprep.subr.mxu0 0.0
  %3298 = vmatpush1.msra.mxu0 0.0
  %3299 = vmatprep.subr.mxu0 0.0
  %3300 = vmatpush1.msra.mxu0 0.0
  %3301 = vmatprep.subr.mxu0 0.0
  %3302 = vmatpush1.msra.mxu0 0.0
  %3303 = vmatprep.subr.mxu0 0.0
  %3304 = vmatpush1.msra.mxu0 0.0
  %3305 = vmatprep.mubr.f32.mxu0 0.0
  %3306 = vmatmul.mubr.f32.gmra.mrb[0].mxu0 %v3236
  %v3307 = vpop.f32.mrb[0].mxu0
  %v3308 = vadd.f32 %v3234, %v3307
  %v3309 = vpop.f32.mrb[0].mxu0
  %3310 = vdwg.mxu0
  %vm3311 = vcmask 15360
  %3312 = vst.msk [vmem:[%s4] sm:$0xff] %vm3311, %v3308
  // Predicated region
  $region18: #{model_tanh_forward.1} parent=0 // pred_check
    _
  $region19: #{model_tanh_forward.1} parent=0 // pred_check_branch
    %3314 = sbr.rel (0) target = $region21
  $region20: #{model_tanh_forward.1} parent=0 // pred_region
    _
  $region21: #{model_tanh_forward.1} parent=0 // pred_fallthru
    _
  // Predicated region
  $region22: #{model_tanh_forward.1} parent=0 // pred_check
    _
  $region23: #{model_tanh_forward.1} parent=0 // pred_check_branch
    %3316 = sbr.rel (0) target = $region25
  $region24: #{model_tanh_forward.1} parent=0 // pred_region
    _
  $region25: #{model_tanh_forward.1} parent=0 // pred_fallthru
    _

</llo_original>
